<compile_context>
chip_gen: v6e
topology: v6e:2x2x1
jax: 0.10.0
libtpu: 0.0.40
codegen_flags: <defaults>
</compile_context>

<pallas_src>
import jax
import jax.numpy as jnp
from jax.experimental import pallas as pl
from jax.experimental.pallas import tpu as pltpu


def _round_up(n, m):
    return ((n + m - 1) // m) * m


# ----------------------------------------------------------------------------
# Pallas kernel: out = relu(x @ Wi) @ Wo + x @ Wkron + bias
# ----------------------------------------------------------------------------
def _kronab_ffn_kernel(x_ref, wi_ref, wo_ref, wk_ref, bias_ref, o_ref):
    x = x_ref[...]                                   # (tt, D) f32 activations
    xm = x.astype(wi_ref.dtype)                      # bf16 MXU operand (no-op if f32)

    # T5 DenseReluDense: wo(relu(wi(x)))   (no biases; dropout = identity in eval)
    h = jnp.dot(xm, wi_ref[...], preferred_element_type=jnp.float32)     # (tt, Dff)
    h = jnp.maximum(h, 0.0)                                              # ReLU in f32
    ffn = jnp.dot(h.astype(wo_ref.dtype), wo_ref[...],
                  preferred_element_type=jnp.float32)                    # (tt, D)

    # KronAB adapter: scale * x @ kron(A,B)^T + bias  (scale folded into wk_ref)
    kr = jnp.dot(xm, wk_ref[...], preferred_element_type=jnp.float32)    # (tt, D)

    # f32 epilogue (bias is kept f32), single cast at the store.
    o_ref[...] = (ffn + kr + bias_ref[...]).astype(o_ref.dtype)


def _resident_spec(shape, single_buffer):
    """BlockSpec for an operand that is fully resident (constant block index)."""
    ndim = len(shape)
    index_map = lambda i: (0,) * ndim
    if single_buffer:
        # Constant index_map => double-buffering is pure VMEM waste.
        return pl.BlockSpec(shape, index_map, pipeline_mode=pl.Buffered(1))
    return pl.BlockSpec(shape, index_map)


def _build_ffn_call(T, D, Dff, act_dtype, w_dtype, tt, single_buffer_weights):
    act_bytes = jnp.dtype(act_dtype).itemsize
    w_bytes = jnp.dtype(w_dtype).itemsize

    weight_bytes = (D * Dff + Dff * D + D * D) * w_bytes + D * 4          # Wi, Wo, Wkron, bias
    io_bytes = 2 * 2 * tt * D * act_bytes                                 # x/out tiles, 2-deep
    scratch_bytes = tt * (Dff + 2 * D) * 4                                # f32 h / ffn / kr
    vmem_limit = int(min(100 * 2**20,
                         max(32 * 2**20,
                             2 * weight_bytes + io_bytes + 2 * scratch_bytes)))

    flops = 2 * T * D * (2 * Dff + D)
    bytes_accessed = weight_bytes + 2 * T * D * act_bytes

    return pl.pallas_call(
        _kronab_ffn_kernel,
        out_shape=jax.ShapeDtypeStruct((T, D), act_dtype),
        grid_spec=pltpu.PrefetchScalarGridSpec(
            num_scalar_prefetch=0,
            grid=(T // tt,),
            in_specs=[
                pl.BlockSpec((tt, D), lambda i: (i, 0)),                  # x: token-tiled
                _resident_spec((D, Dff), single_buffer_weights),          # Wi  (resident)
                _resident_spec((Dff, D), single_buffer_weights),          # Wo  (resident)
                _resident_spec((D, D), single_buffer_weights),            # kron(A,B)^T*scale
                _resident_spec((1, D), single_buffer_weights),            # bias (f32)
            ],
            out_specs=pl.BlockSpec((tt, D), lambda i: (i, 0)),
        ),
        compiler_params=pltpu.CompilerParams(
            dimension_semantics=("parallel",),          # token tiles are independent
            vmem_limit_bytes=vmem_limit,
        ),
        cost_estimate=pl.CostEstimate(
            flops=flops, transcendentals=0, bytes_accessed=bytes_accessed),
    )


def kronab_ffn(x, wi, wo, wkron, bias, *, token_tile=256):
    """x: (T, D) f32.  wi: (D, Dff), wo: (Dff, D), wkron: (D, D) (bf16 or f32), bias: (1, D) f32."""
    T, D = x.shape
    Dff = wi.shape[1]

    # Sublane-aligned token tile; pad the token axis so the grid divides evenly.
    tt = _round_up(min(token_tile, _round_up(T, 8)), 8)
    Tp = _round_up(T, tt)
    xp = jnp.pad(x, ((0, Tp - T), (0, 0))) if Tp != T else x

    # NOTE: no input_output_aliases — the activation may alias the caller's array
    # (reshape view), so donation is unsafe in this eager per-layer loop.
    try:
        out = _build_ffn_call(Tp, D, Dff, x.dtype, wi.dtype, tt, True)(
            xp, wi, wo, wkron, bias)
    except Exception:
        # TODO(synk): jax build without single-buffered pipeline_mode=pl.Buffered(1);
        # fall back to default double-buffered resident weights (identical math).
        out = _build_ffn_call(Tp, D, Dff, x.dtype, wi.dtype, tt, False)(
            xp, wi, wo, wkron, bias)

    return out[:T] if Tp != T else out


# ----------------------------------------------------------------------------
# Parameter construction (deterministic, synthetic) — plain-JAX glue
# ----------------------------------------------------------------------------
def make_layer_params(key, d_model, d_ff, a, b, scale, num_biases=1,
                      param_dtype=jnp.bfloat16):
    """One adapted FFN block: frozen T5 FFN weights + KronAB adapter params."""
    k_wi, k_wo, k_a, k_b, k_bias = jax.random.split(key, 5)
    # PyTorch nn.Linear weight is (out, in); store the transpose so the kernel
    # computes x @ W directly (equivalent to x @ W_pt.T).
    wi_pt = jax.random.normal(k_wi, (d_ff, d_model), jnp.float32) * 0.05
    wo_pt = jax.random.normal(k_wo, (d_model, d_ff), jnp.float32) * 0.05
    A = jax.random.normal(k_a, (a, a), jnp.float32) * 0.05
    B = jax.random.normal(k_b, (b, b), jnp.float32) * 0.05
    # TODO(synk): KronAB's exact num_biases>1 semantics are not specified; we use
    # the sum of `num_biases` bias vectors (identical to one bias when num_biases==1).
    biases = jax.random.normal(k_bias, (num_biases, d_model), jnp.float32) * 0.01
    bias = jnp.sum(biases, axis=0, keepdims=True)                          # (1, D) f32

    wkron = scale * jnp.kron(A, B).T                                       # (D, D)
    return dict(
        wi=wi_pt.T.astype(param_dtype),
        wo=wo_pt.T.astype(param_dtype),
        wkron=wkron.astype(param_dtype),
        bias=bias.astype(jnp.float32),     # bias/epilogue stay f32 (scale-amplified adapter)
    )


def reference_layer(x, p):
    """Pure-JAX reference of ffn(x) + krona(x), mirroring the kernel's bf16 rounding points."""
    f32 = jnp.float32
    wd = p["wi"].dtype
    xw = x.astype(wd).astype(f32)
    wi = p["wi"].astype(f32)
    wo = p["wo"].astype(f32)
    wk = p["wkron"].astype(f32)
    h = jnp.maximum(xw @ wi, 0.0)
    ffn = h.astype(wd).astype(f32) @ wo
    kr = xw @ wk
    return (ffn + kr + p["bias"]).astype(x.dtype)


# ----------------------------------------------------------------------------
# KronABT5 (synthetic): a stack of adapted FFN blocks (encoder + decoder)
# ----------------------------------------------------------------------------
class KronABT5Pallas:
    # TODO(synk): the full T5 stack (attention, layernorm, embeddings, generation
    # loop) has no clean single-kernel Pallas equivalent here; only the patched
    # FFN hot path  ffn(x) + KronAB(x)  is implemented as a Pallas kernel.
    def __init__(self, d_model=128, d_ff=512, n_enc=2, n_dec=2,
                 scale=16.0, num_biases=1, seed=0,
                 param_dtype=jnp.bfloat16, token_tile=256):
        # Kronecker factor sizes: largest power-of-two a with a*a <= d_model, b = d_model/a.
        a = 1
        while (a * 2) * (a * 2) <= d_model and d_model % (a * 2) == 0:
            a *= 2
        b = d_model // a
        self.token_tile = token_tile
        keys = jax.random.split(jax.random.PRNGKey(seed), n_enc + n_dec)
        self.layers = [
            make_layer_params(k, d_model, d_ff, a, b, scale, num_biases, param_dtype)
            for k in keys
        ]

    def __call__(self, x):
        # x: (B, S, D) -> tokens (B*S, D); tokens on sublanes, features on lanes.
        B, S, D = x.shape
        t = x.reshape(B * S, D)
        for p in self.layers:
            t = kronab_ffn(t, p["wi"], p["wo"], p["wkron"], p["bias"],
                           token_tile=self.token_tile)
        return t.reshape(B, S, D)

    def reference(self, x):
        B, S, D = x.shape
        t = x.reshape(B * S, D)
        for p in self.layers:
            t = reference_layer(t, p)
        return t.reshape(B, S, D)


if __name__ == "__main__":
    # Small but lane-dense config: D, Dff multiples of 128; T = 500 tokens exercises
    # both the multi-tile grid (token_tile=256 -> grid=(2,)) and the padding path.
    B, S, D, Dff = 2, 250, 128, 512
    key = jax.random.PRNGKey(0)
    x = jax.random.normal(key, (B, S, D), jnp.float32)

    model = KronABT5Pallas(d_model=D, d_ff=Dff, n_enc=2, n_dec=2,
                           scale=16.0, num_biases=1, seed=0,
                           param_dtype=jnp.bfloat16, token_tile=256)

    out = jax.block_until_ready(model(x))
    ref = jax.block_until_ready(model.reference(x))

    assert out.shape == (B, S, D)
    err = float(jnp.max(jnp.abs(out - ref)))
    assert err < 2e-3, err
    print("KERNEL_OK")
</pallas_src>

<mosaic_0001>
module attributes {stable_mosaic.version = 11 : i64} {
  func.func @_kronab_ffn_kernel(%arg0: i32, %arg1: memref<256x128xf32, #tpu.memory_space<vmem>>, %arg2: memref<128x512xbf16, #tpu.memory_space<vmem>>, %arg3: memref<512x128xbf16, #tpu.memory_space<vmem>>, %arg4: memref<128x128xbf16, #tpu.memory_space<vmem>>, %arg5: memref<1x128xf32, #tpu.memory_space<vmem>>, %arg6: memref<256x128xf32, #tpu.memory_space<vmem>>) attributes {dimension_semantics = [#tpu.dimension_semantics<parallel>], iteration_bounds = array<i64: 2>, scalar_prefetch = 0 : i64, scratch_operands = 0 : i64, tpu.core_type = #tpu.core_type<tc>, window_params = [{transform_indices = @transform_0, window_bounds = array<i64: 256, 128>}, {pipeline_mode = #tpu.pipeline_mode<synchronous>, transform_indices = @transform_1, window_bounds = array<i64: 128, 512>}, {pipeline_mode = #tpu.pipeline_mode<synchronous>, transform_indices = @transform_2, window_bounds = array<i64: 512, 128>}, {pipeline_mode = #tpu.pipeline_mode<synchronous>, transform_indices = @transform_3, window_bounds = array<i64: 128, 128>}, {pipeline_mode = #tpu.pipeline_mode<synchronous>, transform_indices = @transform_4, window_bounds = array<i64: 1, 128>}, {transform_indices = @transform_5, window_bounds = array<i64: 256, 128>}]} {
    %c0 = arith.constant 0 : index
    %c0_0 = arith.constant 0 : index
    %0 = vector.load %arg1[%c0, %c0_0] : memref<256x128xf32, #tpu.memory_space<vmem>>, vector<256x128xf32>
    %1 = arith.truncf %0 : vector<256x128xf32> to vector<256x128xbf16>
    %c0_1 = arith.constant 0 : index
    %c0_2 = arith.constant 0 : index
    %2 = vector.load %arg2[%c0_1, %c0_2] : memref<128x512xbf16, #tpu.memory_space<vmem>>, vector<128x512xbf16>
    %cst = arith.constant dense<0.000000e+00> : vector<256x512xf32>
    %3 = tpu.matmul %1, %2, %cst {dimension_numbers = #tpu.dot_dimension_numbers<[1], [0], [0], [1], [0, 0, 1, 1], [], []>} : vector<256x128xbf16>, vector<128x512xbf16>, vector<256x512xf32> -> vector<256x512xf32>
    %cst_3 = arith.constant 0.000000e+00 : f32
    %4 = vector.broadcast %cst_3 : f32 to vector<256x512xf32>
    %5 = arith.maximumf %3, %4 : vector<256x512xf32>
    %6 = arith.truncf %5 : vector<256x512xf32> to vector<256x512xbf16>
    %c0_4 = arith.constant 0 : index
    %c0_5 = arith.constant 0 : index
    %7 = vector.load %arg3[%c0_4, %c0_5] : memref<512x128xbf16, #tpu.memory_space<vmem>>, vector<512x128xbf16>
    %cst_6 = arith.constant dense<0.000000e+00> : vector<256x128xf32>
    %8 = tpu.matmul %6, %7, %cst_6 {dimension_numbers = #tpu.dot_dimension_numbers<[1], [0], [0], [1], [0, 0, 1, 1], [], []>} : vector<256x512xbf16>, vector<512x128xbf16>, vector<256x128xf32> -> vector<256x128xf32>
    %c0_7 = arith.constant 0 : index
    %c0_8 = arith.constant 0 : index
    %9 = vector.load %arg4[%c0_7, %c0_8] : memref<128x128xbf16, #tpu.memory_space<vmem>>, vector<128x128xbf16>
    %cst_9 = arith.constant dense<0.000000e+00> : vector<256x128xf32>
    %10 = tpu.matmul %1, %9, %cst_9 {dimension_numbers = #tpu.dot_dimension_numbers<[1], [0], [0], [1], [0, 0, 1, 1], [], []>} : vector<256x128xbf16>, vector<128x128xbf16>, vector<256x128xf32> -> vector<256x128xf32>
    %11 = arith.addf %8, %10 : vector<256x128xf32>
    %c0_10 = arith.constant 0 : index
    %c0_11 = arith.constant 0 : index
    %12 = vector.load %arg5[%c0_10, %c0_11] : memref<1x128xf32, #tpu.memory_space<vmem>>, vector<1x128xf32>
    %13 = vector.broadcast %12 : vector<1x128xf32> to vector<256x128xf32>
    %14 = arith.addf %11, %13 : vector<256x128xf32>
    %c0_12 = arith.constant 0 : index
    %c0_13 = arith.constant 0 : index
    %15 = vector.load %arg6[%c0_12, %c0_13] : memref<256x128xf32, #tpu.memory_space<vmem>>, vector<256x128xf32>
    tpu.vector_store %arg6[%c0_12, %c0_13], %14 {strides = array<i32>} : memref<256x128xf32, #tpu.memory_space<vmem>>, vector<256x128xf32>,
    return
  }
  func.func @transform_0(%arg0: i32) -> (i32, i32) {
    %c0_i32 = arith.constant 0 : i32
    %c0_i32_0 = arith.constant 0 : i32
    return %arg0, %c0_i32 : i32, i32
  }
  func.func @transform_1(%arg0: i32) -> (i32, i32) {
    %c0_i32 = arith.constant 0 : i32
    %c0_i32_0 = arith.constant 0 : i32
    %c0_i32_1 = arith.constant 0 : i32
    return %c0_i32, %c0_i32_0 : i32, i32
  }
  func.func @transform_2(%arg0: i32) -> (i32, i32) {
    %c0_i32 = arith.constant 0 : i32
    %c0_i32_0 = arith.constant 0 : i32
    %c0_i32_1 = arith.constant 0 : i32
    return %c0_i32, %c0_i32_0 : i32, i32
  }
  func.func @transform_3(%arg0: i32) -> (i32, i32) {
    %c0_i32 = arith.constant 0 : i32
    %c0_i32_0 = arith.constant 0 : i32
    %c0_i32_1 = arith.constant 0 : i32
    return %c0_i32, %c0_i32_0 : i32, i32
  }
  func.func @transform_4(%arg0: i32) -> (i32, i32) {
    %c0_i32 = arith.constant 0 : i32
    %c0_i32_0 = arith.constant 0 : i32
    %c0_i32_1 = arith.constant 0 : i32
    return %c0_i32, %c0_i32_0 : i32, i32
  }
  func.func @transform_5(%arg0: i32) -> (i32, i32) {
    %c0_i32 = arith.constant 0 : i32
    %c0_i32_0 = arith.constant 0 : i32
    return %arg0, %c0_i32 : i32, i32
  }
}

module attributes {stable_mosaic.version = 11 : i64} {
  func.func @_kronab_ffn_kernel(%arg0: i32, %arg1: memref<256x128xf32, #tpu.memory_space<vmem>>, %arg2: memref<128x512xbf16, #tpu.memory_space<vmem>>, %arg3: memref<512x128xbf16, #tpu.memory_space<vmem>>, %arg4: memref<128x128xbf16, #tpu.memory_space<vmem>>, %arg5: memref<1x128xf32, #tpu.memory_space<vmem>>, %arg6: memref<256x128xf32, #tpu.memory_space<vmem>>) attributes {dimension_semantics = [#tpu.dimension_semantics<parallel>], iteration_bounds = array<i64: 2>, scalar_prefetch = 0 : i64, scratch_operands = 0 : i64, tpu.core_type = #tpu.core_type<tc>, window_params = [{transform_indices = @transform_0, window_bounds = array<i64: 256, 128>}, {pipeline_mode = #tpu.pipeline_mode<synchronous>, transform_indices = @transform_1, window_bounds = array<i64: 128, 512>}, {pipeline_mode = #tpu.pipeline_mode<synchronous>, transform_indices = @transform_2, window_bounds = array<i64: 512, 128>}, {pipeline_mode = #tpu.pipeline_mode<synchronous>, transform_indices = @transform_3, window_bounds = array<i64: 128, 128>}, {pipeline_mode = #tpu.pipeline_mode<synchronous>, transform_indices = @transform_4, window_bounds = array<i64: 1, 128>}, {transform_indices = @transform_5, window_bounds = array<i64: 256, 128>}]} {
    %c0 = arith.constant 0 : index
    %c0_0 = arith.constant 0 : index
    %0 = vector.load %arg1[%c0, %c0_0] : memref<256x128xf32, #tpu.memory_space<vmem>>, vector<256x128xf32>
    %1 = arith.truncf %0 : vector<256x128xf32> to vector<256x128xbf16>
    %c0_1 = arith.constant 0 : index
    %c0_2 = arith.constant 0 : index
    %2 = vector.load %arg2[%c0_1, %c0_2] : memref<128x512xbf16, #tpu.memory_space<vmem>>, vector<128x512xbf16>
    %cst = arith.constant dense<0.000000e+00> : vector<256x512xf32>
    %3 = tpu.matmul %1, %2, %cst {dimension_numbers = #tpu.dot_dimension_numbers<[1], [0], [0], [1], [0, 0, 1, 1], [], []>} : vector<256x128xbf16>, vector<128x512xbf16>, vector<256x512xf32> -> vector<256x512xf32>
    %cst_3 = arith.constant 0.000000e+00 : f32
    %4 = vector.broadcast %cst_3 : f32 to vector<256x512xf32>
    %5 = arith.maximumf %3, %4 : vector<256x512xf32>
    %6 = arith.truncf %5 : vector<256x512xf32> to vector<256x512xbf16>
    %c0_4 = arith.constant 0 : index
    %c0_5 = arith.constant 0 : index
    %7 = vector.load %arg3[%c0_4, %c0_5] : memref<512x128xbf16, #tpu.memory_space<vmem>>, vector<512x128xbf16>
    %cst_6 = arith.constant dense<0.000000e+00> : vector<256x128xf32>
    %8 = tpu.matmul %6, %7, %cst_6 {dimension_numbers = #tpu.dot_dimension_numbers<[1], [0], [0], [1], [0, 0, 1, 1], [], []>} : vector<256x512xbf16>, vector<512x128xbf16>, vector<256x128xf32> -> vector<256x128xf32>
    %c0_7 = arith.constant 0 : index
    %c0_8 = arith.constant 0 : index
    %9 = vector.load %arg4[%c0_7, %c0_8] : memref<128x128xbf16, #tpu.memory_space<vmem>>, vector<128x128xbf16>
    %cst_9 = arith.constant dense<0.000000e+00> : vector<256x128xf32>
    %10 = tpu.matmul %1, %9, %cst_9 {dimension_numbers = #tpu.dot_dimension_numbers<[1], [0], [0], [1], [0, 0, 1, 1], [], []>} : vector<256x128xbf16>, vector<128x128xbf16>, vector<256x128xf32> -> vector<256x128xf32>
    %11 = arith.addf %8, %10 : vector<256x128xf32>
    %c0_10 = arith.constant 0 : index
    %c0_11 = arith.constant 0 : index
    %12 = vector.load %arg5[%c0_10, %c0_11] : memref<1x128xf32, #tpu.memory_space<vmem>>, vector<1x128xf32>
    %13 = vector.broadcast %12 : vector<1x128xf32> to vector<256x128xf32>
    %14 = arith.addf %11, %13 : vector<256x128xf32>
    %c0_12 = arith.constant 0 : index
    %c0_13 = arith.constant 0 : index
    %15 = vector.load %arg6[%c0_12, %c0_13] : memref<256x128xf32, #tpu.memory_space<vmem>>, vector<256x128xf32>
    tpu.vector_store %arg6[%c0_12, %c0_13], %14 {strides = array<i32>} : memref<256x128xf32, #tpu.memory_space<vmem>>, vector<256x128xf32>,
    return
  }
  func.func @transform_0(%arg0: i32) -> (i32, i32) {
    %c0_i32 = arith.constant 0 : i32
    %c0_i32_0 = arith.constant 0 : i32
    return %arg0, %c0_i32 : i32, i32
  }
  func.func @transform_1(%arg0: i32) -> (i32, i32) {
    %c0_i32 = arith.constant 0 : i32
    %c0_i32_0 = arith.constant 0 : i32
    %c0_i32_1 = arith.constant 0 : i32
    return %c0_i32, %c0_i32_0 : i32, i32
  }
  func.func @transform_2(%arg0: i32) -> (i32, i32) {
    %c0_i32 = arith.constant 0 : i32
    %c0_i32_0 = arith.constant 0 : i32
    %c0_i32_1 = arith.constant 0 : i32
    return %c0_i32, %c0_i32_0 : i32, i32
  }
  func.func @transform_3(%arg0: i32) -> (i32, i32) {
    %c0_i32 = arith.constant 0 : i32
    %c0_i32_0 = arith.constant 0 : i32
    %c0_i32_1 = arith.constant 0 : i32
    return %c0_i32, %c0_i32_0 : i32, i32
  }
  func.func @transform_4(%arg0: i32) -> (i32, i32) {
    %c0_i32 = arith.constant 0 : i32
    %c0_i32_0 = arith.constant 0 : i32
    %c0_i32_1 = arith.constant 0 : i32
    return %c0_i32, %c0_i32_0 : i32, i32
  }
  func.func @transform_5(%arg0: i32) -> (i32, i32) {
    %c0_i32 = arith.constant 0 : i32
    %c0_i32_0 = arith.constant 0 : i32
    return %arg0, %c0_i32 : i32, i32
  }
}

</mosaic_0001>

<llo_original>
// kernel: tpu_custom_call.1
$region0: #{tpu_custom_call.1}
  #allocation0 [shape = 'u32[]', space=smem, size = 0x4, offset = 0x4, fixed_abs, tag = 'smem constant byte address 0x4 - core index']
  #allocation1 [shape = 'u32[144,128]{1,0:T(1,128)}', space=vmem, size = 0x12000, scoped, tag = 'internal scratch']
  %s0 = inlined_call_operand.hbm [shape: f32[512,128], index: 0, kind: input, shape index: {}]
  %s1 = inlined_call_operand.hbm [shape: bf16[128,512], index: 1, kind: input, shape index: {}]
  %s2 = inlined_call_operand.hbm [shape: bf16[512,128], index: 2, kind: input, shape index: {}]
  %s3 = inlined_call_operand.hbm [shape: bf16[128,128], index: 3, kind: input, shape index: {}]
  %s4 = inlined_call_operand.vmem [shape: f32[1,128], index: 4, kind: input, shape index: {}]
  %s5 = inlined_call_operand.hbm [shape: f32[512,128], index: 5, kind: output, shape index: {}]
  %s6 = sld [smem:[#allocation0]]
  $region69: #{tpu_custom_call.1} parent=0
    _
  %s8 = ssub.s32 1, %s6
  %s9 = scalar_select 0, %s8, %s6
  $region1: #{tpu_custom_call.1} parent=0
    #allocation2 [shape = 'u8[262144]{0}', space=vmem, size = 0x40000, scoped, tag = 'input window, operand 0']
    #allocation3 [shape = 's32[2]{0}', space=sflag, size = 0x8, scoped, tag = 'scoped memory for tpu_custom_call.1']
    #allocation4 [shape = 's32[2]{0}', space=sflag, size = 0x8, scoped, tag = 'scoped memory for tpu_custom_call.1']
    #allocation5 [shape = 'u8[131072]{0}', space=vmem, size = 0x20000, scoped, tag = 'input window, operand 1, single buffered']
    #allocation6 [shape = 's32[1]{0}', space=sflag, size = 0x4, scoped, tag = 'scoped memory for tpu_custom_call.1']
    #allocation7 [shape = 'u8[131072]{0}', space=vmem, size = 0x20000, scoped, tag = 'input window, operand 2, single buffered']
    #allocation8 [shape = 'u8[32768]{0}', space=vmem, size = 0x8000, scoped, tag = 'input window, operand 3, single buffered']
    #allocation9 [shape = 's32[1]{0}', space=sflag, size = 0x4, scoped, tag = 'scoped memory for tpu_custom_call.1']
    #allocation10 [shape = 'u8[262144]{0}', space=vmem, size = 0x40000, scoped, tag = 'output window, operand 0']
    %10 = vsyncpa [#allocation3], 0
    %s11 = scalar_lea.sflag [#allocation3], 1
    %12 = vsyncpa %s11, 0
    %13 = vsyncpa [#allocation6], 0
    %14 = vsyncpa [#allocation9], 0
    %15 = vsyncpa [#allocation4], 0
    %s16 = scalar_lea.sflag [#allocation4], 1
    %17 = vsyncpa %s16, 0
    loop: start=0, step=1, limit=4
    $region2: #{tpu_custom_call.1} parent=1 // loop_pre_header
      _
    $region3: #{tpu_custom_call.1} parent=1 // loop_header
      %s19 = sphi 0, %s23
      %p20 = scmp.ge.s32.totalorder %s19, 4
      %s29 = sphi 0, %s31
      %s32 = sphi 0, %s29
      %s33 = sphi 0, %s32
      %s49 = sphi 0, %s33
      %s53 = sphi 0, %s53
      %s55 = sphi 0, %s53
      %s56 = sphi 0, %s55
      %s70 = sphi 0, %s56
      %s74 = sphi 0, %s74
      %s76 = sphi 0, %s74
      %s77 = sphi 0, %s76
      %s91 = sphi 0, %s77
      %s95 = sphi 0, %s95
      %s97 = sphi 0, %s95
      %s98 = sphi 0, %s97
      %s112 = sphi 0, %s98
      %s116 = sphi 0, %s116
      %s118 = sphi 0, %s116
      %s119 = sphi 0, %s118
      %s133 = sphi 0, %s119
      %s139 = sphi 0, %s141
      %s142 = sphi 0, %s139
      %s143 = sphi 0, %s142
      %s159 = sphi 0, %s143
    $region4: #{tpu_custom_call.1} parent=1 // loop_header_branch
      %22 = sbr.rel (%p20) target = $region8
    $region5: #{tpu_custom_call.1} parent=1 // loop_body
      %s24 = ssub.s32 %s19, 1
      %s25 = ssub.s32 %s19, 2
      %s26 = sadd.s32 %s19, 1
      %s27 = ssub.s32 %s19, %s26
      %p28 = scmp.eq.s32.totalorder %s27, 0
      %s30 = sadd.s32 %s29, 1
      %s31 = scalar_select %p28, %s29, %s30
      %p34 = pneg %p28
      %p35 = scmp.eq.s32.totalorder %s19, 1
      %p36 = por %p34, %p35
      %p37 = scmp.ne.s32.totalorder %s29, %s32
      %p38 = scmp.eq.s32.totalorder %s19, 0
      %p39 = por %p37, %p38
      %p40 = scmp.ne.s32.totalorder %s29, %s32
      %p41 = scmp.eq.s32.totalorder %s24, 1
      %p42 = por %p40, %p41
      %p43 = scmp.ne.s32.totalorder %s32, %s33
      %p44 = scmp.eq.s32.totalorder %s24, 0
      %p45 = por %p43, %p44
      %p46 = scmp.ne.s32.totalorder %s32, %s33
      %p47 = scmp.eq.s32.totalorder %s25, 1
      %p48 = por %p46, %p47
      %p50 = scmp.ne.s32.totalorder %s33, %s49
      %p51 = scmp.eq.s32.totalorder %s25, 0
      %p52 = por %p50, %p51
      %s54 = sadd.s32 %s53, 1
      %p57 = scmp.eq.s32.totalorder %s19, 1
      %p58 = scmp.ne.s32.totalorder %s53, %s55
      %p59 = scmp.eq.s32.totalorder %s19, 0
      %p60 = por %p58, %p59
      %p61 = scmp.ne.s32.totalorder %s53, %s55
      %p62 = scmp.eq.s32.totalorder %s24, 1
      %p63 = por %p61, %p62
      %p64 = scmp.ne.s32.totalorder %s55, %s56
      %p65 = scmp.eq.s32.totalorder %s24, 0
      %p66 = por %p64, %p65
      %p67 = scmp.ne.s32.totalorder %s55, %s56
      %p68 = scmp.eq.s32.totalorder %s25, 1
      %p69 = por %p67, %p68
      %p71 = scmp.ne.s32.totalorder %s56, %s70
      %p72 = scmp.eq.s32.totalorder %s25, 0
      %p73 = por %p71, %p72
      %s75 = sadd.s32 %s74, 1
      %p78 = scmp.eq.s32.totalorder %s19, 1
      %p79 = scmp.ne.s32.totalorder %s74, %s76
      %p80 = scmp.eq.s32.totalorder %s19, 0
      %p81 = por %p79, %p80
      %p82 = scmp.ne.s32.totalorder %s74, %s76
      %p83 = scmp.eq.s32.totalorder %s24, 1
      %p84 = por %p82, %p83
      %p85 = scmp.ne.s32.totalorder %s76, %s77
      %p86 = scmp.eq.s32.totalorder %s24, 0
      %p87 = por %p85, %p86
      %p88 = scmp.ne.s32.totalorder %s76, %s77
      %p89 = scmp.eq.s32.totalorder %s25, 1
      %p90 = por %p88, %p89
      %p92 = scmp.ne.s32.totalorder %s77, %s91
      %p93 = scmp.eq.s32.totalorder %s25, 0
      %p94 = por %p92, %p93
      %s96 = sadd.s32 %s95, 1
      %p99 = scmp.eq.s32.totalorder %s19, 1
      %p100 = scmp.ne.s32.totalorder %s95, %s97
      %p101 = scmp.eq.s32.totalorder %s19, 0
      %p102 = por %p100, %p101
      %p103 = scmp.ne.s32.totalorder %s95, %s97
      %p104 = scmp.eq.s32.totalorder %s24, 1
      %p105 = por %p103, %p104
      %p106 = scmp.ne.s32.totalorder %s97, %s98
      %p107 = scmp.eq.s32.totalorder %s24, 0
      %p108 = por %p106, %p107
      %p109 = scmp.ne.s32.totalorder %s97, %s98
      %p110 = scmp.eq.s32.totalorder %s25, 1
      %p111 = por %p109, %p110
      %p113 = scmp.ne.s32.totalorder %s98, %s112
      %p114 = scmp.eq.s32.totalorder %s25, 0
      %p115 = por %p113, %p114
      %s117 = sadd.s32 %s116, 1
      %p120 = scmp.eq.s32.totalorder %s19, 1
      %p121 = scmp.ne.s32.totalorder %s116, %s118
      %p122 = scmp.eq.s32.totalorder %s19, 0
      %p123 = por %p121, %p122
      %p124 = scmp.ne.s32.totalorder %s116, %s118
      %p125 = scmp.eq.s32.totalorder %s24, 1
      %p126 = por %p124, %p125
      %p127 = scmp.ne.s32.totalorder %s118, %s119
      %p128 = scmp.eq.s32.totalorder %s24, 0
      %p129 = por %p127, %p128
      %p130 = scmp.ne.s32.totalorder %s118, %s119
      %p131 = scmp.eq.s32.totalorder %s25, 1
      %p132 = por %p130, %p131
      %p134 = scmp.ne.s32.totalorder %s119, %s133
      %p135 = scmp.eq.s32.totalorder %s25, 0
      %p136 = por %p134, %p135
      %s137 = ssub.s32 %s19, %s26
      %p138 = scmp.eq.s32.totalorder %s137, 0
      %s140 = sadd.s32 %s139, 1
      %s141 = scalar_select %p138, %s139, %s140
      %p144 = pneg %p138
      %p145 = scmp.eq.s32.totalorder %s19, 1
      %p146 = por %p144, %p145
      %p147 = scmp.ne.s32.totalorder %s139, %s142
      %p148 = scmp.eq.s32.totalorder %s19, 0
      %p149 = por %p147, %p148
      %p150 = scmp.ne.s32.totalorder %s139, %s142
      %p151 = scmp.eq.s32.totalorder %s24, 1
      %p152 = por %p150, %p151
      %p153 = scmp.ne.s32.totalorder %s142, %s143
      %p154 = scmp.eq.s32.totalorder %s24, 0
      %p155 = por %p153, %p154
      %p156 = scmp.ne.s32.totalorder %s142, %s143
      %p157 = scmp.eq.s32.totalorder %s25, 1
      %p158 = por %p156, %p157
      %p160 = scmp.ne.s32.totalorder %s143, %s159
      %p161 = scmp.eq.s32.totalorder %s25, 0
      %p162 = por %p160, %p161
      %p163 = scmp.le.s32.totalorder 1, %s19
      %p164 = scmp.lt.s32.totalorder %s19, 3
      %p165 = pnand %p163, %p164
      %p166 = pneg %p165
      // Predicated region
      $region9: #{tpu_custom_call.1} parent=5 // pred_check
        _
      $region10: #{tpu_custom_call.1} parent=5 // pred_check_branch
        %168 = sbr.rel (%p165) target = $region12
      $region11: #{tpu_custom_call.1} parent=5 // pred_region
        %s169 = ssub.s32 %s19, 1
        // Predicated region
        $region13: #{tpu_custom_call.1} parent=11 // pred_check
          %p170 = pneg %p66
        $region14: #{tpu_custom_call.1} parent=11 // pred_check_branch
          %172 = sbr.rel (%p170) target = $region16
        $region15: #{tpu_custom_call.1} parent=11 // pred_region
          %s174 = ssub.s32 4096, 4096
          %175 = vsyncadd [#allocation6], %s174
          %s176 = sshll.u32 [#allocation5], 4
          %s177 = int_to_ptr.vmem [resolvable:$true] %s176
          %182 = dma.hbm_to_vmem [thread:$0]  %s1, 4096, %s177, [#allocation6], 256, 256, 16
        $region16: #{tpu_custom_call.1} parent=11 // pred_fallthru
          _
        // Predicated region
        $region17: #{tpu_custom_call.1} parent=11 // pred_check
          %p183 = pneg %p87
        $region18: #{tpu_custom_call.1} parent=11 // pred_check_branch
          %185 = sbr.rel (%p183) target = $region20
        $region19: #{tpu_custom_call.1} parent=11 // pred_region
          %s187 = ssub.s32 4096, 4096
          %188 = vsyncadd [#allocation6], %s187
          %s189 = sshll.u32 [#allocation7], 4
          %s190 = int_to_ptr.vmem [resolvable:$true] %s189
          %195 = dma.hbm_to_vmem [thread:$0]  %s2, 4096, %s190, [#allocation6], 64, 64, 4
        $region20: #{tpu_custom_call.1} parent=11 // pred_fallthru
          _
        // Predicated region
        $region21: #{tpu_custom_call.1} parent=11 // pred_check
          %p196 = pneg %p108
        $region22: #{tpu_custom_call.1} parent=11 // pred_check_branch
          %198 = sbr.rel (%p196) target = $region24
        $region23: #{tpu_custom_call.1} parent=11 // pred_region
          %s200 = ssub.s32 1024, 1024
          %201 = vsyncadd [#allocation9], %s200
          %s202 = sshll.u32 [#allocation8], 4
          %s203 = int_to_ptr.vmem [resolvable:$true] %s202
          %208 = dma.hbm_to_vmem [thread:$0]  %s3, 1024, %s203, [#allocation9], 64, 64, 4
        $region24: #{tpu_custom_call.1} parent=11 // pred_fallthru
          _
        // Predicated region
        $region25: #{tpu_custom_call.1} parent=11 // pred_check
          %p209 = pneg %p129
        $region26: #{tpu_custom_call.1} parent=11 // pred_check_branch
          %211 = sbr.rel (%p209) target = $region28
        $region27: #{tpu_custom_call.1} parent=11 // pred_region
          _
        $region28: #{tpu_custom_call.1} parent=11 // pred_fallthru
          _
      $region12: #{tpu_custom_call.1} parent=5 // pred_fallthru
        _
      %p212 = scmp.lt.s32.totalorder %s19, 2
      // Predicated region
      $region29: #{tpu_custom_call.1} parent=5 // pred_check
        %p213 = pneg %p212
      $region30: #{tpu_custom_call.1} parent=5 // pred_check_branch
        %215 = sbr.rel (%p213) target = $region32
      $region31: #{tpu_custom_call.1} parent=5 // pred_region
        // Predicated region
        $region33: #{tpu_custom_call.1} parent=31 // pred_check
          %p216 = pneg %p39
        $region34: #{tpu_custom_call.1} parent=31 // pred_check_branch
          %218 = sbr.rel (%p216) target = $region36
        $region35: #{tpu_custom_call.1} parent=31 // pred_region
          %s219 = sand.u32 %s29, 1
          %s220 = scalar_lea.sflag [#allocation3], %s219
          %s221 = sand.u32 %s29, 1
          %s222 = smul.addr %s221, 256
          %s223 = scalar_lea.vmem [#allocation2], %s222
          %s224 = smul.u32 32, %s19
          %s226 = ssub.s32 4096, 4096
          %227 = vsyncadd %s220, %s226
          %s228 = smul.addr %s224, 128
          %s229 = scalar_lea.hbm %s0, %s228
          %s230 = sshll.u32 %s223, 4
          %s231 = int_to_ptr.vmem [resolvable:$true] %s230
          %236 = dma.hbm_to_vmem [thread:$0]  %s229, 4096, %s231, %s220, 128, 128, 8
        $region36: #{tpu_custom_call.1} parent=31 // pred_fallthru
          _
      $region32: #{tpu_custom_call.1} parent=5 // pred_fallthru
        _
      %p237 = scmp.le.s32.totalorder 1, %s19
      %p238 = scmp.lt.s32.totalorder %s19, 3
      %p239 = pnand %p237, %p238
      %p240 = pneg %p239
      // Predicated region
      $region37: #{tpu_custom_call.1} parent=5 // pred_check
        _
      $region38: #{tpu_custom_call.1} parent=5 // pred_check_branch
        %242 = sbr.rel (%p239) target = $region40
      $region39: #{tpu_custom_call.1} parent=5 // pred_region
        %s243 = ssub.s32 %s19, 1
        %s244 = sand.u32 %s32, 1
        %s245 = scalar_lea.sflag [#allocation3], %s244
        %s246 = sand.u32 %s32, 1
        %s247 = smul.addr %s246, 256
        %s248 = scalar_lea.vmem [#allocation2], %s247
        // Predicated region
        $region41: #{tpu_custom_call.1} parent=39 // pred_check
          %p249 = pneg %p45
        $region42: #{tpu_custom_call.1} parent=39 // pred_check_branch
          %251 = sbr.rel (%p249) target = $region44
        $region43: #{tpu_custom_call.1} parent=39 // pred_region
          %252 = dma.done %s245, 4096
        $region44: #{tpu_custom_call.1} parent=39 // pred_fallthru
          _
        // Predicated region
        $region45: #{tpu_custom_call.1} parent=39 // pred_check
          %p253 = pneg %p66
        $region46: #{tpu_custom_call.1} parent=39 // pred_check_branch
          %255 = sbr.rel (%p253) target = $region48
        $region47: #{tpu_custom_call.1} parent=39 // pred_region
          %256 = dma.done [#allocation6], 4096
        $region48: #{tpu_custom_call.1} parent=39 // pred_fallthru
          _
        // Predicated region
        $region49: #{tpu_custom_call.1} parent=39 // pred_check
          %p257 = pneg %p87
        $region50: #{tpu_custom_call.1} parent=39 // pred_check_branch
          %259 = sbr.rel (%p257) target = $region52
        $region51: #{tpu_custom_call.1} parent=39 // pred_region
          %260 = dma.done [#allocation6], 4096
        $region52: #{tpu_custom_call.1} parent=39 // pred_fallthru
          _
        // Predicated region
        $region53: #{tpu_custom_call.1} parent=39 // pred_check
          %p261 = pneg %p108
        $region54: #{tpu_custom_call.1} parent=39 // pred_check_branch
          %263 = sbr.rel (%p261) target = $region56
        $region55: #{tpu_custom_call.1} parent=39 // pred_region
          %264 = dma.done [#allocation9], 1024
        $region56: #{tpu_custom_call.1} parent=39 // pred_fallthru
          _
        %s265 = sand.u32 %s32, 1
        %s266 = scalar_lea.sflag [#allocation3], %s265
        %s267 = sand.u32 %s32, 1
        %s268 = smul.addr %s267, 256
        %s269 = scalar_lea.vmem [#allocation2], %s268
        %p270 = pneg %p45
        %p271 = pneg %p42
        %p272 = pneg %p66
        %p273 = pneg %p63
        %p274 = pneg %p87
        %p275 = pneg %p84
        %p276 = pneg %p108
        %p277 = pneg %p105
        %p278 = pneg %p129
        %p279 = pneg %p126
        %p280 = pneg %p155
        %p281 = pneg %p152
        %s282 = sand.u32 %s142, 1
        %s283 = scalar_lea.sflag [#allocation4], %s282
        %s284 = sand.u32 %s142, 1
        %s285 = smul.addr %s284, 256
        %s286 = scalar_lea.vmem [#allocation10], %s285
        %s287 = smul.u32 32, %s24
        %s288 = smul.u32 32, %s24
        %v290 = vld [vmem:[%s248] sm:$0xff]
        %v291 = vld [vmem:[%s248 + $0x8] sm:$0xff]
        %v292 = vld [vmem:[%s248 + $0x10] sm:$0xff]
        %v293 = vld [vmem:[%s248 + $0x18] sm:$0xff]
        %v294 = vld [vmem:[%s248 + $0x20] sm:$0xff]
        %v295 = vld [vmem:[%s248 + $0x28] sm:$0xff]
        %v296 = vld [vmem:[%s248 + $0x30] sm:$0xff]
        %v297 = vld [vmem:[%s248 + $0x38] sm:$0xff]
        %v298 = vld [vmem:[%s248 + $0x40] sm:$0xff]
        %v299 = vld [vmem:[%s248 + $0x48] sm:$0xff]
        %v300 = vld [vmem:[%s248 + $0x50] sm:$0xff]
        %v301 = vld [vmem:[%s248 + $0x58] sm:$0xff]
        %v302 = vld [vmem:[%s248 + $0x60] sm:$0xff]
        %v303 = vld [vmem:[%s248 + $0x68] sm:$0xff]
        %v304 = vld [vmem:[%s248 + $0x70] sm:$0xff]
        %v305 = vld [vmem:[%s248 + $0x78] sm:$0xff]
        %v306 = vld [vmem:[%s248 + $0x80] sm:$0xff]
        %v307 = vld [vmem:[%s248 + $0x88] sm:$0xff]
        %v308 = vld [vmem:[%s248 + $0x90] sm:$0xff]
        %v309 = vld [vmem:[%s248 + $0x98] sm:$0xff]
        %v310 = vld [vmem:[%s248 + $0xa0] sm:$0xff]
        %v311 = vld [vmem:[%s248 + $0xa8] sm:$0xff]
        %v312 = vld [vmem:[%s248 + $0xb0] sm:$0xff]
        %v313 = vld [vmem:[%s248 + $0xb8] sm:$0xff]
        %v314 = vld [vmem:[%s248 + $0xc0] sm:$0xff]
        %v315 = vld [vmem:[%s248 + $0xc8] sm:$0xff]
        %v316 = vld [vmem:[%s248 + $0xd0] sm:$0xff]
        %v317 = vld [vmem:[%s248 + $0xd8] sm:$0xff]
        %v318 = vld [vmem:[%s248 + $0xe0] sm:$0xff]
        %v319 = vld [vmem:[%s248 + $0xe8] sm:$0xff]
        %v320 = vld [vmem:[%s248 + $0xf0] sm:$0xff]
        %v321 = vld [vmem:[%s248 + $0xf8] sm:$0xff]
        %v322 = vpack.c.bf16 %v291, %v290
        %v323 = vpack.c.bf16 %v293, %v292
        %v324 = vpack.c.bf16 %v295, %v294
        %v325 = vpack.c.bf16 %v297, %v296
        %v326 = vpack.c.bf16 %v299, %v298
        %v327 = vpack.c.bf16 %v301, %v300
        %v328 = vpack.c.bf16 %v303, %v302
        %v329 = vpack.c.bf16 %v305, %v304
        %v330 = vpack.c.bf16 %v307, %v306
        %v331 = vpack.c.bf16 %v309, %v308
        %v332 = vpack.c.bf16 %v311, %v310
        %v333 = vpack.c.bf16 %v313, %v312
        %v334 = vpack.c.bf16 %v315, %v314
        %v335 = vpack.c.bf16 %v317, %v316
        %v336 = vpack.c.bf16 %v319, %v318
        %v337 = vpack.c.bf16 %v321, %v320
        %v338 = vld [vmem:[#allocation5] sm:$0xff]
        %v339 = vld [vmem:[#allocation5 + $0x8] sm:$0xff]
        %v340 = vld [vmem:[#allocation5 + $0x10] sm:$0xff]
        %v341 = vld [vmem:[#allocation5 + $0x18] sm:$0xff]
        %v342 = vld [vmem:[#allocation5 + $0x20] sm:$0xff]
        %v343 = vld [vmem:[#allocation5 + $0x28] sm:$0xff]
        %v344 = vld [vmem:[#allocation5 + $0x30] sm:$0xff]
        %v345 = vld [vmem:[#allocation5 + $0x38] sm:$0xff]
        %v346 = vld [vmem:[#allocation5 + $0x40] sm:$0xff]
        %v347 = vld [vmem:[#allocation5 + $0x48] sm:$0xff]
        %v348 = vld [vmem:[#allocation5 + $0x50] sm:$0xff]
        %v349 = vld [vmem:[#allocation5 + $0x58] sm:$0xff]
        %v350 = vld [vmem:[#allocation5 + $0x60] sm:$0xff]
        %v351 = vld [vmem:[#allocation5 + $0x68] sm:$0xff]
        %v352 = vld [vmem:[#allocation5 + $0x70] sm:$0xff]
        %v353 = vld [vmem:[#allocation5 + $0x78] sm:$0xff]
        %v354 = vld [vmem:[#allocation5 + $0x80] sm:$0xff]
        %v355 = vld [vmem:[#allocation5 + $0x88] sm:$0xff]
        %v356 = vld [vmem:[#allocation5 + $0x90] sm:$0xff]
        %v357 = vld [vmem:[#allocation5 + $0x98] sm:$0xff]
        %v358 = vld [vmem:[#allocation5 + $0xa0] sm:$0xff]
        %v359 = vld [vmem:[#allocation5 + $0xa8] sm:$0xff]
        %v360 = vld [vmem:[#allocation5 + $0xb0] sm:$0xff]
        %v361 = vld [vmem:[#allocation5 + $0xb8] sm:$0xff]
        %v362 = vld [vmem:[#allocation5 + $0xc0] sm:$0xff]
        %v363 = vld [vmem:[#allocation5 + $0xc8] sm:$0xff]
        %v364 = vld [vmem:[#allocation5 + $0xd0] sm:$0xff]
        %v365 = vld [vmem:[#allocation5 + $0xd8] sm:$0xff]
        %v366 = vld [vmem:[#allocation5 + $0xe0] sm:$0xff]
        %v367 = vld [vmem:[#allocation5 + $0xe8] sm:$0xff]
        %v368 = vld [vmem:[#allocation5 + $0xf0] sm:$0xff]
        %v369 = vld [vmem:[#allocation5 + $0xf8] sm:$0xff]
        %v402 = vunpack.c.l.b16 %v338
        %v403 = vunpack.c.h.b16 %v338
        %v404 = vunpack.c.l.b16 %v339
        %v405 = vunpack.c.h.b16 %v339
        %v406 = vunpack.c.l.b16 %v340
        %v407 = vunpack.c.h.b16 %v340
        %v408 = vunpack.c.l.b16 %v341
        %v409 = vunpack.c.h.b16 %v341
        %v410 = vunpack.c.l.b16 %v342
        %v411 = vunpack.c.h.b16 %v342
        %v412 = vunpack.c.l.b16 %v343
        %v413 = vunpack.c.h.b16 %v343
        %v414 = vunpack.c.l.b16 %v344
        %v415 = vunpack.c.h.b16 %v344
        %v416 = vunpack.c.l.b16 %v345
        %v417 = vunpack.c.h.b16 %v345
        %v418 = vunpack.c.l.b16 %v346
        %v419 = vunpack.c.h.b16 %v346
        %v420 = vunpack.c.l.b16 %v347
        %v421 = vunpack.c.h.b16 %v347
        %v422 = vunpack.c.l.b16 %v348
        %v423 = vunpack.c.h.b16 %v348
        %v424 = vunpack.c.l.b16 %v349
        %v425 = vunpack.c.h.b16 %v349
        %v426 = vunpack.c.l.b16 %v350
        %v427 = vunpack.c.h.b16 %v350
        %v428 = vunpack.c.l.b16 %v351
        %v429 = vunpack.c.h.b16 %v351
        %v430 = vunpack.c.l.b16 %v352
        %v431 = vunpack.c.h.b16 %v352
        %v432 = vunpack.c.l.b16 %v353
        %v433 = vunpack.c.h.b16 %v353
        %v434 = vunpack.c.l.b16 %v354
        %v435 = vunpack.c.h.b16 %v354
        %v436 = vunpack.c.l.b16 %v355
        %v437 = vunpack.c.h.b16 %v355
        %v438 = vunpack.c.l.b16 %v356
        %v439 = vunpack.c.h.b16 %v356
        %v440 = vunpack.c.l.b16 %v357
        %v441 = vunpack.c.h.b16 %v357
        %v442 = vunpack.c.l.b16 %v358
        %v443 = vunpack.c.h.b16 %v358
        %v444 = vunpack.c.l.b16 %v359
        %v445 = vunpack.c.h.b16 %v359
        %v446 = vunpack.c.l.b16 %v360
        %v447 = vunpack.c.h.b16 %v360
        %v448 = vunpack.c.l.b16 %v361
        %v449 = vunpack.c.h.b16 %v361
        %v450 = vunpack.c.l.b16 %v362
        %v451 = vunpack.c.h.b16 %v362
        %v452 = vunpack.c.l.b16 %v363
        %v453 = vunpack.c.h.b16 %v363
        %v454 = vunpack.c.l.b16 %v364
        %v455 = vunpack.c.h.b16 %v364
        %v456 = vunpack.c.l.b16 %v365
        %v457 = vunpack.c.h.b16 %v365
        %v458 = vunpack.c.l.b16 %v366
        %v459 = vunpack.c.h.b16 %v366
        %v460 = vunpack.c.l.b16 %v367
        %v461 = vunpack.c.h.b16 %v367
        %v462 = vunpack.c.l.b16 %v368
        %v463 = vunpack.c.h.b16 %v368
        %v464 = vunpack.c.l.b16 %v369
        %v465 = vunpack.c.h.b16 %v369
        %v466 = vpack.c.b16 %v406, %v402
        %v467 = vpack.c.b16 %v407, %v403
        %v468 = vpack.c.b16 %v408, %v404
        %v469 = vpack.c.b16 %v409, %v405
        %v470 = vpack.c.b16 %v414, %v410
        %v471 = vpack.c.b16 %v415, %v411
        %v472 = vpack.c.b16 %v416, %v412
        %v473 = vpack.c.b16 %v417, %v413
        %v474 = vpack.c.b16 %v422, %v418
        %v475 = vpack.c.b16 %v423, %v419
        %v476 = vpack.c.b16 %v424, %v420
        %v477 = vpack.c.b16 %v425, %v421
        %v478 = vpack.c.b16 %v430, %v426
        %v479 = vpack.c.b16 %v431, %v427
        %v480 = vpack.c.b16 %v432, %v428
        %v481 = vpack.c.b16 %v433, %v429
        %v482 = vpack.c.b16 %v438, %v434
        %v483 = vpack.c.b16 %v439, %v435
        %v484 = vpack.c.b16 %v440, %v436
        %v485 = vpack.c.b16 %v441, %v437
        %v486 = vpack.c.b16 %v446, %v442
        %v487 = vpack.c.b16 %v447, %v443
        %v488 = vpack.c.b16 %v448, %v444
        %v489 = vpack.c.b16 %v449, %v445
        %v490 = vpack.c.b16 %v454, %v450
        %v491 = vpack.c.b16 %v455, %v451
        %v492 = vpack.c.b16 %v456, %v452
        %v493 = vpack.c.b16 %v457, %v453
        %v494 = vpack.c.b16 %v462, %v458
        %v495 = vpack.c.b16 %v463, %v459
        %v496 = vpack.c.b16 %v464, %v460
        %v497 = vpack.c.b16 %v465, %v461
        %530 = vmatprep.subr.bf16.mxu0 %v495
        %531 = vmatpush1.bf16.msra.mxu0 %v494
        %532 = vmatprep.subr.bf16.mxu0 %v491
        %533 = vmatpush1.bf16.msra.mxu0 %v490
        %534 = vmatprep.subr.bf16.mxu0 %v487
        %535 = vmatpush1.bf16.msra.mxu0 %v486
        %536 = vmatprep.subr.bf16.mxu0 %v483
        %537 = vmatpush1.bf16.msra.mxu0 %v482
        %538 = vmatprep.subr.bf16.mxu0 %v479
        %539 = vmatpush1.bf16.msra.mxu0 %v478
        %540 = vmatprep.subr.bf16.mxu0 %v475
        %541 = vmatpush1.bf16.msra.mxu0 %v474
        %542 = vmatprep.subr.bf16.mxu0 %v471
        %543 = vmatpush1.bf16.msra.mxu0 %v470
        %544 = vmatprep.subr.bf16.mxu0 %v467
        %545 = vmatpush1.bf16.msra.mxu0 %v466
        %546 = vmatprep.subr.bf16.mxu0 0
        %547 = vmatpush2.bf16.msra.mxu0 0
        %548 = vmatprep.subr.bf16.mxu0 0
        %549 = vmatpush2.bf16.msra.mxu0 0
        %550 = vmatprep.subr.bf16.mxu0 0
        %551 = vmatpush2.bf16.msra.mxu0 0
        %552 = vmatprep.subr.bf16.mxu0 0
        %553 = vmatpush2.bf16.msra.mxu0 0
        %554 = vmatprep.subr.bf16.mxu0 0
        %555 = vmatpush2.bf16.msra.mxu0 0
        %556 = vmatprep.subr.bf16.mxu0 0
        %557 = vmatpush2.bf16.msra.mxu0 0
        %558 = vmatprep.subr.bf16.mxu0 0
        %559 = vmatpush2.bf16.msra.mxu0 0
        %560 = vmatprep.subr.bf16.mxu0 0
        %561 = vmatpush2.bf16.msra.mxu0 0
        %562 = vmatprep.mubr.bf16.mxu0 0
        %563 = vmatmul.mubr.bf16.gmra.mxu0 %v322
        %v564 = vpop.f32.mrf.mxu0
        %v565 = vadd.f32 0.0, %v564
        %v566 = vpop.f32.mrf.mxu0
        %v567 = vadd.f32 0.0, %v566
        %v568 = vpop.f32.mrf.mxu0
        %v569 = vadd.f32 0.0, %v568
        %v570 = vpop.f32.mrf.mxu0
        %v571 = vadd.f32 0.0, %v570
        %572 = vmatprep.mubr.bf16.mxu0 0
        %573 = vmatmul.mubr.bf16.gmra.mxu0 %v323
        %v574 = vpop.f32.mrf.mxu0
        %v575 = vadd.f32 0.0, %v574
        %v576 = vpop.f32.mrf.mxu0
        %v577 = vadd.f32 0.0, %v576
        %v578 = vpop.f32.mrf.mxu0
        %v579 = vadd.f32 0.0, %v578
        %v580 = vpop.f32.mrf.mxu0
        %v581 = vadd.f32 0.0, %v580
        %582 = vmatprep.mubr.bf16.mxu0 0
        %583 = vmatmul.mubr.bf16.gmra.mxu0 %v324
        %v584 = vpop.f32.mrf.mxu0
        %v585 = vadd.f32 0.0, %v584
        %v586 = vpop.f32.mrf.mxu0
        %v587 = vadd.f32 0.0, %v586
        %v588 = vpop.f32.mrf.mxu0
        %v589 = vadd.f32 0.0, %v588
        %v590 = vpop.f32.mrf.mxu0
        %v591 = vadd.f32 0.0, %v590
        %592 = vmatprep.mubr.bf16.mxu0 0
        %593 = vmatmul.mubr.bf16.gmra.mxu0 %v325
        %v594 = vpop.f32.mrf.mxu0
        %v595 = vadd.f32 0.0, %v594
        %v596 = vpop.f32.mrf.mxu0
        %v597 = vadd.f32 0.0, %v596
        %v598 = vpop.f32.mrf.mxu0
        %v599 = vadd.f32 0.0, %v598
        %v600 = vpop.f32.mrf.mxu0
        %v601 = vadd.f32 0.0, %v600
        %602 = vmatprep.mubr.bf16.mxu0 0
        %603 = vmatmul.mubr.bf16.gmra.mxu0 %v326
        %v604 = vpop.f32.mrf.mxu0
        %v605 = vadd.f32 0.0, %v604
        %v606 = vpop.f32.mrf.mxu0
        %v607 = vadd.f32 0.0, %v606
        %v608 = vpop.f32.mrf.mxu0
        %v609 = vadd.f32 0.0, %v608
        %v610 = vpop.f32.mrf.mxu0
        %v611 = vadd.f32 0.0, %v610
        %612 = vmatprep.mubr.bf16.mxu0 0
        %613 = vmatmul.mubr.bf16.gmra.mxu0 %v327
        %v614 = vpop.f32.mrf.mxu0
        %v615 = vadd.f32 0.0, %v614
        %v616 = vpop.f32.mrf.mxu0
        %v617 = vadd.f32 0.0, %v616
        %v618 = vpop.f32.mrf.mxu0
        %v619 = vadd.f32 0.0, %v618
        %v620 = vpop.f32.mrf.mxu0
        %v621 = vadd.f32 0.0, %v620
        %622 = vmatprep.mubr.bf16.mxu0 0
        %623 = vmatmul.mubr.bf16.gmra.mxu0 %v328
        %v624 = vpop.f32.mrf.mxu0
        %v625 = vadd.f32 0.0, %v624
        %v626 = vpop.f32.mrf.mxu0
        %v627 = vadd.f32 0.0, %v626
        %v628 = vpop.f32.mrf.mxu0
        %v629 = vadd.f32 0.0, %v628
        %v630 = vpop.f32.mrf.mxu0
        %v631 = vadd.f32 0.0, %v630
        %632 = vmatprep.mubr.bf16.mxu0 0
        %633 = vmatmul.mubr.bf16.gmra.mxu0 %v329
        %v634 = vpop.f32.mrf.mxu0
        %v635 = vadd.f32 0.0, %v634
        %v636 = vpop.f32.mrf.mxu0
        %v637 = vadd.f32 0.0, %v636
        %v638 = vpop.f32.mrf.mxu0
        %v639 = vadd.f32 0.0, %v638
        %v640 = vpop.f32.mrf.mxu0
        %v641 = vadd.f32 0.0, %v640
        %642 = vmatprep.mubr.bf16.mxu0 0
        %643 = vmatmul.mubr.bf16.gmra.mxu0 %v330
        %v644 = vpop.f32.mrf.mxu0
        %v645 = vadd.f32 0.0, %v644
        %v646 = vpop.f32.mrf.mxu0
        %v647 = vadd.f32 0.0, %v646
        %v648 = vpop.f32.mrf.mxu0
        %v649 = vadd.f32 0.0, %v648
        %v650 = vpop.f32.mrf.mxu0
        %v651 = vadd.f32 0.0, %v650
        %652 = vmatprep.mubr.bf16.mxu0 0
        %653 = vmatmul.mubr.bf16.gmra.mxu0 %v331
        %v654 = vpop.f32.mrf.mxu0
        %v655 = vadd.f32 0.0, %v654
        %v656 = vpop.f32.mrf.mxu0
        %v657 = vadd.f32 0.0, %v656
        %v658 = vpop.f32.mrf.mxu0
        %v659 = vadd.f32 0.0, %v658
        %v660 = vpop.f32.mrf.mxu0
        %v661 = vadd.f32 0.0, %v660
        %662 = vmatprep.mubr.bf16.mxu0 0
        %663 = vmatmul.mubr.bf16.gmra.mxu0 %v332
        %v664 = vpop.f32.mrf.mxu0
        %v665 = vadd.f32 0.0, %v664
        %v666 = vpop.f32.mrf.mxu0
        %v667 = vadd.f32 0.0, %v666
        %v668 = vpop.f32.mrf.mxu0
        %v669 = vadd.f32 0.0, %v668
        %v670 = vpop.f32.mrf.mxu0
        %v671 = vadd.f32 0.0, %v670
        %672 = vmatprep.mubr.bf16.mxu0 0
        %673 = vmatmul.mubr.bf16.gmra.mxu0 %v333
        %v674 = vpop.f32.mrf.mxu0
        %v675 = vadd.f32 0.0, %v674
        %v676 = vpop.f32.mrf.mxu0
        %v677 = vadd.f32 0.0, %v676
        %v678 = vpop.f32.mrf.mxu0
        %v679 = vadd.f32 0.0, %v678
        %v680 = vpop.f32.mrf.mxu0
        %v681 = vadd.f32 0.0, %v680
        %682 = vmatprep.mubr.bf16.mxu0 0
        %683 = vmatmul.mubr.bf16.gmra.mxu0 %v334
        %v684 = vpop.f32.mrf.mxu0
        %v685 = vadd.f32 0.0, %v684
        %v686 = vpop.f32.mrf.mxu0
        %v687 = vadd.f32 0.0, %v686
        %v688 = vpop.f32.mrf.mxu0
        %v689 = vadd.f32 0.0, %v688
        %v690 = vpop.f32.mrf.mxu0
        %v691 = vadd.f32 0.0, %v690
        %692 = vmatprep.mubr.bf16.mxu0 0
        %693 = vmatmul.mubr.bf16.gmra.mxu0 %v335
        %v694 = vpop.f32.mrf.mxu0
        %v695 = vadd.f32 0.0, %v694
        %v696 = vpop.f32.mrf.mxu0
        %v697 = vadd.f32 0.0, %v696
        %v698 = vpop.f32.mrf.mxu0
        %v699 = vadd.f32 0.0, %v698
        %v700 = vpop.f32.mrf.mxu0
        %v701 = vadd.f32 0.0, %v700
        %702 = vmatprep.mubr.bf16.mxu0 0
        %703 = vmatmul.mubr.bf16.gmra.mxu0 %v336
        %v704 = vpop.f32.mrf.mxu0
        %v705 = vadd.f32 0.0, %v704
        %v706 = vpop.f32.mrf.mxu0
        %v707 = vadd.f32 0.0, %v706
        %v708 = vpop.f32.mrf.mxu0
        %v709 = vadd.f32 0.0, %v708
        %v710 = vpop.f32.mrf.mxu0
        %v711 = vadd.f32 0.0, %v710
        %712 = vmatprep.mubr.bf16.mxu0 0
        %713 = vmatmul.mubr.bf16.gmra.mxu0 %v337
        %v714 = vpop.f32.mrf.mxu0
        %v715 = vadd.f32 0.0, %v714
        %v716 = vpop.f32.mrf.mxu0
        %v717 = vadd.f32 0.0, %v716
        %v718 = vpop.f32.mrf.mxu0
        %v719 = vadd.f32 0.0, %v718
        %v720 = vpop.f32.mrf.mxu0
        %v721 = vadd.f32 0.0, %v720
        %722 = vdwg.mxu0
        %723 = vmatprep.subr.bf16.mxu0 %v497
        %724 = vmatpush1.bf16.msra.mxu0 %v496
        %725 = vmatprep.subr.bf16.mxu0 %v493
        %726 = vmatpush1.bf16.msra.mxu0 %v492
        %727 = vmatprep.subr.bf16.mxu0 %v489
        %728 = vmatpush1.bf16.msra.mxu0 %v488
        %729 = vmatprep.subr.bf16.mxu0 %v485
        %730 = vmatpush1.bf16.msra.mxu0 %v484
        %731 = vmatprep.subr.bf16.mxu0 %v481
        %732 = vmatpush1.bf16.msra.mxu0 %v480
        %733 = vmatprep.subr.bf16.mxu0 %v477
        %734 = vmatpush1.bf16.msra.mxu0 %v476
        %735 = vmatprep.subr.bf16.mxu0 %v473
        %736 = vmatpush1.bf16.msra.mxu0 %v472
        %737 = vmatprep.subr.bf16.mxu0 %v469
        %738 = vmatpush1.bf16.msra.mxu0 %v468
        %739 = vmatprep.subr.bf16.mxu0 0
        %740 = vmatpush2.bf16.msra.mxu0 0
        %741 = vmatprep.subr.bf16.mxu0 0
        %742 = vmatpush2.bf16.msra.mxu0 0
        %743 = vmatprep.subr.bf16.mxu0 0
        %744 = vmatpush2.bf16.msra.mxu0 0
        %745 = vmatprep.subr.bf16.mxu0 0
        %746 = vmatpush2.bf16.msra.mxu0 0
        %747 = vmatprep.subr.bf16.mxu0 0
        %748 = vmatpush2.bf16.msra.mxu0 0
        %749 = vmatprep.subr.bf16.mxu0 0
        %750 = vmatpush2.bf16.msra.mxu0 0
        %751 = vmatprep.subr.bf16.mxu0 0
        %752 = vmatpush2.bf16.msra.mxu0 0
        %753 = vmatprep.subr.bf16.mxu0 0
        %754 = vmatpush2.bf16.msra.mxu0 0
        %755 = vmatprep.mubr.bf16.mxu0 0
        %756 = vmatmul.mubr.bf16.gmra.mxu0 %v322
        %v757 = vpop.f32.mrf.mxu0
        %v758 = vadd.f32 0.0, %v757
        %v759 = vpop.f32.mrf.mxu0
        %v760 = vadd.f32 0.0, %v759
        %v761 = vpop.f32.mrf.mxu0
        %v762 = vadd.f32 0.0, %v761
        %v763 = vpop.f32.mrf.mxu0
        %v764 = vadd.f32 0.0, %v763
        %765 = vmatprep.mubr.bf16.mxu0 0
        %766 = vmatmul.mubr.bf16.gmra.mxu0 %v323
        %v767 = vpop.f32.mrf.mxu0
        %v768 = vadd.f32 0.0, %v767
        %v769 = vpop.f32.mrf.mxu0
        %v770 = vadd.f32 0.0, %v769
        %v771 = vpop.f32.mrf.mxu0
        %v772 = vadd.f32 0.0, %v771
        %v773 = vpop.f32.mrf.mxu0
        %v774 = vadd.f32 0.0, %v773
        %775 = vmatprep.mubr.bf16.mxu0 0
        %776 = vmatmul.mubr.bf16.gmra.mxu0 %v324
        %v777 = vpop.f32.mrf.mxu0
        %v778 = vadd.f32 0.0, %v777
        %v779 = vpop.f32.mrf.mxu0
        %v780 = vadd.f32 0.0, %v779
        %v781 = vpop.f32.mrf.mxu0
        %v782 = vadd.f32 0.0, %v781
        %v783 = vpop.f32.mrf.mxu0
        %v784 = vadd.f32 0.0, %v783
        %785 = vmatprep.mubr.bf16.mxu0 0
        %786 = vmatmul.mubr.bf16.gmra.mxu0 %v325
        %v787 = vpop.f32.mrf.mxu0
        %v788 = vadd.f32 0.0, %v787
        %v789 = vpop.f32.mrf.mxu0
        %v790 = vadd.f32 0.0, %v789
        %v791 = vpop.f32.mrf.mxu0
        %v792 = vadd.f32 0.0, %v791
        %v793 = vpop.f32.mrf.mxu0
        %v794 = vadd.f32 0.0, %v793
        %795 = vmatprep.mubr.bf16.mxu0 0
        %796 = vmatmul.mubr.bf16.gmra.mxu0 %v326
        %v797 = vpop.f32.mrf.mxu0
        %v798 = vadd.f32 0.0, %v797
        %v799 = vpop.f32.mrf.mxu0
        %v800 = vadd.f32 0.0, %v799
        %v801 = vpop.f32.mrf.mxu0
        %v802 = vadd.f32 0.0, %v801
        %v803 = vpop.f32.mrf.mxu0
        %v804 = vadd.f32 0.0, %v803
        %805 = vmatprep.mubr.bf16.mxu0 0
        %806 = vmatmul.mubr.bf16.gmra.mxu0 %v327
        %v807 = vpop.f32.mrf.mxu0
        %v808 = vadd.f32 0.0, %v807
        %v809 = vpop.f32.mrf.mxu0
        %v810 = vadd.f32 0.0, %v809
        %v811 = vpop.f32.mrf.mxu0
        %v812 = vadd.f32 0.0, %v811
        %v813 = vpop.f32.mrf.mxu0
        %v814 = vadd.f32 0.0, %v813
        %815 = vmatprep.mubr.bf16.mxu0 0
        %816 = vmatmul.mubr.bf16.gmra.mxu0 %v328
        %v817 = vpop.f32.mrf.mxu0
        %v818 = vadd.f32 0.0, %v817
        %v819 = vpop.f32.mrf.mxu0
        %v820 = vadd.f32 0.0, %v819
        %v821 = vpop.f32.mrf.mxu0
        %v822 = vadd.f32 0.0, %v821
        %v823 = vpop.f32.mrf.mxu0
        %v824 = vadd.f32 0.0, %v823
        %825 = vmatprep.mubr.bf16.mxu0 0
        %826 = vmatmul.mubr.bf16.gmra.mxu0 %v329
        %v827 = vpop.f32.mrf.mxu0
        %v828 = vadd.f32 0.0, %v827
        %v829 = vpop.f32.mrf.mxu0
        %v830 = vadd.f32 0.0, %v829
        %v831 = vpop.f32.mrf.mxu0
        %v832 = vadd.f32 0.0, %v831
        %v833 = vpop.f32.mrf.mxu0
        %v834 = vadd.f32 0.0, %v833
        %835 = vmatprep.mubr.bf16.mxu0 0
        %836 = vmatmul.mubr.bf16.gmra.mxu0 %v330
        %v837 = vpop.f32.mrf.mxu0
        %v838 = vadd.f32 0.0, %v837
        %v839 = vpop.f32.mrf.mxu0
        %v840 = vadd.f32 0.0, %v839
        %v841 = vpop.f32.mrf.mxu0
        %v842 = vadd.f32 0.0, %v841
        %v843 = vpop.f32.mrf.mxu0
        %v844 = vadd.f32 0.0, %v843
        %845 = vmatprep.mubr.bf16.mxu0 0
        %846 = vmatmul.mubr.bf16.gmra.mxu0 %v331
        %v847 = vpop.f32.mrf.mxu0
        %v848 = vadd.f32 0.0, %v847
        %v849 = vpop.f32.mrf.mxu0
        %v850 = vadd.f32 0.0, %v849
        %v851 = vpop.f32.mrf.mxu0
        %v852 = vadd.f32 0.0, %v851
        %v853 = vpop.f32.mrf.mxu0
        %v854 = vadd.f32 0.0, %v853
        %855 = vmatprep.mubr.bf16.mxu0 0
        %856 = vmatmul.mubr.bf16.gmra.mxu0 %v332
        %v857 = vpop.f32.mrf.mxu0
        %v858 = vadd.f32 0.0, %v857
        %v859 = vpop.f32.mrf.mxu0
        %v860 = vadd.f32 0.0, %v859
        %v861 = vpop.f32.mrf.mxu0
        %v862 = vadd.f32 0.0, %v861
        %v863 = vpop.f32.mrf.mxu0
        %v864 = vadd.f32 0.0, %v863
        %865 = vmatprep.mubr.bf16.mxu0 0
        %866 = vmatmul.mubr.bf16.gmra.mxu0 %v333
        %v867 = vpop.f32.mrf.mxu0
        %v868 = vadd.f32 0.0, %v867
        %v869 = vpop.f32.mrf.mxu0
        %v870 = vadd.f32 0.0, %v869
        %v871 = vpop.f32.mrf.mxu0
        %v872 = vadd.f32 0.0, %v871
        %v873 = vpop.f32.mrf.mxu0
        %v874 = vadd.f32 0.0, %v873
        %875 = vmatprep.mubr.bf16.mxu0 0
        %876 = vmatmul.mubr.bf16.gmra.mxu0 %v334
        %v877 = vpop.f32.mrf.mxu0
        %v878 = vadd.f32 0.0, %v877
        %v879 = vpop.f32.mrf.mxu0
        %v880 = vadd.f32 0.0, %v879
        %v881 = vpop.f32.mrf.mxu0
        %v882 = vadd.f32 0.0, %v881
        %v883 = vpop.f32.mrf.mxu0
        %v884 = vadd.f32 0.0, %v883
        %885 = vmatprep.mubr.bf16.mxu0 0
        %886 = vmatmul.mubr.bf16.gmra.mxu0 %v335
        %v887 = vpop.f32.mrf.mxu0
        %v888 = vadd.f32 0.0, %v887
        %v889 = vpop.f32.mrf.mxu0
        %v890 = vadd.f32 0.0, %v889
        %v891 = vpop.f32.mrf.mxu0
        %v892 = vadd.f32 0.0, %v891
        %v893 = vpop.f32.mrf.mxu0
        %v894 = vadd.f32 0.0, %v893
        %895 = vmatprep.mubr.bf16.mxu0 0
        %896 = vmatmul.mubr.bf16.gmra.mxu0 %v336
        %v897 = vpop.f32.mrf.mxu0
        %v898 = vadd.f32 0.0, %v897
        %v899 = vpop.f32.mrf.mxu0
        %v900 = vadd.f32 0.0, %v899
        %v901 = vpop.f32.mrf.mxu0
        %v902 = vadd.f32 0.0, %v901
        %v903 = vpop.f32.mrf.mxu0
        %v904 = vadd.f32 0.0, %v903
        %905 = vmatprep.mubr.bf16.mxu0 0
        %906 = vmatmul.mubr.bf16.gmra.mxu0 %v337
        %v907 = vpop.f32.mrf.mxu0
        %v908 = vadd.f32 0.0, %v907
        %v909 = vpop.f32.mrf.mxu0
        %v910 = vadd.f32 0.0, %v909
        %v911 = vpop.f32.mrf.mxu0
        %v912 = vadd.f32 0.0, %v911
        %v913 = vpop.f32.mrf.mxu0
        %v914 = vadd.f32 0.0, %v913
        %915 = vdwg.mxu0
        %v916 = vmax.f32 %v565, 0.0
        %v917 = vmax.f32 %v567, 0.0
        %v918 = vmax.f32 %v758, 0.0
        %v919 = vmax.f32 %v760, 0.0
        %v920 = vmax.f32 %v569, 0.0
        %v921 = vmax.f32 %v571, 0.0
        %v922 = vmax.f32 %v762, 0.0
        %v923 = vmax.f32 %v764, 0.0
        %v924 = vmax.f32 %v575, 0.0
        %v925 = vmax.f32 %v577, 0.0
        %v926 = vmax.f32 %v768, 0.0
        %v927 = vmax.f32 %v770, 0.0
        %v928 = vmax.f32 %v579, 0.0
        %v929 = vmax.f32 %v581, 0.0
        %v930 = vmax.f32 %v772, 0.0
        %v931 = vmax.f32 %v774, 0.0
        %v932 = vmax.f32 %v585, 0.0
        %v933 = vmax.f32 %v587, 0.0
        %v934 = vmax.f32 %v778, 0.0
        %v935 = vmax.f32 %v780, 0.0
        %v936 = vmax.f32 %v589, 0.0
        %v937 = vmax.f32 %v591, 0.0
        %v938 = vmax.f32 %v782, 0.0
        %v939 = vmax.f32 %v784, 0.0
        %v940 = vmax.f32 %v595, 0.0
        %v941 = vmax.f32 %v597, 0.0
        %v942 = vmax.f32 %v788, 0.0
        %v943 = vmax.f32 %v790, 0.0
        %v944 = vmax.f32 %v599, 0.0
        %v945 = vmax.f32 %v601, 0.0
        %v946 = vmax.f32 %v792, 0.0
        %v947 = vmax.f32 %v794, 0.0
        %v948 = vmax.f32 %v605, 0.0
        %v949 = vmax.f32 %v607, 0.0
        %v950 = vmax.f32 %v798, 0.0
        %v951 = vmax.f32 %v800, 0.0
        %v952 = vmax.f32 %v609, 0.0
        %v953 = vmax.f32 %v611, 0.0
        %v954 = vmax.f32 %v802, 0.0
        %v955 = vmax.f32 %v804, 0.0
        %v956 = vmax.f32 %v615, 0.0
        %v957 = vmax.f32 %v617, 0.0
        %v958 = vmax.f32 %v808, 0.0
        %v959 = vmax.f32 %v810, 0.0
        %v960 = vmax.f32 %v619, 0.0
        %v961 = vmax.f32 %v621, 0.0
        %v962 = vmax.f32 %v812, 0.0
        %v963 = vmax.f32 %v814, 0.0
        %v964 = vmax.f32 %v625, 0.0
        %v965 = vmax.f32 %v627, 0.0
        %v966 = vmax.f32 %v818, 0.0
        %v967 = vmax.f32 %v820, 0.0
        %v968 = vmax.f32 %v629, 0.0
        %v969 = vmax.f32 %v631, 0.0
        %v970 = vmax.f32 %v822, 0.0
        %v971 = vmax.f32 %v824, 0.0
        %v972 = vmax.f32 %v635, 0.0
        %v973 = vmax.f32 %v637, 0.0
        %v974 = vmax.f32 %v828, 0.0
        %v975 = vmax.f32 %v830, 0.0
        %v976 = vmax.f32 %v639, 0.0
        %v977 = vmax.f32 %v641, 0.0
        %v978 = vmax.f32 %v832, 0.0
        %v979 = vmax.f32 %v834, 0.0
        %v980 = vmax.f32 %v645, 0.0
        %v981 = vmax.f32 %v647, 0.0
        %v982 = vmax.f32 %v838, 0.0
        %v983 = vmax.f32 %v840, 0.0
        %v984 = vmax.f32 %v649, 0.0
        %v985 = vmax.f32 %v651, 0.0
        %v986 = vmax.f32 %v842, 0.0
        %v987 = vmax.f32 %v844, 0.0
        %v988 = vmax.f32 %v655, 0.0
        %v989 = vmax.f32 %v657, 0.0
        %v990 = vmax.f32 %v848, 0.0
        %v991 = vmax.f32 %v850, 0.0
        %v992 = vmax.f32 %v659, 0.0
        %v993 = vmax.f32 %v661, 0.0
        %v994 = vmax.f32 %v852, 0.0
        %v995 = vmax.f32 %v854, 0.0
        %v996 = vmax.f32 %v665, 0.0
        %v997 = vmax.f32 %v667, 0.0
        %v998 = vmax.f32 %v858, 0.0
        %v999 = vmax.f32 %v860, 0.0
        %v1000 = vmax.f32 %v669, 0.0
        %v1001 = vmax.f32 %v671, 0.0
        %v1002 = vmax.f32 %v862, 0.0
        %v1003 = vmax.f32 %v864, 0.0
        %v1004 = vmax.f32 %v675, 0.0
        %v1005 = vmax.f32 %v677, 0.0
        %v1006 = vmax.f32 %v868, 0.0
        %v1007 = vmax.f32 %v870, 0.0
        %v1008 = vmax.f32 %v679, 0.0
        %v1009 = vmax.f32 %v681, 0.0
        %v1010 = vmax.f32 %v872, 0.0
        %v1011 = vmax.f32 %v874, 0.0
        %v1012 = vmax.f32 %v685, 0.0
        %v1013 = vmax.f32 %v687, 0.0
        %v1014 = vmax.f32 %v878, 0.0
        %v1015 = vmax.f32 %v880, 0.0
        %v1016 = vmax.f32 %v689, 0.0
        %v1017 = vmax.f32 %v691, 0.0
        %v1018 = vmax.f32 %v882, 0.0
        %v1019 = vmax.f32 %v884, 0.0
        %v1020 = vmax.f32 %v695, 0.0
        %v1021 = vmax.f32 %v697, 0.0
        %v1022 = vmax.f32 %v888, 0.0
        %v1023 = vmax.f32 %v890, 0.0
        %v1024 = vmax.f32 %v699, 0.0
        %v1025 = vmax.f32 %v701, 0.0
        %v1026 = vmax.f32 %v892, 0.0
        %v1027 = vmax.f32 %v894, 0.0
        %v1028 = vmax.f32 %v705, 0.0
        %v1029 = vmax.f32 %v707, 0.0
        %v1030 = vmax.f32 %v898, 0.0
        %v1031 = vmax.f32 %v900, 0.0
        %v1032 = vmax.f32 %v709, 0.0
        %v1033 = vmax.f32 %v711, 0.0
        %v1034 = vmax.f32 %v902, 0.0
        %v1035 = vmax.f32 %v904, 0.0
        %v1036 = vmax.f32 %v715, 0.0
        %v1037 = vmax.f32 %v717, 0.0
        %v1038 = vmax.f32 %v908, 0.0
        %v1039 = vmax.f32 %v910, 0.0
        %v1040 = vmax.f32 %v719, 0.0
        %v1041 = vmax.f32 %v721, 0.0
        %v1042 = vmax.f32 %v912, 0.0
        %v1043 = vmax.f32 %v914, 0.0
        %v1044 = vpack.c.bf16 %v920, %v916
        %v1045 = vpack.c.bf16 %v921, %v917
        %v1046 = vpack.c.bf16 %v922, %v918
        %v1047 = vpack.c.bf16 %v923, %v919
        %v1048 = vpack.c.bf16 %v928, %v924
        %v1049 = vpack.c.bf16 %v929, %v925
        %v1050 = vpack.c.bf16 %v930, %v926
        %v1051 = vpack.c.bf16 %v931, %v927
        %v1052 = vpack.c.bf16 %v936, %v932
        %v1053 = vpack.c.bf16 %v937, %v933
        %v1054 = vpack.c.bf16 %v938, %v934
        %v1055 = vpack.c.bf16 %v939, %v935
        %v1056 = vpack.c.bf16 %v944, %v940
        %v1057 = vpack.c.bf16 %v945, %v941
        %v1058 = vpack.c.bf16 %v946, %v942
        %v1059 = vpack.c.bf16 %v947, %v943
        %v1060 = vpack.c.bf16 %v952, %v948
        %v1061 = vpack.c.bf16 %v953, %v949
        %v1062 = vpack.c.bf16 %v954, %v950
        %v1063 = vpack.c.bf16 %v955, %v951
        %v1064 = vpack.c.bf16 %v960, %v956
        %v1065 = vpack.c.bf16 %v961, %v957
        %v1066 = vpack.c.bf16 %v962, %v958
        %v1067 = vpack.c.bf16 %v963, %v959
        %v1068 = vpack.c.bf16 %v968, %v964
        %v1069 = vpack.c.bf16 %v969, %v965
        %v1070 = vpack.c.bf16 %v970, %v966
        %v1071 = vpack.c.bf16 %v971, %v967
        %v1072 = vpack.c.bf16 %v976, %v972
        %v1073 = vpack.c.bf16 %v977, %v973
        %v1074 = vpack.c.bf16 %v978, %v974
        %v1075 = vpack.c.bf16 %v979, %v975
        %v1076 = vpack.c.bf16 %v984, %v980
        %v1077 = vpack.c.bf16 %v985, %v981
        %v1078 = vpack.c.bf16 %v986, %v982
        %v1079 = vpack.c.bf16 %v987, %v983
        %v1080 = vpack.c.bf16 %v992, %v988
        %v1081 = vpack.c.bf16 %v993, %v989
        %v1082 = vpack.c.bf16 %v994, %v990
        %v1083 = vpack.c.bf16 %v995, %v991
        %v1084 = vpack.c.bf16 %v1000, %v996
        %v1085 = vpack.c.bf16 %v1001, %v997
        %v1086 = vpack.c.bf16 %v1002, %v998
        %v1087 = vpack.c.bf16 %v1003, %v999
        %v1088 = vpack.c.bf16 %v1008, %v1004
        %v1089 = vpack.c.bf16 %v1009, %v1005
        %v1090 = vpack.c.bf16 %v1010, %v1006
        %v1091 = vpack.c.bf16 %v1011, %v1007
        %v1092 = vpack.c.bf16 %v1016, %v1012
        %v1093 = vpack.c.bf16 %v1017, %v1013
        %v1094 = vpack.c.bf16 %v1018, %v1014
        %v1095 = vpack.c.bf16 %v1019, %v1015
        %v1096 = vpack.c.bf16 %v1024, %v1020
        %v1097 = vpack.c.bf16 %v1025, %v1021
        %v1098 = vpack.c.bf16 %v1026, %v1022
        %v1099 = vpack.c.bf16 %v1027, %v1023
        %v1100 = vpack.c.bf16 %v1032, %v1028
        %v1101 = vpack.c.bf16 %v1033, %v1029
        %v1102 = vpack.c.bf16 %v1034, %v1030
        %v1103 = vpack.c.bf16 %v1035, %v1031
        %v1104 = vpack.c.bf16 %v1040, %v1036
        %v1105 = vpack.c.bf16 %v1041, %v1037
        %v1106 = vpack.c.bf16 %v1042, %v1038
        %v1107 = vpack.c.bf16 %v1043, %v1039
        %v1108 = vld [vmem:[#allocation7] sm:$0xf]
        %v1109 = vld [vmem:[#allocation7 + $0x4] sm:$0xf]
        %v1110 = vld [vmem:[#allocation7 + $0x8] sm:$0xf]
        %v1111 = vld [vmem:[#allocation7 + $0xc] sm:$0xf]
        %v1112 = vld [vmem:[#allocation7 + $0x10] sm:$0xf]
        %v1113 = vld [vmem:[#allocation7 + $0x14] sm:$0xf]
        %v1114 = vld [vmem:[#allocation7 + $0x18] sm:$0xf]
        %v1115 = vld [vmem:[#allocation7 + $0x1c] sm:$0xf]
        %v1116 = vld [vmem:[#allocation7 + $0x20] sm:$0xf]
        %v1117 = vld [vmem:[#allocation7 + $0x24] sm:$0xf]
        %v1118 = vld [vmem:[#allocation7 + $0x28] sm:$0xf]
        %v1119 = vld [vmem:[#allocation7 + $0x2c] sm:$0xf]
        %v1120 = vld [vmem:[#allocation7 + $0x30] sm:$0xf]
        %v1121 = vld [vmem:[#allocation7 + $0x34] sm:$0xf]
        %v1122 = vld [vmem:[#allocation7 + $0x38] sm:$0xf]
        %v1123 = vld [vmem:[#allocation7 + $0x3c] sm:$0xf]
        %v1124 = vld [vmem:[#allocation7 + $0x40] sm:$0xf]
        %v1125 = vld [vmem:[#allocation7 + $0x44] sm:$0xf]
        %v1126 = vld [vmem:[#allocation7 + $0x48] sm:$0xf]
        %v1127 = vld [vmem:[#allocation7 + $0x4c] sm:$0xf]
        %v1128 = vld [vmem:[#allocation7 + $0x50] sm:$0xf]
        %v1129 = vld [vmem:[#allocation7 + $0x54] sm:$0xf]
        %v1130 = vld [vmem:[#allocation7 + $0x58] sm:$0xf]
        %v1131 = vld [vmem:[#allocation7 + $0x5c] sm:$0xf]
        %v1132 = vld [vmem:[#allocation7 + $0x60] sm:$0xf]
        %v1133 = vld [vmem:[#allocation7 + $0x64] sm:$0xf]
        %v1134 = vld [vmem:[#allocation7 + $0x68] sm:$0xf]
        %v1135 = vld [vmem:[#allocation7 + $0x6c] sm:$0xf]
        %v1136 = vld [vmem:[#allocation7 + $0x70] sm:$0xf]
        %v1137 = vld [vmem:[#allocation7 + $0x74] sm:$0xf]
        %v1138 = vld [vmem:[#allocation7 + $0x78] sm:$0xf]
        %v1139 = vld [vmem:[#allocation7 + $0x7c] sm:$0xf]
        %v1140 = vld [vmem:[#allocation7 + $0x80] sm:$0xf]
        %v1141 = vld [vmem:[#allocation7 + $0x84] sm:$0xf]
        %v1142 = vld [vmem:[#allocation7 + $0x88] sm:$0xf]
        %v1143 = vld [vmem:[#allocation7 + $0x8c] sm:$0xf]
        %v1144 = vld [vmem:[#allocation7 + $0x90] sm:$0xf]
        %v1145 = vld [vmem:[#allocation7 + $0x94] sm:$0xf]
        %v1146 = vld [vmem:[#allocation7 + $0x98] sm:$0xf]
        %v1147 = vld [vmem:[#allocation7 + $0x9c] sm:$0xf]
        %v1148 = vld [vmem:[#allocation7 + $0xa0] sm:$0xf]
        %v1149 = vld [vmem:[#allocation7 + $0xa4] sm:$0xf]
        %v1150 = vld [vmem:[#allocation7 + $0xa8] sm:$0xf]
        %v1151 = vld [vmem:[#allocation7 + $0xac] sm:$0xf]
        %v1152 = vld [vmem:[#allocation7 + $0xb0] sm:$0xf]
        %v1153 = vld [vmem:[#allocation7 + $0xb4] sm:$0xf]
        %v1154 = vld [vmem:[#allocation7 + $0xb8] sm:$0xf]
        %v1155 = vld [vmem:[#allocation7 + $0xbc] sm:$0xf]
        %v1156 = vld [vmem:[#allocation7 + $0xc0] sm:$0xf]
        %v1157 = vld [vmem:[#allocation7 + $0xc4] sm:$0xf]
        %v1158 = vld [vmem:[#allocation7 + $0xc8] sm:$0xf]
        %v1159 = vld [vmem:[#allocation7 + $0xcc] sm:$0xf]
        %v1160 = vld [vmem:[#allocation7 + $0xd0] sm:$0xf]
        %v1161 = vld [vmem:[#allocation7 + $0xd4] sm:$0xf]
        %v1162 = vld [vmem:[#allocation7 + $0xd8] sm:$0xf]
        %v1163 = vld [vmem:[#allocation7 + $0xdc] sm:$0xf]
        %v1164 = vld [vmem:[#allocation7 + $0xe0] sm:$0xf]
        %v1165 = vld [vmem:[#allocation7 + $0xe4] sm:$0xf]
        %v1166 = vld [vmem:[#allocation7 + $0xe8] sm:$0xf]
        %v1167 = vld [vmem:[#allocation7 + $0xec] sm:$0xf]
        %v1168 = vld [vmem:[#allocation7 + $0xf0] sm:$0xf]
        %v1169 = vld [vmem:[#allocation7 + $0xf4] sm:$0xf]
        %v1170 = vld [vmem:[#allocation7 + $0xf8] sm:$0xf]
        %v1171 = vld [vmem:[#allocation7 + $0xfc] sm:$0xf]
        %v1172 = vld [vmem:[#allocation8] sm:$0xf]
        %v1173 = vld [vmem:[#allocation8 + $0x4] sm:$0xf]
        %v1174 = vld [vmem:[#allocation8 + $0x8] sm:$0xf]
        %v1175 = vld [vmem:[#allocation8 + $0xc] sm:$0xf]
        %v1176 = vld [vmem:[#allocation8 + $0x10] sm:$0xf]
        %v1177 = vld [vmem:[#allocation8 + $0x14] sm:$0xf]
        %v1178 = vld [vmem:[#allocation8 + $0x18] sm:$0xf]
        %v1179 = vld [vmem:[#allocation8 + $0x1c] sm:$0xf]
        %v1180 = vld [vmem:[#allocation8 + $0x20] sm:$0xf]
        %v1181 = vld [vmem:[#allocation8 + $0x24] sm:$0xf]
        %v1182 = vld [vmem:[#allocation8 + $0x28] sm:$0xf]
        %v1183 = vld [vmem:[#allocation8 + $0x2c] sm:$0xf]
        %v1184 = vld [vmem:[#allocation8 + $0x30] sm:$0xf]
        %v1185 = vld [vmem:[#allocation8 + $0x34] sm:$0xf]
        %v1186 = vld [vmem:[#allocation8 + $0x38] sm:$0xf]
        %v1187 = vld [vmem:[#allocation8 + $0x3c] sm:$0xf]
        %v1204 = vunpack.c.l.b16 %v1172
        %v1205 = vunpack.c.l.b16 %v1173
        %v1206 = vunpack.c.l.b16 %v1174
        %v1207 = vunpack.c.l.b16 %v1175
        %v1208 = vunpack.c.l.b16 %v1176
        %v1209 = vunpack.c.l.b16 %v1177
        %v1210 = vunpack.c.l.b16 %v1178
        %v1211 = vunpack.c.l.b16 %v1179
        %v1212 = vunpack.c.l.b16 %v1180
        %v1213 = vunpack.c.l.b16 %v1181
        %v1214 = vunpack.c.l.b16 %v1182
        %v1215 = vunpack.c.l.b16 %v1183
        %v1216 = vunpack.c.l.b16 %v1184
        %v1217 = vunpack.c.l.b16 %v1185
        %v1218 = vunpack.c.l.b16 %v1186
        %v1219 = vunpack.c.l.b16 %v1187
        %v1220 = vpack.c.b16 %v1205, %v1204
        %v1221 = vpack.c.b16 %v1207, %v1206
        %v1222 = vpack.c.b16 %v1209, %v1208
        %v1223 = vpack.c.b16 %v1211, %v1210
        %v1224 = vpack.c.b16 %v1213, %v1212
        %v1225 = vpack.c.b16 %v1215, %v1214
        %v1226 = vpack.c.b16 %v1217, %v1216
        %v1227 = vpack.c.b16 %v1219, %v1218
        %1236 = vmatprep.subr.bf16.mxu0 0
        %1237 = vmatpush1.bf16.msra.mxu0 %v1227
        %1238 = vmatprep.subr.bf16.mxu0 0
        %1239 = vmatpush1.bf16.msra.mxu0 %v1226
        %1240 = vmatprep.subr.bf16.mxu0 0
        %1241 = vmatpush1.bf16.msra.mxu0 %v1225
        %1242 = vmatprep.subr.bf16.mxu0 0
        %1243 = vmatpush1.bf16.msra.mxu0 %v1224
        %1244 = vmatprep.subr.bf16.mxu0 0
        %1245 = vmatpush1.bf16.msra.mxu0 %v1223
        %1246 = vmatprep.subr.bf16.mxu0 0
        %1247 = vmatpush1.bf16.msra.mxu0 %v1222
        %1248 = vmatprep.subr.bf16.mxu0 0
        %1249 = vmatpush1.bf16.msra.mxu0 %v1221
        %1250 = vmatprep.subr.bf16.mxu0 0
        %1251 = vmatpush1.bf16.msra.mxu0 %v1220
        %1252 = vmatprep.subr.bf16.mxu0 0
        %1253 = vmatpush2.bf16.msra.mxu0 0
        %1254 = vmatprep.subr.bf16.mxu0 0
        %1255 = vmatpush2.bf16.msra.mxu0 0
        %1256 = vmatprep.subr.bf16.mxu0 0
        %1257 = vmatpush2.bf16.msra.mxu0 0
        %1258 = vmatprep.subr.bf16.mxu0 0
        %1259 = vmatpush2.bf16.msra.mxu0 0
        %1260 = vmatprep.subr.bf16.mxu0 0
        %1261 = vmatpush2.bf16.msra.mxu0 0
        %1262 = vmatprep.subr.bf16.mxu0 0
        %1263 = vmatpush2.bf16.msra.mxu0 0
        %1264 = vmatprep.subr.bf16.mxu0 0
        %1265 = vmatpush2.bf16.msra.mxu0 0
        %1266 = vmatprep.subr.bf16.mxu0 0
        %1267 = vmatpush2.bf16.msra.mxu0 0
        %1268 = vmatprep.mubr.bf16.mxu0 0
        %1269 = vmatmul.mubr.bf16.gmra.mxu0 %v322
        %v1270 = vpop.f32.mrf.mxu0
        %v1271 = vadd.f32 0.0, %v1270
        %v1272 = vpop.f32.mrf.mxu0
        %v1273 = vpop.f32.mrf.mxu0
        %v1274 = vadd.f32 0.0, %v1273
        %v1275 = vpop.f32.mrf.mxu0
        %1276 = vmatprep.mubr.bf16.mxu0 0
        %1277 = vmatmul.mubr.bf16.gmra.mxu0 %v323
        %v1278 = vpop.f32.mrf.mxu0
        %v1279 = vadd.f32 0.0, %v1278
        %v1280 = vpop.f32.mrf.mxu0
        %v1281 = vpop.f32.mrf.mxu0
        %v1282 = vadd.f32 0.0, %v1281
        %v1283 = vpop.f32.mrf.mxu0
        %1284 = vmatprep.mubr.bf16.mxu0 0
        %1285 = vmatmul.mubr.bf16.gmra.mxu0 %v324
        %v1286 = vpop.f32.mrf.mxu0
        %v1287 = vadd.f32 0.0, %v1286
        %v1288 = vpop.f32.mrf.mxu0
        %v1289 = vpop.f32.mrf.mxu0
        %v1290 = vadd.f32 0.0, %v1289
        %v1291 = vpop.f32.mrf.mxu0
        %1292 = vmatprep.mubr.bf16.mxu0 0
        %1293 = vmatmul.mubr.bf16.gmra.mxu0 %v325
        %v1294 = vpop.f32.mrf.mxu0
        %v1295 = vadd.f32 0.0, %v1294
        %v1296 = vpop.f32.mrf.mxu0
        %v1297 = vpop.f32.mrf.mxu0
        %v1298 = vadd.f32 0.0, %v1297
        %v1299 = vpop.f32.mrf.mxu0
        %1300 = vmatprep.mubr.bf16.mxu0 0
        %1301 = vmatmul.mubr.bf16.gmra.mxu0 %v326
        %v1302 = vpop.f32.mrf.mxu0
        %v1303 = vadd.f32 0.0, %v1302
        %v1304 = vpop.f32.mrf.mxu0
        %v1305 = vpop.f32.mrf.mxu0
        %v1306 = vadd.f32 0.0, %v1305
        %v1307 = vpop.f32.mrf.mxu0
        %1308 = vmatprep.mubr.bf16.mxu0 0
        %1309 = vmatmul.mubr.bf16.gmra.mxu0 %v327
        %v1310 = vpop.f32.mrf.mxu0
        %v1311 = vadd.f32 0.0, %v1310
        %v1312 = vpop.f32.mrf.mxu0
        %v1313 = vpop.f32.mrf.mxu0
        %v1314 = vadd.f32 0.0, %v1313
        %v1315 = vpop.f32.mrf.mxu0
        %1316 = vmatprep.mubr.bf16.mxu0 0
        %1317 = vmatmul.mubr.bf16.gmra.mxu0 %v328
        %v1318 = vpop.f32.mrf.mxu0
        %v1319 = vadd.f32 0.0, %v1318
        %v1320 = vpop.f32.mrf.mxu0
        %v1321 = vpop.f32.mrf.mxu0
        %v1322 = vadd.f32 0.0, %v1321
        %v1323 = vpop.f32.mrf.mxu0
        %1324 = vmatprep.mubr.bf16.mxu0 0
        %1325 = vmatmul.mubr.bf16.gmra.mxu0 %v329
        %v1326 = vpop.f32.mrf.mxu0
        %v1327 = vadd.f32 0.0, %v1326
        %v1328 = vpop.f32.mrf.mxu0
        %v1329 = vpop.f32.mrf.mxu0
        %v1330 = vadd.f32 0.0, %v1329
        %v1331 = vpop.f32.mrf.mxu0
        %1332 = vmatprep.mubr.bf16.mxu0 0
        %1333 = vmatmul.mubr.bf16.gmra.mxu0 %v330
        %v1334 = vpop.f32.mrf.mxu0
        %v1335 = vadd.f32 0.0, %v1334
        %v1336 = vpop.f32.mrf.mxu0
        %v1337 = vpop.f32.mrf.mxu0
        %v1338 = vadd.f32 0.0, %v1337
        %v1339 = vpop.f32.mrf.mxu0
        %1340 = vmatprep.mubr.bf16.mxu0 0
        %1341 = vmatmul.mubr.bf16.gmra.mxu0 %v331
        %v1342 = vpop.f32.mrf.mxu0
        %v1343 = vadd.f32 0.0, %v1342
        %v1344 = vpop.f32.mrf.mxu0
        %v1345 = vpop.f32.mrf.mxu0
        %v1346 = vadd.f32 0.0, %v1345
        %v1347 = vpop.f32.mrf.mxu0
        %1348 = vmatprep.mubr.bf16.mxu0 0
        %1349 = vmatmul.mubr.bf16.gmra.mxu0 %v332
        %v1350 = vpop.f32.mrf.mxu0
        %v1351 = vadd.f32 0.0, %v1350
        %v1352 = vpop.f32.mrf.mxu0
        %v1353 = vpop.f32.mrf.mxu0
        %v1354 = vadd.f32 0.0, %v1353
        %v1355 = vpop.f32.mrf.mxu0
        %1356 = vmatprep.mubr.bf16.mxu0 0
        %1357 = vmatmul.mubr.bf16.gmra.mxu0 %v333
        %v1358 = vpop.f32.mrf.mxu0
        %v1359 = vadd.f32 0.0, %v1358
        %v1360 = vpop.f32.mrf.mxu0
        %v1361 = vpop.f32.mrf.mxu0
        %v1362 = vadd.f32 0.0, %v1361
        %v1363 = vpop.f32.mrf.mxu0
        %1364 = vmatprep.mubr.bf16.mxu0 0
        %1365 = vmatmul.mubr.bf16.gmra.mxu0 %v334
        %v1366 = vpop.f32.mrf.mxu0
        %v1367 = vadd.f32 0.0, %v1366
        %v1368 = vpop.f32.mrf.mxu0
        %v1369 = vpop.f32.mrf.mxu0
        %v1370 = vadd.f32 0.0, %v1369
        %v1371 = vpop.f32.mrf.mxu0
        %1372 = vmatprep.mubr.bf16.mxu0 0
        %1373 = vmatmul.mubr.bf16.gmra.mxu0 %v335
        %v1374 = vpop.f32.mrf.mxu0
        %v1375 = vadd.f32 0.0, %v1374
        %v1376 = vpop.f32.mrf.mxu0
        %v1377 = vpop.f32.mrf.mxu0
        %v1378 = vadd.f32 0.0, %v1377
        %v1379 = vpop.f32.mrf.mxu0
        %1380 = vmatprep.mubr.bf16.mxu0 0
        %1381 = vmatmul.mubr.bf16.gmra.mxu0 %v336
        %v1382 = vpop.f32.mrf.mxu0
        %v1383 = vadd.f32 0.0, %v1382
        %v1384 = vpop.f32.mrf.mxu0
        %v1385 = vpop.f32.mrf.mxu0
        %v1386 = vadd.f32 0.0, %v1385
        %v1387 = vpop.f32.mrf.mxu0
        %1388 = vmatprep.mubr.bf16.mxu0 0
        %1389 = vmatmul.mubr.bf16.gmra.mxu0 %v337
        %v1390 = vpop.f32.mrf.mxu0
        %v1391 = vadd.f32 0.0, %v1390
        %v1392 = vpop.f32.mrf.mxu0
        %v1393 = vpop.f32.mrf.mxu0
        %v1394 = vadd.f32 0.0, %v1393
        %v1395 = vpop.f32.mrf.mxu0
        %1396 = vdwg.mxu0
        %v1461 = vunpack.c.l.b16 %v1108
        %v1462 = vunpack.c.l.b16 %v1109
        %v1463 = vunpack.c.l.b16 %v1110
        %v1464 = vunpack.c.l.b16 %v1111
        %v1465 = vunpack.c.l.b16 %v1112
        %v1466 = vunpack.c.l.b16 %v1113
        %v1467 = vunpack.c.l.b16 %v1114
        %v1468 = vunpack.c.l.b16 %v1115
        %v1469 = vunpack.c.l.b16 %v1116
        %v1470 = vunpack.c.l.b16 %v1117
        %v1471 = vunpack.c.l.b16 %v1118
        %v1472 = vunpack.c.l.b16 %v1119
        %v1473 = vunpack.c.l.b16 %v1120
        %v1474 = vunpack.c.l.b16 %v1121
        %v1475 = vunpack.c.l.b16 %v1122
        %v1476 = vunpack.c.l.b16 %v1123
        %v1477 = vunpack.c.l.b16 %v1124
        %v1478 = vunpack.c.l.b16 %v1125
        %v1479 = vunpack.c.l.b16 %v1126
        %v1480 = vunpack.c.l.b16 %v1127
        %v1481 = vunpack.c.l.b16 %v1128
        %v1482 = vunpack.c.l.b16 %v1129
        %v1483 = vunpack.c.l.b16 %v1130
        %v1484 = vunpack.c.l.b16 %v1131
        %v1485 = vunpack.c.l.b16 %v1132
        %v1486 = vunpack.c.l.b16 %v1133
        %v1487 = vunpack.c.l.b16 %v1134
        %v1488 = vunpack.c.l.b16 %v1135
        %v1489 = vunpack.c.l.b16 %v1136
        %v1490 = vunpack.c.l.b16 %v1137
        %v1491 = vunpack.c.l.b16 %v1138
        %v1492 = vunpack.c.l.b16 %v1139
        %v1493 = vunpack.c.l.b16 %v1140
        %v1494 = vunpack.c.l.b16 %v1141
        %v1495 = vunpack.c.l.b16 %v1142
        %v1496 = vunpack.c.l.b16 %v1143
        %v1497 = vunpack.c.l.b16 %v1144
        %v1498 = vunpack.c.l.b16 %v1145
        %v1499 = vunpack.c.l.b16 %v1146
        %v1500 = vunpack.c.l.b16 %v1147
        %v1501 = vunpack.c.l.b16 %v1148
        %v1502 = vunpack.c.l.b16 %v1149
        %v1503 = vunpack.c.l.b16 %v1150
        %v1504 = vunpack.c.l.b16 %v1151
        %v1505 = vunpack.c.l.b16 %v1152
        %v1506 = vunpack.c.l.b16 %v1153
        %v1507 = vunpack.c.l.b16 %v1154
        %v1508 = vunpack.c.l.b16 %v1155
        %v1509 = vunpack.c.l.b16 %v1156
        %v1510 = vunpack.c.l.b16 %v1157
        %v1511 = vunpack.c.l.b16 %v1158
        %v1512 = vunpack.c.l.b16 %v1159
        %v1513 = vunpack.c.l.b16 %v1160
        %v1514 = vunpack.c.l.b16 %v1161
        %v1515 = vunpack.c.l.b16 %v1162
        %v1516 = vunpack.c.l.b16 %v1163
        %v1517 = vunpack.c.l.b16 %v1164
        %v1518 = vunpack.c.l.b16 %v1165
        %v1519 = vunpack.c.l.b16 %v1166
        %v1520 = vunpack.c.l.b16 %v1167
        %v1521 = vunpack.c.l.b16 %v1168
        %v1522 = vunpack.c.l.b16 %v1169
        %v1523 = vunpack.c.l.b16 %v1170
        %v1524 = vunpack.c.l.b16 %v1171
        %v1525 = vpack.c.b16 %v1462, %v1461
        %v1526 = vpack.c.b16 %v1464, %v1463
        %v1527 = vpack.c.b16 %v1466, %v1465
        %v1528 = vpack.c.b16 %v1468, %v1467
        %v1529 = vpack.c.b16 %v1470, %v1469
        %v1530 = vpack.c.b16 %v1472, %v1471
        %v1531 = vpack.c.b16 %v1474, %v1473
        %v1532 = vpack.c.b16 %v1476, %v1475
        %v1533 = vpack.c.b16 %v1478, %v1477
        %v1534 = vpack.c.b16 %v1480, %v1479
        %v1535 = vpack.c.b16 %v1482, %v1481
        %v1536 = vpack.c.b16 %v1484, %v1483
        %v1537 = vpack.c.b16 %v1486, %v1485
        %v1538 = vpack.c.b16 %v1488, %v1487
        %v1539 = vpack.c.b16 %v1490, %v1489
        %v1540 = vpack.c.b16 %v1492, %v1491
        %v1541 = vpack.c.b16 %v1494, %v1493
        %v1542 = vpack.c.b16 %v1496, %v1495
        %v1543 = vpack.c.b16 %v1498, %v1497
        %v1544 = vpack.c.b16 %v1500, %v1499
        %v1545 = vpack.c.b16 %v1502, %v1501
        %v1546 = vpack.c.b16 %v1504, %v1503
        %v1547 = vpack.c.b16 %v1506, %v1505
        %v1548 = vpack.c.b16 %v1508, %v1507
        %v1549 = vpack.c.b16 %v1510, %v1509
        %v1550 = vpack.c.b16 %v1512, %v1511
        %v1551 = vpack.c.b16 %v1514, %v1513
        %v1552 = vpack.c.b16 %v1516, %v1515
        %v1553 = vpack.c.b16 %v1518, %v1517
        %v1554 = vpack.c.b16 %v1520, %v1519
        %v1555 = vpack.c.b16 %v1522, %v1521
        %v1556 = vpack.c.b16 %v1524, %v1523
        %1589 = vmatprep.subr.bf16.mxu0 0
        %1590 = vmatpush1.bf16.msra.mxu0 %v1532
        %1591 = vmatprep.subr.bf16.mxu0 0
        %1592 = vmatpush1.bf16.msra.mxu0 %v1531
        %1593 = vmatprep.subr.bf16.mxu0 0
        %1594 = vmatpush1.bf16.msra.mxu0 %v1530
        %1595 = vmatprep.subr.bf16.mxu0 0
        %1596 = vmatpush1.bf16.msra.mxu0 %v1529
        %1597 = vmatprep.subr.bf16.mxu0 0
        %1598 = vmatpush1.bf16.msra.mxu0 %v1528
        %1599 = vmatprep.subr.bf16.mxu0 0
        %1600 = vmatpush1.bf16.msra.mxu0 %v1527
        %1601 = vmatprep.subr.bf16.mxu0 0
        %1602 = vmatpush1.bf16.msra.mxu0 %v1526
        %1603 = vmatprep.subr.bf16.mxu0 0
        %1604 = vmatpush1.bf16.msra.mxu0 %v1525
        %1605 = vmatprep.subr.bf16.mxu0 0
        %1606 = vmatpush2.bf16.msra.mxu0 %v1540
        %1607 = vmatprep.subr.bf16.mxu0 0
        %1608 = vmatpush2.bf16.msra.mxu0 %v1539
        %1609 = vmatprep.subr.bf16.mxu0 0
        %1610 = vmatpush2.bf16.msra.mxu0 %v1538
        %1611 = vmatprep.subr.bf16.mxu0 0
        %1612 = vmatpush2.bf16.msra.mxu0 %v1537
        %1613 = vmatprep.subr.bf16.mxu0 0
        %1614 = vmatpush2.bf16.msra.mxu0 %v1536
        %1615 = vmatprep.subr.bf16.mxu0 0
        %1616 = vmatpush2.bf16.msra.mxu0 %v1535
        %1617 = vmatprep.subr.bf16.mxu0 0
        %1618 = vmatpush2.bf16.msra.mxu0 %v1534
        %1619 = vmatprep.subr.bf16.mxu0 0
        %1620 = vmatpush2.bf16.msra.mxu0 %v1533
        %1621 = vmatprep.mubr.bf16.mxu0 %v1045
        %1622 = vmatmul.mubr.bf16.gmra.mxu0 %v1044
        %v1623 = vpop.f32.mrf.mxu0
        %v1624 = vadd.f32 %v1271, %v1623
        %v1625 = vpop.f32.mrf.mxu0
        %v1626 = vpop.f32.mrf.mxu0
        %v1627 = vadd.f32 %v1274, %v1626
        %v1628 = vpop.f32.mrf.mxu0
        %1629 = vmatprep.mubr.bf16.mxu0 %v1049
        %1630 = vmatmul.mubr.bf16.gmra.mxu0 %v1048
        %v1631 = vpop.f32.mrf.mxu0
        %v1632 = vadd.f32 %v1279, %v1631
        %v1633 = vpop.f32.mrf.mxu0
        %v1634 = vpop.f32.mrf.mxu0
        %v1635 = vadd.f32 %v1282, %v1634
        %v1636 = vpop.f32.mrf.mxu0
        %1637 = vmatprep.mubr.bf16.mxu0 %v1053
        %1638 = vmatmul.mubr.bf16.gmra.mxu0 %v1052
        %v1639 = vpop.f32.mrf.mxu0
        %v1640 = vadd.f32 %v1287, %v1639
        %v1641 = vpop.f32.mrf.mxu0
        %v1642 = vpop.f32.mrf.mxu0
        %v1643 = vadd.f32 %v1290, %v1642
        %v1644 = vpop.f32.mrf.mxu0
        %1645 = vmatprep.mubr.bf16.mxu0 %v1057
        %1646 = vmatmul.mubr.bf16.gmra.mxu0 %v1056
        %v1647 = vpop.f32.mrf.mxu0
        %v1648 = vadd.f32 %v1295, %v1647
        %v1649 = vpop.f32.mrf.mxu0
        %v1650 = vpop.f32.mrf.mxu0
        %v1651 = vadd.f32 %v1298, %v1650
        %v1652 = vpop.f32.mrf.mxu0
        %1653 = vmatprep.mubr.bf16.mxu0 %v1061
        %1654 = vmatmul.mubr.bf16.gmra.mxu0 %v1060
        %v1655 = vpop.f32.mrf.mxu0
        %v1656 = vadd.f32 %v1303, %v1655
        %v1657 = vpop.f32.mrf.mxu0
        %v1658 = vpop.f32.mrf.mxu0
        %v1659 = vadd.f32 %v1306, %v1658
        %v1660 = vpop.f32.mrf.mxu0
        %1661 = vmatprep.mubr.bf16.mxu0 %v1065
        %1662 = vmatmul.mubr.bf16.gmra.mxu0 %v1064
        %v1663 = vpop.f32.mrf.mxu0
        %v1664 = vadd.f32 %v1311, %v1663
        %v1665 = vpop.f32.mrf.mxu0
        %v1666 = vpop.f32.mrf.mxu0
        %v1667 = vadd.f32 %v1314, %v1666
        %v1668 = vpop.f32.mrf.mxu0
        %1669 = vmatprep.mubr.bf16.mxu0 %v1069
        %1670 = vmatmul.mubr.bf16.gmra.mxu0 %v1068
        %v1671 = vpop.f32.mrf.mxu0
        %v1672 = vadd.f32 %v1319, %v1671
        %v1673 = vpop.f32.mrf.mxu0
        %v1674 = vpop.f32.mrf.mxu0
        %v1675 = vadd.f32 %v1322, %v1674
        %v1676 = vpop.f32.mrf.mxu0
        %1677 = vmatprep.mubr.bf16.mxu0 %v1073
        %1678 = vmatmul.mubr.bf16.gmra.mxu0 %v1072
        %v1679 = vpop.f32.mrf.mxu0
        %v1680 = vadd.f32 %v1327, %v1679
        %v1681 = vpop.f32.mrf.mxu0
        %v1682 = vpop.f32.mrf.mxu0
        %v1683 = vadd.f32 %v1330, %v1682
        %v1684 = vpop.f32.mrf.mxu0
        %1685 = vmatprep.mubr.bf16.mxu0 %v1077
        %1686 = vmatmul.mubr.bf16.gmra.mxu0 %v1076
        %v1687 = vpop.f32.mrf.mxu0
        %v1688 = vadd.f32 %v1335, %v1687
        %v1689 = vpop.f32.mrf.mxu0
        %v1690 = vpop.f32.mrf.mxu0
        %v1691 = vadd.f32 %v1338, %v1690
        %v1692 = vpop.f32.mrf.mxu0
        %1693 = vmatprep.mubr.bf16.mxu0 %v1081
        %1694 = vmatmul.mubr.bf16.gmra.mxu0 %v1080
        %v1695 = vpop.f32.mrf.mxu0
        %v1696 = vadd.f32 %v1343, %v1695
        %v1697 = vpop.f32.mrf.mxu0
        %v1698 = vpop.f32.mrf.mxu0
        %v1699 = vadd.f32 %v1346, %v1698
        %v1700 = vpop.f32.mrf.mxu0
        %1701 = vmatprep.mubr.bf16.mxu0 %v1085
        %1702 = vmatmul.mubr.bf16.gmra.mxu0 %v1084
        %v1703 = vpop.f32.mrf.mxu0
        %v1704 = vadd.f32 %v1351, %v1703
        %v1705 = vpop.f32.mrf.mxu0
        %v1706 = vpop.f32.mrf.mxu0
        %v1707 = vadd.f32 %v1354, %v1706
        %v1708 = vpop.f32.mrf.mxu0
        %1709 = vmatprep.mubr.bf16.mxu0 %v1089
        %1710 = vmatmul.mubr.bf16.gmra.mxu0 %v1088
        %v1711 = vpop.f32.mrf.mxu0
        %v1712 = vadd.f32 %v1359, %v1711
        %v1713 = vpop.f32.mrf.mxu0
        %v1714 = vpop.f32.mrf.mxu0
        %v1715 = vadd.f32 %v1362, %v1714
        %v1716 = vpop.f32.mrf.mxu0
        %1717 = vmatprep.mubr.bf16.mxu0 %v1093
        %1718 = vmatmul.mubr.bf16.gmra.mxu0 %v1092
        %v1719 = vpop.f32.mrf.mxu0
        %v1720 = vadd.f32 %v1367, %v1719
        %v1721 = vpop.f32.mrf.mxu0
        %v1722 = vpop.f32.mrf.mxu0
        %v1723 = vadd.f32 %v1370, %v1722
        %v1724 = vpop.f32.mrf.mxu0
        %1725 = vmatprep.mubr.bf16.mxu0 %v1097
        %1726 = vmatmul.mubr.bf16.gmra.mxu0 %v1096
        %v1727 = vpop.f32.mrf.mxu0
        %v1728 = vadd.f32 %v1375, %v1727
        %v1729 = vpop.f32.mrf.mxu0
        %v1730 = vpop.f32.mrf.mxu0
        %v1731 = vadd.f32 %v1378, %v1730
        %v1732 = vpop.f32.mrf.mxu0
        %1733 = vmatprep.mubr.bf16.mxu0 %v1101
        %1734 = vmatmul.mubr.bf16.gmra.mxu0 %v1100
        %v1735 = vpop.f32.mrf.mxu0
        %v1736 = vadd.f32 %v1383, %v1735
        %v1737 = vpop.f32.mrf.mxu0
        %v1738 = vpop.f32.mrf.mxu0
        %v1739 = vadd.f32 %v1386, %v1738
        %v1740 = vpop.f32.mrf.mxu0
        %1741 = vmatprep.mubr.bf16.mxu0 %v1105
        %1742 = vmatmul.mubr.bf16.gmra.mxu0 %v1104
        %v1743 = vpop.f32.mrf.mxu0
        %v1744 = vadd.f32 %v1391, %v1743
        %v1745 = vpop.f32.mrf.mxu0
        %v1746 = vpop.f32.mrf.mxu0
        %v1747 = vadd.f32 %v1394, %v1746
        %v1748 = vpop.f32.mrf.mxu0
        %1749 = vdwg.mxu0
        %1750 = vmatprep.subr.bf16.mxu0 0
        %1751 = vmatpush1.bf16.msra.mxu0 %v1548
        %1752 = vmatprep.subr.bf16.mxu0 0
        %1753 = vmatpush1.bf16.msra.mxu0 %v1547
        %1754 = vmatprep.subr.bf16.mxu0 0
        %1755 = vmatpush1.bf16.msra.mxu0 %v1546
        %1756 = vmatprep.subr.bf16.mxu0 0
        %1757 = vmatpush1.bf16.msra.mxu0 %v1545
        %1758 = vmatprep.subr.bf16.mxu0 0
        %1759 = vmatpush1.bf16.msra.mxu0 %v1544
        %1760 = vmatprep.subr.bf16.mxu0 0
        %1761 = vmatpush1.bf16.msra.mxu0 %v1543
        %1762 = vmatprep.subr.bf16.mxu0 0
        %1763 = vmatpush1.bf16.msra.mxu0 %v1542
        %1764 = vmatprep.subr.bf16.mxu0 0
        %1765 = vmatpush1.bf16.msra.mxu0 %v1541
        %1766 = vmatprep.subr.bf16.mxu0 0
        %1767 = vmatpush2.bf16.msra.mxu0 %v1556
        %1768 = vmatprep.subr.bf16.mxu0 0
        %1769 = vmatpush2.bf16.msra.mxu0 %v1555
        %1770 = vmatprep.subr.bf16.mxu0 0
        %1771 = vmatpush2.bf16.msra.mxu0 %v1554
        %1772 = vmatprep.subr.bf16.mxu0 0
        %1773 = vmatpush2.bf16.msra.mxu0 %v1553
        %1774 = vmatprep.subr.bf16.mxu0 0
        %1775 = vmatpush2.bf16.msra.mxu0 %v1552
        %1776 = vmatprep.subr.bf16.mxu0 0
        %1777 = vmatpush2.bf16.msra.mxu0 %v1551
        %1778 = vmatprep.subr.bf16.mxu0 0
        %1779 = vmatpush2.bf16.msra.mxu0 %v1550
        %1780 = vmatprep.subr.bf16.mxu0 0
        %1781 = vmatpush2.bf16.msra.mxu0 %v1549
        %1782 = vmatprep.mubr.bf16.mxu0 %v1047
        %1783 = vmatmul.mubr.bf16.gmra.mxu0 %v1046
        %v1784 = vpop.f32.mrf.mxu0
        %v1785 = vadd.f32 %v1624, %v1784
        %v1786 = vpop.f32.mrf.mxu0
        %v1787 = vpop.f32.mrf.mxu0
        %v1788 = vadd.f32 %v1627, %v1787
        %v1789 = vpop.f32.mrf.mxu0
        %1790 = vmatprep.mubr.bf16.mxu0 %v1051
        %1791 = vmatmul.mubr.bf16.gmra.mxu0 %v1050
        %v1792 = vpop.f32.mrf.mxu0
        %v1793 = vadd.f32 %v1632, %v1792
        %v1794 = vpop.f32.mrf.mxu0
        %v1795 = vpop.f32.mrf.mxu0
        %v1796 = vadd.f32 %v1635, %v1795
        %v1797 = vpop.f32.mrf.mxu0
        %1798 = vmatprep.mubr.bf16.mxu0 %v1055
        %1799 = vmatmul.mubr.bf16.gmra.mxu0 %v1054
        %v1800 = vpop.f32.mrf.mxu0
        %v1801 = vadd.f32 %v1640, %v1800
        %v1802 = vpop.f32.mrf.mxu0
        %v1803 = vpop.f32.mrf.mxu0
        %v1804 = vadd.f32 %v1643, %v1803
        %v1805 = vpop.f32.mrf.mxu0
        %1806 = vmatprep.mubr.bf16.mxu0 %v1059
        %1807 = vmatmul.mubr.bf16.gmra.mxu0 %v1058
        %v1808 = vpop.f32.mrf.mxu0
        %v1809 = vadd.f32 %v1648, %v1808
        %v1810 = vpop.f32.mrf.mxu0
        %v1811 = vpop.f32.mrf.mxu0
        %v1812 = vadd.f32 %v1651, %v1811
        %v1813 = vpop.f32.mrf.mxu0
        %1814 = vmatprep.mubr.bf16.mxu0 %v1063
        %1815 = vmatmul.mubr.bf16.gmra.mxu0 %v1062
        %v1816 = vpop.f32.mrf.mxu0
        %v1817 = vadd.f32 %v1656, %v1816
        %v1818 = vpop.f32.mrf.mxu0
        %v1819 = vpop.f32.mrf.mxu0
        %v1820 = vadd.f32 %v1659, %v1819
        %v1821 = vpop.f32.mrf.mxu0
        %1822 = vmatprep.mubr.bf16.mxu0 %v1067
        %1823 = vmatmul.mubr.bf16.gmra.mxu0 %v1066
        %v1824 = vpop.f32.mrf.mxu0
        %v1825 = vadd.f32 %v1664, %v1824
        %v1826 = vpop.f32.mrf.mxu0
        %v1827 = vpop.f32.mrf.mxu0
        %v1828 = vadd.f32 %v1667, %v1827
        %v1829 = vpop.f32.mrf.mxu0
        %1830 = vmatprep.mubr.bf16.mxu0 %v1071
        %1831 = vmatmul.mubr.bf16.gmra.mxu0 %v1070
        %v1832 = vpop.f32.mrf.mxu0
        %v1833 = vadd.f32 %v1672, %v1832
        %v1834 = vpop.f32.mrf.mxu0
        %v1835 = vpop.f32.mrf.mxu0
        %v1836 = vadd.f32 %v1675, %v1835
        %v1837 = vpop.f32.mrf.mxu0
        %1838 = vmatprep.mubr.bf16.mxu0 %v1075
        %1839 = vmatmul.mubr.bf16.gmra.mxu0 %v1074
        %v1840 = vpop.f32.mrf.mxu0
        %v1841 = vadd.f32 %v1680, %v1840
        %v1842 = vpop.f32.mrf.mxu0
        %v1843 = vpop.f32.mrf.mxu0
        %v1844 = vadd.f32 %v1683, %v1843
        %v1845 = vpop.f32.mrf.mxu0
        %1846 = vmatprep.mubr.bf16.mxu0 %v1079
        %1847 = vmatmul.mubr.bf16.gmra.mxu0 %v1078
        %v1848 = vpop.f32.mrf.mxu0
        %v1849 = vadd.f32 %v1688, %v1848
        %v1850 = vpop.f32.mrf.mxu0
        %v1851 = vpop.f32.mrf.mxu0
        %v1852 = vadd.f32 %v1691, %v1851
        %v1853 = vpop.f32.mrf.mxu0
        %1854 = vmatprep.mubr.bf16.mxu0 %v1083
        %1855 = vmatmul.mubr.bf16.gmra.mxu0 %v1082
        %v1856 = vpop.f32.mrf.mxu0
        %v1857 = vadd.f32 %v1696, %v1856
        %v1858 = vpop.f32.mrf.mxu0
        %v1859 = vpop.f32.mrf.mxu0
        %v1860 = vadd.f32 %v1699, %v1859
        %v1861 = vpop.f32.mrf.mxu0
        %1862 = vmatprep.mubr.bf16.mxu0 %v1087
        %1863 = vmatmul.mubr.bf16.gmra.mxu0 %v1086
        %v1864 = vpop.f32.mrf.mxu0
        %v1865 = vadd.f32 %v1704, %v1864
        %v1866 = vpop.f32.mrf.mxu0
        %v1867 = vpop.f32.mrf.mxu0
        %v1868 = vadd.f32 %v1707, %v1867
        %v1869 = vpop.f32.mrf.mxu0
        %1870 = vmatprep.mubr.bf16.mxu0 %v1091
        %1871 = vmatmul.mubr.bf16.gmra.mxu0 %v1090
        %v1872 = vpop.f32.mrf.mxu0
        %v1873 = vadd.f32 %v1712, %v1872
        %v1874 = vpop.f32.mrf.mxu0
        %v1875 = vpop.f32.mrf.mxu0
        %v1876 = vadd.f32 %v1715, %v1875
        %v1877 = vpop.f32.mrf.mxu0
        %1878 = vmatprep.mubr.bf16.mxu0 %v1095
        %1879 = vmatmul.mubr.bf16.gmra.mxu0 %v1094
        %v1880 = vpop.f32.mrf.mxu0
        %v1881 = vadd.f32 %v1720, %v1880
        %v1882 = vpop.f32.mrf.mxu0
        %v1883 = vpop.f32.mrf.mxu0
        %v1884 = vadd.f32 %v1723, %v1883
        %v1885 = vpop.f32.mrf.mxu0
        %1886 = vmatprep.mubr.bf16.mxu0 %v1099
        %1887 = vmatmul.mubr.bf16.gmra.mxu0 %v1098
        %v1888 = vpop.f32.mrf.mxu0
        %v1889 = vadd.f32 %v1728, %v1888
        %v1890 = vpop.f32.mrf.mxu0
        %v1891 = vpop.f32.mrf.mxu0
        %v1892 = vadd.f32 %v1731, %v1891
        %v1893 = vpop.f32.mrf.mxu0
        %1894 = vmatprep.mubr.bf16.mxu0 %v1103
        %1895 = vmatmul.mubr.bf16.gmra.mxu0 %v1102
        %v1896 = vpop.f32.mrf.mxu0
        %v1897 = vadd.f32 %v1736, %v1896
        %v1898 = vpop.f32.mrf.mxu0
        %v1899 = vpop.f32.mrf.mxu0
        %v1900 = vadd.f32 %v1739, %v1899
        %v1901 = vpop.f32.mrf.mxu0
        %1902 = vmatprep.mubr.bf16.mxu0 %v1107
        %1903 = vmatmul.mubr.bf16.gmra.mxu0 %v1106
        %v1904 = vpop.f32.mrf.mxu0
        %v1905 = vadd.f32 %v1744, %v1904
        %v1906 = vpop.f32.mrf.mxu0
        %v1907 = vpop.f32.mrf.mxu0
        %v1908 = vadd.f32 %v1747, %v1907
        %v1909 = vpop.f32.mrf.mxu0
        %1910 = vdwg.mxu0
        %v1911 = vld [vmem:[%s4] sm:$0x1]
        %v1913 = vlaneseq
        %v1914 = vshrl.u32 %v1913, 7
        %v1915 = vsub.s32 0, %v1914
        %v1916 = vrot.slane %v1911, %v1915
        %v1918 = vadd.f32 %v1785, %v1916
        %v1919 = vadd.f32 %v1788, %v1916
        %v1920 = vadd.f32 %v1793, %v1916
        %v1921 = vadd.f32 %v1796, %v1916
        %v1922 = vadd.f32 %v1801, %v1916
        %v1923 = vadd.f32 %v1804, %v1916
        %v1924 = vadd.f32 %v1809, %v1916
        %v1925 = vadd.f32 %v1812, %v1916
        %v1926 = vadd.f32 %v1817, %v1916
        %v1927 = vadd.f32 %v1820, %v1916
        %v1928 = vadd.f32 %v1825, %v1916
        %v1929 = vadd.f32 %v1828, %v1916
        %v1930 = vadd.f32 %v1833, %v1916
        %v1931 = vadd.f32 %v1836, %v1916
        %v1932 = vadd.f32 %v1841, %v1916
        %v1933 = vadd.f32 %v1844, %v1916
        %v1934 = vadd.f32 %v1849, %v1916
        %v1935 = vadd.f32 %v1852, %v1916
        %v1936 = vadd.f32 %v1857, %v1916
        %v1937 = vadd.f32 %v1860, %v1916
        %v1938 = vadd.f32 %v1865, %v1916
        %v1939 = vadd.f32 %v1868, %v1916
        %v1940 = vadd.f32 %v1873, %v1916
        %v1941 = vadd.f32 %v1876, %v1916
        %v1942 = vadd.f32 %v1881, %v1916
        %v1943 = vadd.f32 %v1884, %v1916
        %v1944 = vadd.f32 %v1889, %v1916
        %v1945 = vadd.f32 %v1892, %v1916
        %v1946 = vadd.f32 %v1897, %v1916
        %v1947 = vadd.f32 %v1900, %v1916
        %v1948 = vadd.f32 %v1905, %v1916
        %v1949 = vadd.f32 %v1908, %v1916
        %1950 = vst [vmem:[%s286] sm:$0xff] %v1918
        %1951 = vst [vmem:[%s286 + $0x8] sm:$0xff] %v1919
        %1952 = vst [vmem:[%s286 + $0x10] sm:$0xff] %v1920
        %1953 = vst [vmem:[%s286 + $0x18] sm:$0xff] %v1921
        %1954 = vst [vmem:[%s286 + $0x20] sm:$0xff] %v1922
        %1955 = vst [vmem:[%s286 + $0x28] sm:$0xff] %v1923
        %1956 = vst [vmem:[%s286 + $0x30] sm:$0xff] %v1924
        %1957 = vst [vmem:[%s286 + $0x38] sm:$0xff] %v1925
        %1958 = vst [vmem:[%s286 + $0x40] sm:$0xff] %v1926
        %1959 = vst [vmem:[%s286 + $0x48] sm:$0xff] %v1927
        %1960 = vst [vmem:[%s286 + $0x50] sm:$0xff] %v1928
        %1961 = vst [vmem:[%s286 + $0x58] sm:$0xff] %v1929
        %1962 = vst [vmem:[%s286 + $0x60] sm:$0xff] %v1930
        %1963 = vst [vmem:[%s286 + $0x68] sm:$0xff] %v1931
        %1964 = vst [vmem:[%s286 + $0x70] sm:$0xff] %v1932
        %1965 = vst [vmem:[%s286 + $0x78] sm:$0xff] %v1933
        %1966 = vst [vmem:[%s286 + $0x80] sm:$0xff] %v1934
        %1967 = vst [vmem:[%s286 + $0x88] sm:$0xff] %v1935
        %1968 = vst [vmem:[%s286 + $0x90] sm:$0xff] %v1936
        %1969 = vst [vmem:[%s286 + $0x98] sm:$0xff] %v1937
        %1970 = vst [vmem:[%s286 + $0xa0] sm:$0xff] %v1938
        %1971 = vst [vmem:[%s286 + $0xa8] sm:$0xff] %v1939
        %1972 = vst [vmem:[%s286 + $0xb0] sm:$0xff] %v1940
        %1973 = vst [vmem:[%s286 + $0xb8] sm:$0xff] %v1941
        %1974 = vst [vmem:[%s286 + $0xc0] sm:$0xff] %v1942
        %1975 = vst [vmem:[%s286 + $0xc8] sm:$0xff] %v1943
        %1976 = vst [vmem:[%s286 + $0xd0] sm:$0xff] %v1944
        %1977 = vst [vmem:[%s286 + $0xd8] sm:$0xff] %v1945
        %1978 = vst [vmem:[%s286 + $0xe0] sm:$0xff] %v1946
        %1979 = vst [vmem:[%s286 + $0xe8] sm:$0xff] %v1947
        %1980 = vst [vmem:[%s286 + $0xf0] sm:$0xff] %v1948
        %1981 = vst [vmem:[%s286 + $0xf8] sm:$0xff] %v1949
        %s1982 = sand.u32 %s142, 1
        %s1983 = scalar_lea.sflag [#allocation4], %s1982
        %s1984 = sand.u32 %s142, 1
        %s1985 = smul.addr %s1984, 256
        %s1986 = scalar_lea.vmem [#allocation10], %s1985
        // Predicated region
        $region57: #{tpu_custom_call.1} parent=39 // pred_check
          %p1987 = pneg %p152
        $region58: #{tpu_custom_call.1} parent=39 // pred_check_branch
          %1989 = sbr.rel (%p1987) target = $region60
        $region59: #{tpu_custom_call.1} parent=39 // pred_region
          %s1990 = smul.u32 32, %s24
          %s1992 = ssub.s32 4096, 4096
          %1993 = vsyncadd %s1983, %s1992
          %s1994 = smul.addr %s1990, 128
          %s1995 = scalar_lea.hbm %s5, %s1994
          %s1996 = sshll.u32 %s1986, 4
          %s1997 = int_to_ptr.vmem [resolvable:$true] %s1996
          %2002 = dma.vmem_to_hbm [thread:$0]  %s1997, 4096, %s1995, %s1983, 128, 128, 8
        $region60: #{tpu_custom_call.1} parent=39 // pred_fallthru
          _
      $region40: #{tpu_custom_call.1} parent=5 // pred_fallthru
        _
      %p2003 = scmp.le.s32.totalorder 2, %s19
      // Predicated region
      $region61: #{tpu_custom_call.1} parent=5 // pred_check
        %p2004 = pneg %p2003
      $region62: #{tpu_custom_call.1} parent=5 // pred_check_branch
        %2006 = sbr.rel (%p2004) target = $region64
      $region63: #{tpu_custom_call.1} parent=5 // pred_region
        %s2007 = ssub.s32 %s19, 2
        // Predicated region
        $region65: #{tpu_custom_call.1} parent=63 // pred_check
          %p2008 = pneg %p158
        $region66: #{tpu_custom_call.1} parent=63 // pred_check_branch
          %2010 = sbr.rel (%p2008) target = $region68
        $region67: #{tpu_custom_call.1} parent=63 // pred_region
          %s2011 = sand.u32 %s143, 1
          %s2012 = scalar_lea.sflag [#allocation4], %s2011
          %s2013 = sand.u32 %s143, 1
          %s2014 = smul.addr %s2013, 256
          %s2015 = scalar_lea.vmem [#allocation10], %s2014
          %2016 = dma.done %s2012, 4096
        $region68: #{tpu_custom_call.1} parent=63 // pred_fallthru
          _
      $region64: #{tpu_custom_call.1} parent=5 // pred_fallthru
        _
    $region6: #{tpu_custom_call.1} parent=1 // loop_footer
      %s23 = sadd.s32 1, %s19
    $region7: #{tpu_custom_call.1} parent=1 // loop_footer_branch
      %18 = sbr.rel target = $region3
    $region8: #{tpu_custom_call.1} parent=1 // loop_exit
      _
    %2017 = vsyncpa [#allocation3], 1
    %s2018 = scalar_lea.sflag [#allocation3], 1
    %2019 = vsyncpa %s2018, 1
    %2020 = vsyncpa [#allocation6], 1
    %2021 = vsyncpa [#allocation9], 1
    %2022 = vsyncpa [#allocation4], 1
    %s2023 = scalar_lea.sflag [#allocation4], 1
    %2024 = vsyncpa %s2023, 1

// kernel: tpu_custom_call.1
$region0: #{tpu_custom_call.1}
  #allocation0 [shape = 'u32[]', space=smem, size = 0x4, offset = 0x4, fixed_abs, tag = 'smem constant byte address 0x4 - core index']
  #allocation1 [shape = 'u32[144,128]{1,0:T(1,128)}', space=vmem, size = 0x12000, scoped, tag = 'internal scratch']
  %s0 = inlined_call_operand.hbm [shape: f32[512,128], index: 0, kind: input, shape index: {}]
  %s1 = inlined_call_operand.hbm [shape: bf16[128,512], index: 1, kind: input, shape index: {}]
  %s2 = inlined_call_operand.hbm [shape: bf16[512,128], index: 2, kind: input, shape index: {}]
  %s3 = inlined_call_operand.hbm [shape: bf16[128,128], index: 3, kind: input, shape index: {}]
  %s4 = inlined_call_operand.vmem [shape: f32[1,128], index: 4, kind: input, shape index: {}]
  %s5 = inlined_call_operand.hbm [shape: f32[512,128], index: 5, kind: output, shape index: {}]
  %s6 = sld [smem:[#allocation0]]
  $region69: #{tpu_custom_call.1} parent=0
    _
  %s8 = ssub.s32 1, %s6
  %s9 = scalar_select 0, %s8, %s6
  $region1: #{tpu_custom_call.1} parent=0
    #allocation2 [shape = 'u8[262144]{0}', space=vmem, size = 0x40000, scoped, tag = 'input window, operand 0']
    #allocation3 [shape = 's32[2]{0}', space=sflag, size = 0x8, scoped, tag = 'scoped memory for tpu_custom_call.1']
    #allocation4 [shape = 's32[2]{0}', space=sflag, size = 0x8, scoped, tag = 'scoped memory for tpu_custom_call.1']
    #allocation5 [shape = 'u8[131072]{0}', space=vmem, size = 0x20000, scoped, tag = 'input window, operand 1, single buffered']
    #allocation6 [shape = 's32[1]{0}', space=sflag, size = 0x4, scoped, tag = 'scoped memory for tpu_custom_call.1']
    #allocation7 [shape = 'u8[131072]{0}', space=vmem, size = 0x20000, scoped, tag = 'input window, operand 2, single buffered']
    #allocation8 [shape = 'u8[32768]{0}', space=vmem, size = 0x8000, scoped, tag = 'input window, operand 3, single buffered']
    #allocation9 [shape = 's32[1]{0}', space=sflag, size = 0x4, scoped, tag = 'scoped memory for tpu_custom_call.1']
    #allocation10 [shape = 'u8[262144]{0}', space=vmem, size = 0x40000, scoped, tag = 'output window, operand 0']
    %10 = vsyncpa [#allocation3], 0
    %s11 = scalar_lea.sflag [#allocation3], 1
    %12 = vsyncpa %s11, 0
    %13 = vsyncpa [#allocation6], 0
    %14 = vsyncpa [#allocation9], 0
    %15 = vsyncpa [#allocation4], 0
    %s16 = scalar_lea.sflag [#allocation4], 1
    %17 = vsyncpa %s16, 0
    loop: start=0, step=1, limit=4
    $region2: #{tpu_custom_call.1} parent=1 // loop_pre_header
      _
    $region3: #{tpu_custom_call.1} parent=1 // loop_header
      %s19 = sphi 0, %s23
      %p20 = scmp.ge.s32.totalorder %s19, 4
      %s29 = sphi 0, %s31
      %s32 = sphi 0, %s29
      %s33 = sphi 0, %s32
      %s49 = sphi 0, %s33
      %s53 = sphi 0, %s53
      %s55 = sphi 0, %s53
      %s56 = sphi 0, %s55
      %s70 = sphi 0, %s56
      %s74 = sphi 0, %s74
      %s76 = sphi 0, %s74
      %s77 = sphi 0, %s76
      %s91 = sphi 0, %s77
      %s95 = sphi 0, %s95
      %s97 = sphi 0, %s95
      %s98 = sphi 0, %s97
      %s112 = sphi 0, %s98
      %s116 = sphi 0, %s116
      %s118 = sphi 0, %s116
      %s119 = sphi 0, %s118
      %s133 = sphi 0, %s119
      %s139 = sphi 0, %s141
      %s142 = sphi 0, %s139
      %s143 = sphi 0, %s142
      %s159 = sphi 0, %s143
    $region4: #{tpu_custom_call.1} parent=1 // loop_header_branch
      %22 = sbr.rel (%p20) target = $region8
    $region5: #{tpu_custom_call.1} parent=1 // loop_body
      %s24 = ssub.s32 %s19, 1
      %s25 = ssub.s32 %s19, 2
      %s26 = sadd.s32 %s19, 1
      %s27 = ssub.s32 %s19, %s26
      %p28 = scmp.eq.s32.totalorder %s27, 0
      %s30 = sadd.s32 %s29, 1
      %s31 = scalar_select %p28, %s29, %s30
      %p34 = pneg %p28
      %p35 = scmp.eq.s32.totalorder %s19, 1
      %p36 = por %p34, %p35
      %p37 = scmp.ne.s32.totalorder %s29, %s32
      %p38 = scmp.eq.s32.totalorder %s19, 0
      %p39 = por %p37, %p38
      %p40 = scmp.ne.s32.totalorder %s29, %s32
      %p41 = scmp.eq.s32.totalorder %s24, 1
      %p42 = por %p40, %p41
      %p43 = scmp.ne.s32.totalorder %s32, %s33
      %p44 = scmp.eq.s32.totalorder %s24, 0
      %p45 = por %p43, %p44
      %p46 = scmp.ne.s32.totalorder %s32, %s33
      %p47 = scmp.eq.s32.totalorder %s25, 1
      %p48 = por %p46, %p47
      %p50 = scmp.ne.s32.totalorder %s33, %s49
      %p51 = scmp.eq.s32.totalorder %s25, 0
      %p52 = por %p50, %p51
      %s54 = sadd.s32 %s53, 1
      %p57 = scmp.eq.s32.totalorder %s19, 1
      %p58 = scmp.ne.s32.totalorder %s53, %s55
      %p59 = scmp.eq.s32.totalorder %s19, 0
      %p60 = por %p58, %p59
      %p61 = scmp.ne.s32.totalorder %s53, %s55
      %p62 = scmp.eq.s32.totalorder %s24, 1
      %p63 = por %p61, %p62
      %p64 = scmp.ne.s32.totalorder %s55, %s56
      %p65 = scmp.eq.s32.totalorder %s24, 0
      %p66 = por %p64, %p65
      %p67 = scmp.ne.s32.totalorder %s55, %s56
      %p68 = scmp.eq.s32.totalorder %s25, 1
      %p69 = por %p67, %p68
      %p71 = scmp.ne.s32.totalorder %s56, %s70
      %p72 = scmp.eq.s32.totalorder %s25, 0
      %p73 = por %p71, %p72
      %s75 = sadd.s32 %s74, 1
      %p78 = scmp.eq.s32.totalorder %s19, 1
      %p79 = scmp.ne.s32.totalorder %s74, %s76
      %p80 = scmp.eq.s32.totalorder %s19, 0
      %p81 = por %p79, %p80
      %p82 = scmp.ne.s32.totalorder %s74, %s76
      %p83 = scmp.eq.s32.totalorder %s24, 1
      %p84 = por %p82, %p83
      %p85 = scmp.ne.s32.totalorder %s76, %s77
      %p86 = scmp.eq.s32.totalorder %s24, 0
      %p87 = por %p85, %p86
      %p88 = scmp.ne.s32.totalorder %s76, %s77
      %p89 = scmp.eq.s32.totalorder %s25, 1
      %p90 = por %p88, %p89
      %p92 = scmp.ne.s32.totalorder %s77, %s91
      %p93 = scmp.eq.s32.totalorder %s25, 0
      %p94 = por %p92, %p93
      %s96 = sadd.s32 %s95, 1
      %p99 = scmp.eq.s32.totalorder %s19, 1
      %p100 = scmp.ne.s32.totalorder %s95, %s97
      %p101 = scmp.eq.s32.totalorder %s19, 0
      %p102 = por %p100, %p101
      %p103 = scmp.ne.s32.totalorder %s95, %s97
      %p104 = scmp.eq.s32.totalorder %s24, 1
      %p105 = por %p103, %p104
      %p106 = scmp.ne.s32.totalorder %s97, %s98
      %p107 = scmp.eq.s32.totalorder %s24, 0
      %p108 = por %p106, %p107
      %p109 = scmp.ne.s32.totalorder %s97, %s98
      %p110 = scmp.eq.s32.totalorder %s25, 1
      %p111 = por %p109, %p110
      %p113 = scmp.ne.s32.totalorder %s98, %s112
      %p114 = scmp.eq.s32.totalorder %s25, 0
      %p115 = por %p113, %p114
      %s117 = sadd.s32 %s116, 1
      %p120 = scmp.eq.s32.totalorder %s19, 1
      %p121 = scmp.ne.s32.totalorder %s116, %s118
      %p122 = scmp.eq.s32.totalorder %s19, 0
      %p123 = por %p121, %p122
      %p124 = scmp.ne.s32.totalorder %s116, %s118
      %p125 = scmp.eq.s32.totalorder %s24, 1
      %p126 = por %p124, %p125
      %p127 = scmp.ne.s32.totalorder %s118, %s119
      %p128 = scmp.eq.s32.totalorder %s24, 0
      %p129 = por %p127, %p128
      %p130 = scmp.ne.s32.totalorder %s118, %s119
      %p131 = scmp.eq.s32.totalorder %s25, 1
      %p132 = por %p130, %p131
      %p134 = scmp.ne.s32.totalorder %s119, %s133
      %p135 = scmp.eq.s32.totalorder %s25, 0
      %p136 = por %p134, %p135
      %s137 = ssub.s32 %s19, %s26
      %p138 = scmp.eq.s32.totalorder %s137, 0
      %s140 = sadd.s32 %s139, 1
      %s141 = scalar_select %p138, %s139, %s140
      %p144 = pneg %p138
      %p145 = scmp.eq.s32.totalorder %s19, 1
      %p146 = por %p144, %p145
      %p147 = scmp.ne.s32.totalorder %s139, %s142
      %p148 = scmp.eq.s32.totalorder %s19, 0
      %p149 = por %p147, %p148
      %p150 = scmp.ne.s32.totalorder %s139, %s142
      %p151 = scmp.eq.s32.totalorder %s24, 1
      %p152 = por %p150, %p151
      %p153 = scmp.ne.s32.totalorder %s142, %s143
      %p154 = scmp.eq.s32.totalorder %s24, 0
      %p155 = por %p153, %p154
      %p156 = scmp.ne.s32.totalorder %s142, %s143
      %p157 = scmp.eq.s32.totalorder %s25, 1
      %p158 = por %p156, %p157
      %p160 = scmp.ne.s32.totalorder %s143, %s159
      %p161 = scmp.eq.s32.totalorder %s25, 0
      %p162 = por %p160, %p161
      %p163 = scmp.le.s32.totalorder 1, %s19
      %p164 = scmp.lt.s32.totalorder %s19, 3
      %p165 = pnand %p163, %p164
      %p166 = pneg %p165
      // Predicated region
      $region9: #{tpu_custom_call.1} parent=5 // pred_check
        _
      $region10: #{tpu_custom_call.1} parent=5 // pred_check_branch
        %168 = sbr.rel (%p165) target = $region12
      $region11: #{tpu_custom_call.1} parent=5 // pred_region
        %s169 = ssub.s32 %s19, 1
        // Predicated region
        $region13: #{tpu_custom_call.1} parent=11 // pred_check
          %p170 = pneg %p66
        $region14: #{tpu_custom_call.1} parent=11 // pred_check_branch
          %172 = sbr.rel (%p170) target = $region16
        $region15: #{tpu_custom_call.1} parent=11 // pred_region
          %s174 = ssub.s32 4096, 4096
          %175 = vsyncadd [#allocation6], %s174
          %s176 = sshll.u32 [#allocation5], 4
          %s177 = int_to_ptr.vmem [resolvable:$true] %s176
          %182 = dma.hbm_to_vmem [thread:$0]  %s1, 4096, %s177, [#allocation6], 256, 256, 16
        $region16: #{tpu_custom_call.1} parent=11 // pred_fallthru
          _
        // Predicated region
        $region17: #{tpu_custom_call.1} parent=11 // pred_check
          %p183 = pneg %p87
        $region18: #{tpu_custom_call.1} parent=11 // pred_check_branch
          %185 = sbr.rel (%p183) target = $region20
        $region19: #{tpu_custom_call.1} parent=11 // pred_region
          %s187 = ssub.s32 4096, 4096
          %188 = vsyncadd [#allocation6], %s187
          %s189 = sshll.u32 [#allocation7], 4
          %s190 = int_to_ptr.vmem [resolvable:$true] %s189
          %195 = dma.hbm_to_vmem [thread:$0]  %s2, 4096, %s190, [#allocation6], 64, 64, 4
        $region20: #{tpu_custom_call.1} parent=11 // pred_fallthru
          _
        // Predicated region
        $region21: #{tpu_custom_call.1} parent=11 // pred_check
          %p196 = pneg %p108
        $region22: #{tpu_custom_call.1} parent=11 // pred_check_branch
          %198 = sbr.rel (%p196) target = $region24
        $region23: #{tpu_custom_call.1} parent=11 // pred_region
          %s200 = ssub.s32 1024, 1024
          %201 = vsyncadd [#allocation9], %s200
          %s202 = sshll.u32 [#allocation8], 4
          %s203 = int_to_ptr.vmem [resolvable:$true] %s202
          %208 = dma.hbm_to_vmem [thread:$0]  %s3, 1024, %s203, [#allocation9], 64, 64, 4
        $region24: #{tpu_custom_call.1} parent=11 // pred_fallthru
          _
        // Predicated region
        $region25: #{tpu_custom_call.1} parent=11 // pred_check
          %p209 = pneg %p129
        $region26: #{tpu_custom_call.1} parent=11 // pred_check_branch
          %211 = sbr.rel (%p209) target = $region28
        $region27: #{tpu_custom_call.1} parent=11 // pred_region
          _
        $region28: #{tpu_custom_call.1} parent=11 // pred_fallthru
          _
      $region12: #{tpu_custom_call.1} parent=5 // pred_fallthru
        _
      %p212 = scmp.lt.s32.totalorder %s19, 2
      // Predicated region
      $region29: #{tpu_custom_call.1} parent=5 // pred_check
        %p213 = pneg %p212
      $region30: #{tpu_custom_call.1} parent=5 // pred_check_branch
        %215 = sbr.rel (%p213) target = $region32
      $region31: #{tpu_custom_call.1} parent=5 // pred_region
        // Predicated region
        $region33: #{tpu_custom_call.1} parent=31 // pred_check
          %p216 = pneg %p39
        $region34: #{tpu_custom_call.1} parent=31 // pred_check_branch
          %218 = sbr.rel (%p216) target = $region36
        $region35: #{tpu_custom_call.1} parent=31 // pred_region
          %s219 = sand.u32 %s29, 1
          %s220 = scalar_lea.sflag [#allocation3], %s219
          %s221 = sand.u32 %s29, 1
          %s222 = smul.addr %s221, 256
          %s223 = scalar_lea.vmem [#allocation2], %s222
          %s224 = smul.u32 32, %s19
          %s226 = ssub.s32 4096, 4096
          %227 = vsyncadd %s220, %s226
          %s228 = smul.addr %s224, 128
          %s229 = scalar_lea.hbm %s0, %s228
          %s230 = sshll.u32 %s223, 4
          %s231 = int_to_ptr.vmem [resolvable:$true] %s230
          %236 = dma.hbm_to_vmem [thread:$0]  %s229, 4096, %s231, %s220, 128, 128, 8
        $region36: #{tpu_custom_call.1} parent=31 // pred_fallthru
          _
      $region32: #{tpu_custom_call.1} parent=5 // pred_fallthru
        _
      %p237 = scmp.le.s32.totalorder 1, %s19
      %p238 = scmp.lt.s32.totalorder %s19, 3
      %p239 = pnand %p237, %p238
      %p240 = pneg %p239
      // Predicated region
      $region37: #{tpu_custom_call.1} parent=5 // pred_check
        _
      $region38: #{tpu_custom_call.1} parent=5 // pred_check_branch
        %242 = sbr.rel (%p239) target = $region40
      $region39: #{tpu_custom_call.1} parent=5 // pred_region
        %s243 = ssub.s32 %s19, 1
        %s244 = sand.u32 %s32, 1
        %s245 = scalar_lea.sflag [#allocation3], %s244
        %s246 = sand.u32 %s32, 1
        %s247 = smul.addr %s246, 256
        %s248 = scalar_lea.vmem [#allocation2], %s247
        // Predicated region
        $region41: #{tpu_custom_call.1} parent=39 // pred_check
          %p249 = pneg %p45
        $region42: #{tpu_custom_call.1} parent=39 // pred_check_branch
          %251 = sbr.rel (%p249) target = $region44
        $region43: #{tpu_custom_call.1} parent=39 // pred_region
          %252 = dma.done %s245, 4096
        $region44: #{tpu_custom_call.1} parent=39 // pred_fallthru
          _
        // Predicated region
        $region45: #{tpu_custom_call.1} parent=39 // pred_check
          %p253 = pneg %p66
        $region46: #{tpu_custom_call.1} parent=39 // pred_check_branch
          %255 = sbr.rel (%p253) target = $region48
        $region47: #{tpu_custom_call.1} parent=39 // pred_region
          %256 = dma.done [#allocation6], 4096
        $region48: #{tpu_custom_call.1} parent=39 // pred_fallthru
          _
        // Predicated region
        $region49: #{tpu_custom_call.1} parent=39 // pred_check
          %p257 = pneg %p87
        $region50: #{tpu_custom_call.1} parent=39 // pred_check_branch
          %259 = sbr.rel (%p257) target = $region52
        $region51: #{tpu_custom_call.1} parent=39 // pred_region
          %260 = dma.done [#allocation6], 4096
        $region52: #{tpu_custom_call.1} parent=39 // pred_fallthru
          _
        // Predicated region
        $region53: #{tpu_custom_call.1} parent=39 // pred_check
          %p261 = pneg %p108
        $region54: #{tpu_custom_call.1} parent=39 // pred_check_branch
          %263 = sbr.rel (%p261) target = $region56
        $region55: #{tpu_custom_call.1} parent=39 // pred_region
          %264 = dma.done [#allocation9], 1024
        $region56: #{tpu_custom_call.1} parent=39 // pred_fallthru
          _
        %s265 = sand.u32 %s32, 1
        %s266 = scalar_lea.sflag [#allocation3], %s265
        %s267 = sand.u32 %s32, 1
        %s268 = smul.addr %s267, 256
        %s269 = scalar_lea.vmem [#allocation2], %s268
        %p270 = pneg %p45
        %p271 = pneg %p42
        %p272 = pneg %p66
        %p273 = pneg %p63
        %p274 = pneg %p87
        %p275 = pneg %p84
        %p276 = pneg %p108
        %p277 = pneg %p105
        %p278 = pneg %p129
        %p279 = pneg %p126
        %p280 = pneg %p155
        %p281 = pneg %p152
        %s282 = sand.u32 %s142, 1
        %s283 = scalar_lea.sflag [#allocation4], %s282
        %s284 = sand.u32 %s142, 1
        %s285 = smul.addr %s284, 256
        %s286 = scalar_lea.vmem [#allocation10], %s285
        %s287 = smul.u32 32, %s24
        %s288 = smul.u32 32, %s24
        %v290 = vld [vmem:[%s248] sm:$0xff]
        %v291 = vld [vmem:[%s248 + $0x8] sm:$0xff]
        %v292 = vld [vmem:[%s248 + $0x10] sm:$0xff]
        %v293 = vld [vmem:[%s248 + $0x18] sm:$0xff]
        %v294 = vld [vmem:[%s248 + $0x20] sm:$0xff]
        %v295 = vld [vmem:[%s248 + $0x28] sm:$0xff]
        %v296 = vld [vmem:[%s248 + $0x30] sm:$0xff]
        %v297 = vld [vmem:[%s248 + $0x38] sm:$0xff]
        %v298 = vld [vmem:[%s248 + $0x40] sm:$0xff]
        %v299 = vld [vmem:[%s248 + $0x48] sm:$0xff]
        %v300 = vld [vmem:[%s248 + $0x50] sm:$0xff]
        %v301 = vld [vmem:[%s248 + $0x58] sm:$0xff]
        %v302 = vld [vmem:[%s248 + $0x60] sm:$0xff]
        %v303 = vld [vmem:[%s248 + $0x68] sm:$0xff]
        %v304 = vld [vmem:[%s248 + $0x70] sm:$0xff]
        %v305 = vld [vmem:[%s248 + $0x78] sm:$0xff]
        %v306 = vld [vmem:[%s248 + $0x80] sm:$0xff]
        %v307 = vld [vmem:[%s248 + $0x88] sm:$0xff]
        %v308 = vld [vmem:[%s248 + $0x90] sm:$0xff]
        %v309 = vld [vmem:[%s248 + $0x98] sm:$0xff]
        %v310 = vld [vmem:[%s248 + $0xa0] sm:$0xff]
        %v311 = vld [vmem:[%s248 + $0xa8] sm:$0xff]
        %v312 = vld [vmem:[%s248 + $0xb0] sm:$0xff]
        %v313 = vld [vmem:[%s248 + $0xb8] sm:$0xff]
        %v314 = vld [vmem:[%s248 + $0xc0] sm:$0xff]
        %v315 = vld [vmem:[%s248 + $0xc8] sm:$0xff]
        %v316 = vld [vmem:[%s248 + $0xd0] sm:$0xff]
        %v317 = vld [vmem:[%s248 + $0xd8] sm:$0xff]
        %v318 = vld [vmem:[%s248 + $0xe0] sm:$0xff]
        %v319 = vld [vmem:[%s248 + $0xe8] sm:$0xff]
        %v320 = vld [vmem:[%s248 + $0xf0] sm:$0xff]
        %v321 = vld [vmem:[%s248 + $0xf8] sm:$0xff]
        %v322 = vpack.c.bf16 %v291, %v290
        %v323 = vpack.c.bf16 %v293, %v292
        %v324 = vpack.c.bf16 %v295, %v294
        %v325 = vpack.c.bf16 %v297, %v296
        %v326 = vpack.c.bf16 %v299, %v298
        %v327 = vpack.c.bf16 %v301, %v300
        %v328 = vpack.c.bf16 %v303, %v302
        %v329 = vpack.c.bf16 %v305, %v304
        %v330 = vpack.c.bf16 %v307, %v306
        %v331 = vpack.c.bf16 %v309, %v308
        %v332 = vpack.c.bf16 %v311, %v310
        %v333 = vpack.c.bf16 %v313, %v312
        %v334 = vpack.c.bf16 %v315, %v314
        %v335 = vpack.c.bf16 %v317, %v316
        %v336 = vpack.c.bf16 %v319, %v318
        %v337 = vpack.c.bf16 %v321, %v320
        %v338 = vld [vmem:[#allocation5] sm:$0xff]
        %v339 = vld [vmem:[#allocation5 + $0x8] sm:$0xff]
        %v340 = vld [vmem:[#allocation5 + $0x10] sm:$0xff]
        %v341 = vld [vmem:[#allocation5 + $0x18] sm:$0xff]
        %v342 = vld [vmem:[#allocation5 + $0x20] sm:$0xff]
        %v343 = vld [vmem:[#allocation5 + $0x28] sm:$0xff]
        %v344 = vld [vmem:[#allocation5 + $0x30] sm:$0xff]
        %v345 = vld [vmem:[#allocation5 + $0x38] sm:$0xff]
        %v346 = vld [vmem:[#allocation5 + $0x40] sm:$0xff]
        %v347 = vld [vmem:[#allocation5 + $0x48] sm:$0xff]
        %v348 = vld [vmem:[#allocation5 + $0x50] sm:$0xff]
        %v349 = vld [vmem:[#allocation5 + $0x58] sm:$0xff]
        %v350 = vld [vmem:[#allocation5 + $0x60] sm:$0xff]
        %v351 = vld [vmem:[#allocation5 + $0x68] sm:$0xff]
        %v352 = vld [vmem:[#allocation5 + $0x70] sm:$0xff]
        %v353 = vld [vmem:[#allocation5 + $0x78] sm:$0xff]
        %v354 = vld [vmem:[#allocation5 + $0x80] sm:$0xff]
        %v355 = vld [vmem:[#allocation5 + $0x88] sm:$0xff]
        %v356 = vld [vmem:[#allocation5 + $0x90] sm:$0xff]
        %v357 = vld [vmem:[#allocation5 + $0x98] sm:$0xff]
        %v358 = vld [vmem:[#allocation5 + $0xa0] sm:$0xff]
        %v359 = vld [vmem:[#allocation5 + $0xa8] sm:$0xff]
        %v360 = vld [vmem:[#allocation5 + $0xb0] sm:$0xff]
        %v361 = vld [vmem:[#allocation5 + $0xb8] sm:$0xff]
        %v362 = vld [vmem:[#allocation5 + $0xc0] sm:$0xff]
        %v363 = vld [vmem:[#allocation5 + $0xc8] sm:$0xff]
        %v364 = vld [vmem:[#allocation5 + $0xd0] sm:$0xff]
        %v365 = vld [vmem:[#allocation5 + $0xd8] sm:$0xff]
        %v366 = vld [vmem:[#allocation5 + $0xe0] sm:$0xff]
        %v367 = vld [vmem:[#allocation5 + $0xe8] sm:$0xff]
        %v368 = vld [vmem:[#allocation5 + $0xf0] sm:$0xff]
        %v369 = vld [vmem:[#allocation5 + $0xf8] sm:$0xff]
        %v402 = vunpack.c.l.b16 %v338
        %v403 = vunpack.c.h.b16 %v338
        %v404 = vunpack.c.l.b16 %v339
        %v405 = vunpack.c.h.b16 %v339
        %v406 = vunpack.c.l.b16 %v340
        %v407 = vunpack.c.h.b16 %v340
        %v408 = vunpack.c.l.b16 %v341
        %v409 = vunpack.c.h.b16 %v341
        %v410 = vunpack.c.l.b16 %v342
        %v411 = vunpack.c.h.b16 %v342
        %v412 = vunpack.c.l.b16 %v343
        %v413 = vunpack.c.h.b16 %v343
        %v414 = vunpack.c.l.b16 %v344
        %v415 = vunpack.c.h.b16 %v344
        %v416 = vunpack.c.l.b16 %v345
        %v417 = vunpack.c.h.b16 %v345
        %v418 = vunpack.c.l.b16 %v346
        %v419 = vunpack.c.h.b16 %v346
        %v420 = vunpack.c.l.b16 %v347
        %v421 = vunpack.c.h.b16 %v347
        %v422 = vunpack.c.l.b16 %v348
        %v423 = vunpack.c.h.b16 %v348
        %v424 = vunpack.c.l.b16 %v349
        %v425 = vunpack.c.h.b16 %v349
        %v426 = vunpack.c.l.b16 %v350
        %v427 = vunpack.c.h.b16 %v350
        %v428 = vunpack.c.l.b16 %v351
        %v429 = vunpack.c.h.b16 %v351
        %v430 = vunpack.c.l.b16 %v352
        %v431 = vunpack.c.h.b16 %v352
        %v432 = vunpack.c.l.b16 %v353
        %v433 = vunpack.c.h.b16 %v353
        %v434 = vunpack.c.l.b16 %v354
        %v435 = vunpack.c.h.b16 %v354
        %v436 = vunpack.c.l.b16 %v355
        %v437 = vunpack.c.h.b16 %v355
        %v438 = vunpack.c.l.b16 %v356
        %v439 = vunpack.c.h.b16 %v356
        %v440 = vunpack.c.l.b16 %v357
        %v441 = vunpack.c.h.b16 %v357
        %v442 = vunpack.c.l.b16 %v358
        %v443 = vunpack.c.h.b16 %v358
        %v444 = vunpack.c.l.b16 %v359
        %v445 = vunpack.c.h.b16 %v359
        %v446 = vunpack.c.l.b16 %v360
        %v447 = vunpack.c.h.b16 %v360
        %v448 = vunpack.c.l.b16 %v361
        %v449 = vunpack.c.h.b16 %v361
        %v450 = vunpack.c.l.b16 %v362
        %v451 = vunpack.c.h.b16 %v362
        %v452 = vunpack.c.l.b16 %v363
        %v453 = vunpack.c.h.b16 %v363
        %v454 = vunpack.c.l.b16 %v364
        %v455 = vunpack.c.h.b16 %v364
        %v456 = vunpack.c.l.b16 %v365
        %v457 = vunpack.c.h.b16 %v365
        %v458 = vunpack.c.l.b16 %v366
        %v459 = vunpack.c.h.b16 %v366
        %v460 = vunpack.c.l.b16 %v367
        %v461 = vunpack.c.h.b16 %v367
        %v462 = vunpack.c.l.b16 %v368
        %v463 = vunpack.c.h.b16 %v368
        %v464 = vunpack.c.l.b16 %v369
        %v465 = vunpack.c.h.b16 %v369
        %v466 = vpack.c.b16 %v406, %v402
        %v467 = vpack.c.b16 %v407, %v403
        %v468 = vpack.c.b16 %v408, %v404
        %v469 = vpack.c.b16 %v409, %v405
        %v470 = vpack.c.b16 %v414, %v410
        %v471 = vpack.c.b16 %v415, %v411
        %v472 = vpack.c.b16 %v416, %v412
        %v473 = vpack.c.b16 %v417, %v413
        %v474 = vpack.c.b16 %v422, %v418
        %v475 = vpack.c.b16 %v423, %v419
        %v476 = vpack.c.b16 %v424, %v420
        %v477 = vpack.c.b16 %v425, %v421
        %v478 = vpack.c.b16 %v430, %v426
        %v479 = vpack.c.b16 %v431, %v427
        %v480 = vpack.c.b16 %v432, %v428
        %v481 = vpack.c.b16 %v433, %v429
        %v482 = vpack.c.b16 %v438, %v434
        %v483 = vpack.c.b16 %v439, %v435
        %v484 = vpack.c.b16 %v440, %v436
        %v485 = vpack.c.b16 %v441, %v437
        %v486 = vpack.c.b16 %v446, %v442
        %v487 = vpack.c.b16 %v447, %v443
        %v488 = vpack.c.b16 %v448, %v444
        %v489 = vpack.c.b16 %v449, %v445
        %v490 = vpack.c.b16 %v454, %v450
        %v491 = vpack.c.b16 %v455, %v451
        %v492 = vpack.c.b16 %v456, %v452
        %v493 = vpack.c.b16 %v457, %v453
        %v494 = vpack.c.b16 %v462, %v458
        %v495 = vpack.c.b16 %v463, %v459
        %v496 = vpack.c.b16 %v464, %v460
        %v497 = vpack.c.b16 %v465, %v461
        %530 = vmatprep.subr.bf16.mxu0 %v495
        %531 = vmatpush1.bf16.msra.mxu0 %v494
        %532 = vmatprep.subr.bf16.mxu0 %v491
        %533 = vmatpush1.bf16.msra.mxu0 %v490
        %534 = vmatprep.subr.bf16.mxu0 %v487
        %535 = vmatpush1.bf16.msra.mxu0 %v486
        %536 = vmatprep.subr.bf16.mxu0 %v483
        %537 = vmatpush1.bf16.msra.mxu0 %v482
        %538 = vmatprep.subr.bf16.mxu0 %v479
        %539 = vmatpush1.bf16.msra.mxu0 %v478
        %540 = vmatprep.subr.bf16.mxu0 %v475
        %541 = vmatpush1.bf16.msra.mxu0 %v474
        %542 = vmatprep.subr.bf16.mxu0 %v471
        %543 = vmatpush1.bf16.msra.mxu0 %v470
        %544 = vmatprep.subr.bf16.mxu0 %v467
        %545 = vmatpush1.bf16.msra.mxu0 %v466
        %546 = vmatprep.subr.bf16.mxu0 0
        %547 = vmatpush2.bf16.msra.mxu0 0
        %548 = vmatprep.subr.bf16.mxu0 0
        %549 = vmatpush2.bf16.msra.mxu0 0
        %550 = vmatprep.subr.bf16.mxu0 0
        %551 = vmatpush2.bf16.msra.mxu0 0
        %552 = vmatprep.subr.bf16.mxu0 0
        %553 = vmatpush2.bf16.msra.mxu0 0
        %554 = vmatprep.subr.bf16.mxu0 0
        %555 = vmatpush2.bf16.msra.mxu0 0
        %556 = vmatprep.subr.bf16.mxu0 0
        %557 = vmatpush2.bf16.msra.mxu0 0
        %558 = vmatprep.subr.bf16.mxu0 0
        %559 = vmatpush2.bf16.msra.mxu0 0
        %560 = vmatprep.subr.bf16.mxu0 0
        %561 = vmatpush2.bf16.msra.mxu0 0
        %562 = vmatprep.mubr.bf16.mxu0 0
        %563 = vmatmul.mubr.bf16.gmra.mxu0 %v322
        %v564 = vpop.f32.mrf.mxu0
        %v565 = vadd.f32 0.0, %v564
        %v566 = vpop.f32.mrf.mxu0
        %v567 = vadd.f32 0.0, %v566
        %v568 = vpop.f32.mrf.mxu0
        %v569 = vadd.f32 0.0, %v568
        %v570 = vpop.f32.mrf.mxu0
        %v571 = vadd.f32 0.0, %v570
        %572 = vmatprep.mubr.bf16.mxu0 0
        %573 = vmatmul.mubr.bf16.gmra.mxu0 %v323
        %v574 = vpop.f32.mrf.mxu0
        %v575 = vadd.f32 0.0, %v574
        %v576 = vpop.f32.mrf.mxu0
        %v577 = vadd.f32 0.0, %v576
        %v578 = vpop.f32.mrf.mxu0
        %v579 = vadd.f32 0.0, %v578
        %v580 = vpop.f32.mrf.mxu0
        %v581 = vadd.f32 0.0, %v580
        %582 = vmatprep.mubr.bf16.mxu0 0
        %583 = vmatmul.mubr.bf16.gmra.mxu0 %v324
        %v584 = vpop.f32.mrf.mxu0
        %v585 = vadd.f32 0.0, %v584
        %v586 = vpop.f32.mrf.mxu0
        %v587 = vadd.f32 0.0, %v586
        %v588 = vpop.f32.mrf.mxu0
        %v589 = vadd.f32 0.0, %v588
        %v590 = vpop.f32.mrf.mxu0
        %v591 = vadd.f32 0.0, %v590
        %592 = vmatprep.mubr.bf16.mxu0 0
        %593 = vmatmul.mubr.bf16.gmra.mxu0 %v325
        %v594 = vpop.f32.mrf.mxu0
        %v595 = vadd.f32 0.0, %v594
        %v596 = vpop.f32.mrf.mxu0
        %v597 = vadd.f32 0.0, %v596
        %v598 = vpop.f32.mrf.mxu0
        %v599 = vadd.f32 0.0, %v598
        %v600 = vpop.f32.mrf.mxu0
        %v601 = vadd.f32 0.0, %v600
        %602 = vmatprep.mubr.bf16.mxu0 0
        %603 = vmatmul.mubr.bf16.gmra.mxu0 %v326
        %v604 = vpop.f32.mrf.mxu0
        %v605 = vadd.f32 0.0, %v604
        %v606 = vpop.f32.mrf.mxu0
        %v607 = vadd.f32 0.0, %v606
        %v608 = vpop.f32.mrf.mxu0
        %v609 = vadd.f32 0.0, %v608
        %v610 = vpop.f32.mrf.mxu0
        %v611 = vadd.f32 0.0, %v610
        %612 = vmatprep.mubr.bf16.mxu0 0
        %613 = vmatmul.mubr.bf16.gmra.mxu0 %v327
        %v614 = vpop.f32.mrf.mxu0
        %v615 = vadd.f32 0.0, %v614
        %v616 = vpop.f32.mrf.mxu0
        %v617 = vadd.f32 0.0, %v616
        %v618 = vpop.f32.mrf.mxu0
        %v619 = vadd.f32 0.0, %v618
        %v620 = vpop.f32.mrf.mxu0
        %v621 = vadd.f32 0.0, %v620
        %622 = vmatprep.mubr.bf16.mxu0 0
        %623 = vmatmul.mubr.bf16.gmra.mxu0 %v328
        %v624 = vpop.f32.mrf.mxu0
        %v625 = vadd.f32 0.0, %v624
        %v626 = vpop.f32.mrf.mxu0
        %v627 = vadd.f32 0.0, %v626
        %v628 = vpop.f32.mrf.mxu0
        %v629 = vadd.f32 0.0, %v628
        %v630 = vpop.f32.mrf.mxu0
        %v631 = vadd.f32 0.0, %v630
        %632 = vmatprep.mubr.bf16.mxu0 0
        %633 = vmatmul.mubr.bf16.gmra.mxu0 %v329
        %v634 = vpop.f32.mrf.mxu0
        %v635 = vadd.f32 0.0, %v634
        %v636 = vpop.f32.mrf.mxu0
        %v637 = vadd.f32 0.0, %v636
        %v638 = vpop.f32.mrf.mxu0
        %v639 = vadd.f32 0.0, %v638
        %v640 = vpop.f32.mrf.mxu0
        %v641 = vadd.f32 0.0, %v640
        %642 = vmatprep.mubr.bf16.mxu0 0
        %643 = vmatmul.mubr.bf16.gmra.mxu0 %v330
        %v644 = vpop.f32.mrf.mxu0
        %v645 = vadd.f32 0.0, %v644
        %v646 = vpop.f32.mrf.mxu0
        %v647 = vadd.f32 0.0, %v646
        %v648 = vpop.f32.mrf.mxu0
        %v649 = vadd.f32 0.0, %v648
        %v650 = vpop.f32.mrf.mxu0
        %v651 = vadd.f32 0.0, %v650
        %652 = vmatprep.mubr.bf16.mxu0 0
        %653 = vmatmul.mubr.bf16.gmra.mxu0 %v331
        %v654 = vpop.f32.mrf.mxu0
        %v655 = vadd.f32 0.0, %v654
        %v656 = vpop.f32.mrf.mxu0
        %v657 = vadd.f32 0.0, %v656
        %v658 = vpop.f32.mrf.mxu0
        %v659 = vadd.f32 0.0, %v658
        %v660 = vpop.f32.mrf.mxu0
        %v661 = vadd.f32 0.0, %v660
        %662 = vmatprep.mubr.bf16.mxu0 0
        %663 = vmatmul.mubr.bf16.gmra.mxu0 %v332
        %v664 = vpop.f32.mrf.mxu0
        %v665 = vadd.f32 0.0, %v664
        %v666 = vpop.f32.mrf.mxu0
        %v667 = vadd.f32 0.0, %v666
        %v668 = vpop.f32.mrf.mxu0
        %v669 = vadd.f32 0.0, %v668
        %v670 = vpop.f32.mrf.mxu0
        %v671 = vadd.f32 0.0, %v670
        %672 = vmatprep.mubr.bf16.mxu0 0
        %673 = vmatmul.mubr.bf16.gmra.mxu0 %v333
        %v674 = vpop.f32.mrf.mxu0
        %v675 = vadd.f32 0.0, %v674
        %v676 = vpop.f32.mrf.mxu0
        %v677 = vadd.f32 0.0, %v676
        %v678 = vpop.f32.mrf.mxu0
        %v679 = vadd.f32 0.0, %v678
        %v680 = vpop.f32.mrf.mxu0
        %v681 = vadd.f32 0.0, %v680
        %682 = vmatprep.mubr.bf16.mxu0 0
        %683 = vmatmul.mubr.bf16.gmra.mxu0 %v334
        %v684 = vpop.f32.mrf.mxu0
        %v685 = vadd.f32 0.0, %v684
        %v686 = vpop.f32.mrf.mxu0
        %v687 = vadd.f32 0.0, %v686
        %v688 = vpop.f32.mrf.mxu0
        %v689 = vadd.f32 0.0, %v688
        %v690 = vpop.f32.mrf.mxu0
        %v691 = vadd.f32 0.0, %v690
        %692 = vmatprep.mubr.bf16.mxu0 0
        %693 = vmatmul.mubr.bf16.gmra.mxu0 %v335
        %v694 = vpop.f32.mrf.mxu0
        %v695 = vadd.f32 0.0, %v694
        %v696 = vpop.f32.mrf.mxu0
        %v697 = vadd.f32 0.0, %v696
        %v698 = vpop.f32.mrf.mxu0
        %v699 = vadd.f32 0.0, %v698
        %v700 = vpop.f32.mrf.mxu0
        %v701 = vadd.f32 0.0, %v700
        %702 = vmatprep.mubr.bf16.mxu0 0
        %703 = vmatmul.mubr.bf16.gmra.mxu0 %v336
        %v704 = vpop.f32.mrf.mxu0
        %v705 = vadd.f32 0.0, %v704
        %v706 = vpop.f32.mrf.mxu0
        %v707 = vadd.f32 0.0, %v706
        %v708 = vpop.f32.mrf.mxu0
        %v709 = vadd.f32 0.0, %v708
        %v710 = vpop.f32.mrf.mxu0
        %v711 = vadd.f32 0.0, %v710
        %712 = vmatprep.mubr.bf16.mxu0 0
        %713 = vmatmul.mubr.bf16.gmra.mxu0 %v337
        %v714 = vpop.f32.mrf.mxu0
        %v715 = vadd.f32 0.0, %v714
        %v716 = vpop.f32.mrf.mxu0
        %v717 = vadd.f32 0.0, %v716
        %v718 = vpop.f32.mrf.mxu0
        %v719 = vadd.f32 0.0, %v718
        %v720 = vpop.f32.mrf.mxu0
        %v721 = vadd.f32 0.0, %v720
        %722 = vdwg.mxu0
        %723 = vmatprep.subr.bf16.mxu0 %v497
        %724 = vmatpush1.bf16.msra.mxu0 %v496
        %725 = vmatprep.subr.bf16.mxu0 %v493
        %726 = vmatpush1.bf16.msra.mxu0 %v492
        %727 = vmatprep.subr.bf16.mxu0 %v489
        %728 = vmatpush1.bf16.msra.mxu0 %v488
        %729 = vmatprep.subr.bf16.mxu0 %v485
        %730 = vmatpush1.bf16.msra.mxu0 %v484
        %731 = vmatprep.subr.bf16.mxu0 %v481
        %732 = vmatpush1.bf16.msra.mxu0 %v480
        %733 = vmatprep.subr.bf16.mxu0 %v477
        %734 = vmatpush1.bf16.msra.mxu0 %v476
        %735 = vmatprep.subr.bf16.mxu0 %v473
        %736 = vmatpush1.bf16.msra.mxu0 %v472
        %737 = vmatprep.subr.bf16.mxu0 %v469
        %738 = vmatpush1.bf16.msra.mxu0 %v468
        %739 = vmatprep.subr.bf16.mxu0 0
        %740 = vmatpush2.bf16.msra.mxu0 0
        %741 = vmatprep.subr.bf16.mxu0 0
        %742 = vmatpush2.bf16.msra.mxu0 0
        %743 = vmatprep.subr.bf16.mxu0 0
        %744 = vmatpush2.bf16.msra.mxu0 0
        %745 = vmatprep.subr.bf16.mxu0 0
        %746 = vmatpush2.bf16.msra.mxu0 0
        %747 = vmatprep.subr.bf16.mxu0 0
        %748 = vmatpush2.bf16.msra.mxu0 0
        %749 = vmatprep.subr.bf16.mxu0 0
        %750 = vmatpush2.bf16.msra.mxu0 0
        %751 = vmatprep.subr.bf16.mxu0 0
        %752 = vmatpush2.bf16.msra.mxu0 0
        %753 = vmatprep.subr.bf16.mxu0 0
        %754 = vmatpush2.bf16.msra.mxu0 0
        %755 = vmatprep.mubr.bf16.mxu0 0
        %756 = vmatmul.mubr.bf16.gmra.mxu0 %v322
        %v757 = vpop.f32.mrf.mxu0
        %v758 = vadd.f32 0.0, %v757
        %v759 = vpop.f32.mrf.mxu0
        %v760 = vadd.f32 0.0, %v759
        %v761 = vpop.f32.mrf.mxu0
        %v762 = vadd.f32 0.0, %v761
        %v763 = vpop.f32.mrf.mxu0
        %v764 = vadd.f32 0.0, %v763
        %765 = vmatprep.mubr.bf16.mxu0 0
        %766 = vmatmul.mubr.bf16.gmra.mxu0 %v323
        %v767 = vpop.f32.mrf.mxu0
        %v768 = vadd.f32 0.0, %v767
        %v769 = vpop.f32.mrf.mxu0
        %v770 = vadd.f32 0.0, %v769
        %v771 = vpop.f32.mrf.mxu0
        %v772 = vadd.f32 0.0, %v771
        %v773 = vpop.f32.mrf.mxu0
        %v774 = vadd.f32 0.0, %v773
        %775 = vmatprep.mubr.bf16.mxu0 0
        %776 = vmatmul.mubr.bf16.gmra.mxu0 %v324
        %v777 = vpop.f32.mrf.mxu0
        %v778 = vadd.f32 0.0, %v777
        %v779 = vpop.f32.mrf.mxu0
        %v780 = vadd.f32 0.0, %v779
        %v781 = vpop.f32.mrf.mxu0
        %v782 = vadd.f32 0.0, %v781
        %v783 = vpop.f32.mrf.mxu0
        %v784 = vadd.f32 0.0, %v783
        %785 = vmatprep.mubr.bf16.mxu0 0
        %786 = vmatmul.mubr.bf16.gmra.mxu0 %v325
        %v787 = vpop.f32.mrf.mxu0
        %v788 = vadd.f32 0.0, %v787
        %v789 = vpop.f32.mrf.mxu0
        %v790 = vadd.f32 0.0, %v789
        %v791 = vpop.f32.mrf.mxu0
        %v792 = vadd.f32 0.0, %v791
        %v793 = vpop.f32.mrf.mxu0
        %v794 = vadd.f32 0.0, %v793
        %795 = vmatprep.mubr.bf16.mxu0 0
        %796 = vmatmul.mubr.bf16.gmra.mxu0 %v326
        %v797 = vpop.f32.mrf.mxu0
        %v798 = vadd.f32 0.0, %v797
        %v799 = vpop.f32.mrf.mxu0
        %v800 = vadd.f32 0.0, %v799
        %v801 = vpop.f32.mrf.mxu0
        %v802 = vadd.f32 0.0, %v801
        %v803 = vpop.f32.mrf.mxu0
        %v804 = vadd.f32 0.0, %v803
        %805 = vmatprep.mubr.bf16.mxu0 0
        %806 = vmatmul.mubr.bf16.gmra.mxu0 %v327
        %v807 = vpop.f32.mrf.mxu0
        %v808 = vadd.f32 0.0, %v807
        %v809 = vpop.f32.mrf.mxu0
        %v810 = vadd.f32 0.0, %v809
        %v811 = vpop.f32.mrf.mxu0
        %v812 = vadd.f32 0.0, %v811
        %v813 = vpop.f32.mrf.mxu0
        %v814 = vadd.f32 0.0, %v813
        %815 = vmatprep.mubr.bf16.mxu0 0
        %816 = vmatmul.mubr.bf16.gmra.mxu0 %v328
        %v817 = vpop.f32.mrf.mxu0
        %v818 = vadd.f32 0.0, %v817
        %v819 = vpop.f32.mrf.mxu0
        %v820 = vadd.f32 0.0, %v819
        %v821 = vpop.f32.mrf.mxu0
        %v822 = vadd.f32 0.0, %v821
        %v823 = vpop.f32.mrf.mxu0
        %v824 = vadd.f32 0.0, %v823
        %825 = vmatprep.mubr.bf16.mxu0 0
        %826 = vmatmul.mubr.bf16.gmra.mxu0 %v329
        %v827 = vpop.f32.mrf.mxu0
        %v828 = vadd.f32 0.0, %v827
        %v829 = vpop.f32.mrf.mxu0
        %v830 = vadd.f32 0.0, %v829
        %v831 = vpop.f32.mrf.mxu0
        %v832 = vadd.f32 0.0, %v831
        %v833 = vpop.f32.mrf.mxu0
        %v834 = vadd.f32 0.0, %v833
        %835 = vmatprep.mubr.bf16.mxu0 0
        %836 = vmatmul.mubr.bf16.gmra.mxu0 %v330
        %v837 = vpop.f32.mrf.mxu0
        %v838 = vadd.f32 0.0, %v837
        %v839 = vpop.f32.mrf.mxu0
        %v840 = vadd.f32 0.0, %v839
        %v841 = vpop.f32.mrf.mxu0
        %v842 = vadd.f32 0.0, %v841
        %v843 = vpop.f32.mrf.mxu0
        %v844 = vadd.f32 0.0, %v843
        %845 = vmatprep.mubr.bf16.mxu0 0
        %846 = vmatmul.mubr.bf16.gmra.mxu0 %v331
        %v847 = vpop.f32.mrf.mxu0
        %v848 = vadd.f32 0.0, %v847
        %v849 = vpop.f32.mrf.mxu0
        %v850 = vadd.f32 0.0, %v849
        %v851 = vpop.f32.mrf.mxu0
        %v852 = vadd.f32 0.0, %v851
        %v853 = vpop.f32.mrf.mxu0
        %v854 = vadd.f32 0.0, %v853
        %855 = vmatprep.mubr.bf16.mxu0 0
        %856 = vmatmul.mubr.bf16.gmra.mxu0 %v332
        %v857 = vpop.f32.mrf.mxu0
        %v858 = vadd.f32 0.0, %v857
        %v859 = vpop.f32.mrf.mxu0
        %v860 = vadd.f32 0.0, %v859
        %v861 = vpop.f32.mrf.mxu0
        %v862 = vadd.f32 0.0, %v861
        %v863 = vpop.f32.mrf.mxu0
        %v864 = vadd.f32 0.0, %v863
        %865 = vmatprep.mubr.bf16.mxu0 0
        %866 = vmatmul.mubr.bf16.gmra.mxu0 %v333
        %v867 = vpop.f32.mrf.mxu0
        %v868 = vadd.f32 0.0, %v867
        %v869 = vpop.f32.mrf.mxu0
        %v870 = vadd.f32 0.0, %v869
        %v871 = vpop.f32.mrf.mxu0
        %v872 = vadd.f32 0.0, %v871
        %v873 = vpop.f32.mrf.mxu0
        %v874 = vadd.f32 0.0, %v873
        %875 = vmatprep.mubr.bf16.mxu0 0
        %876 = vmatmul.mubr.bf16.gmra.mxu0 %v334
        %v877 = vpop.f32.mrf.mxu0
        %v878 = vadd.f32 0.0, %v877
        %v879 = vpop.f32.mrf.mxu0
        %v880 = vadd.f32 0.0, %v879
        %v881 = vpop.f32.mrf.mxu0
        %v882 = vadd.f32 0.0, %v881
        %v883 = vpop.f32.mrf.mxu0
        %v884 = vadd.f32 0.0, %v883
        %885 = vmatprep.mubr.bf16.mxu0 0
        %886 = vmatmul.mubr.bf16.gmra.mxu0 %v335
        %v887 = vpop.f32.mrf.mxu0
        %v888 = vadd.f32 0.0, %v887
        %v889 = vpop.f32.mrf.mxu0
        %v890 = vadd.f32 0.0, %v889
        %v891 = vpop.f32.mrf.mxu0
        %v892 = vadd.f32 0.0, %v891
        %v893 = vpop.f32.mrf.mxu0
        %v894 = vadd.f32 0.0, %v893
        %895 = vmatprep.mubr.bf16.mxu0 0
        %896 = vmatmul.mubr.bf16.gmra.mxu0 %v336
        %v897 = vpop.f32.mrf.mxu0
        %v898 = vadd.f32 0.0, %v897
        %v899 = vpop.f32.mrf.mxu0
        %v900 = vadd.f32 0.0, %v899
        %v901 = vpop.f32.mrf.mxu0
        %v902 = vadd.f32 0.0, %v901
        %v903 = vpop.f32.mrf.mxu0
        %v904 = vadd.f32 0.0, %v903
        %905 = vmatprep.mubr.bf16.mxu0 0
        %906 = vmatmul.mubr.bf16.gmra.mxu0 %v337
        %v907 = vpop.f32.mrf.mxu0
        %v908 = vadd.f32 0.0, %v907
        %v909 = vpop.f32.mrf.mxu0
        %v910 = vadd.f32 0.0, %v909
        %v911 = vpop.f32.mrf.mxu0
        %v912 = vadd.f32 0.0, %v911
        %v913 = vpop.f32.mrf.mxu0
        %v914 = vadd.f32 0.0, %v913
        %915 = vdwg.mxu0
        %v916 = vmax.f32 %v565, 0.0
        %v917 = vmax.f32 %v567, 0.0
        %v918 = vmax.f32 %v758, 0.0
        %v919 = vmax.f32 %v760, 0.0
        %v920 = vmax.f32 %v569, 0.0
        %v921 = vmax.f32 %v571, 0.0
        %v922 = vmax.f32 %v762, 0.0
        %v923 = vmax.f32 %v764, 0.0
        %v924 = vmax.f32 %v575, 0.0
        %v925 = vmax.f32 %v577, 0.0
        %v926 = vmax.f32 %v768, 0.0
        %v927 = vmax.f32 %v770, 0.0
        %v928 = vmax.f32 %v579, 0.0
        %v929 = vmax.f32 %v581, 0.0
        %v930 = vmax.f32 %v772, 0.0
        %v931 = vmax.f32 %v774, 0.0
        %v932 = vmax.f32 %v585, 0.0
        %v933 = vmax.f32 %v587, 0.0
        %v934 = vmax.f32 %v778, 0.0
        %v935 = vmax.f32 %v780, 0.0
        %v936 = vmax.f32 %v589, 0.0
        %v937 = vmax.f32 %v591, 0.0
        %v938 = vmax.f32 %v782, 0.0
        %v939 = vmax.f32 %v784, 0.0
        %v940 = vmax.f32 %v595, 0.0
        %v941 = vmax.f32 %v597, 0.0
        %v942 = vmax.f32 %v788, 0.0
        %v943 = vmax.f32 %v790, 0.0
        %v944 = vmax.f32 %v599, 0.0
        %v945 = vmax.f32 %v601, 0.0
        %v946 = vmax.f32 %v792, 0.0
        %v947 = vmax.f32 %v794, 0.0
        %v948 = vmax.f32 %v605, 0.0
        %v949 = vmax.f32 %v607, 0.0
        %v950 = vmax.f32 %v798, 0.0
        %v951 = vmax.f32 %v800, 0.0
        %v952 = vmax.f32 %v609, 0.0
        %v953 = vmax.f32 %v611, 0.0
        %v954 = vmax.f32 %v802, 0.0
        %v955 = vmax.f32 %v804, 0.0
        %v956 = vmax.f32 %v615, 0.0
        %v957 = vmax.f32 %v617, 0.0
        %v958 = vmax.f32 %v808, 0.0
        %v959 = vmax.f32 %v810, 0.0
        %v960 = vmax.f32 %v619, 0.0
        %v961 = vmax.f32 %v621, 0.0
        %v962 = vmax.f32 %v812, 0.0
        %v963 = vmax.f32 %v814, 0.0
        %v964 = vmax.f32 %v625, 0.0
        %v965 = vmax.f32 %v627, 0.0
        %v966 = vmax.f32 %v818, 0.0
        %v967 = vmax.f32 %v820, 0.0
        %v968 = vmax.f32 %v629, 0.0
        %v969 = vmax.f32 %v631, 0.0
        %v970 = vmax.f32 %v822, 0.0
        %v971 = vmax.f32 %v824, 0.0
        %v972 = vmax.f32 %v635, 0.0
        %v973 = vmax.f32 %v637, 0.0
        %v974 = vmax.f32 %v828, 0.0
        %v975 = vmax.f32 %v830, 0.0
        %v976 = vmax.f32 %v639, 0.0
        %v977 = vmax.f32 %v641, 0.0
        %v978 = vmax.f32 %v832, 0.0
        %v979 = vmax.f32 %v834, 0.0
        %v980 = vmax.f32 %v645, 0.0
        %v981 = vmax.f32 %v647, 0.0
        %v982 = vmax.f32 %v838, 0.0
        %v983 = vmax.f32 %v840, 0.0
        %v984 = vmax.f32 %v649, 0.0
        %v985 = vmax.f32 %v651, 0.0
        %v986 = vmax.f32 %v842, 0.0
        %v987 = vmax.f32 %v844, 0.0
        %v988 = vmax.f32 %v655, 0.0
        %v989 = vmax.f32 %v657, 0.0
        %v990 = vmax.f32 %v848, 0.0
        %v991 = vmax.f32 %v850, 0.0
        %v992 = vmax.f32 %v659, 0.0
        %v993 = vmax.f32 %v661, 0.0
        %v994 = vmax.f32 %v852, 0.0
        %v995 = vmax.f32 %v854, 0.0
        %v996 = vmax.f32 %v665, 0.0
        %v997 = vmax.f32 %v667, 0.0
        %v998 = vmax.f32 %v858, 0.0
        %v999 = vmax.f32 %v860, 0.0
        %v1000 = vmax.f32 %v669, 0.0
        %v1001 = vmax.f32 %v671, 0.0
        %v1002 = vmax.f32 %v862, 0.0
        %v1003 = vmax.f32 %v864, 0.0
        %v1004 = vmax.f32 %v675, 0.0
        %v1005 = vmax.f32 %v677, 0.0
        %v1006 = vmax.f32 %v868, 0.0
        %v1007 = vmax.f32 %v870, 0.0
        %v1008 = vmax.f32 %v679, 0.0
        %v1009 = vmax.f32 %v681, 0.0
        %v1010 = vmax.f32 %v872, 0.0
        %v1011 = vmax.f32 %v874, 0.0
        %v1012 = vmax.f32 %v685, 0.0
        %v1013 = vmax.f32 %v687, 0.0
        %v1014 = vmax.f32 %v878, 0.0
        %v1015 = vmax.f32 %v880, 0.0
        %v1016 = vmax.f32 %v689, 0.0
        %v1017 = vmax.f32 %v691, 0.0
        %v1018 = vmax.f32 %v882, 0.0
        %v1019 = vmax.f32 %v884, 0.0
        %v1020 = vmax.f32 %v695, 0.0
        %v1021 = vmax.f32 %v697, 0.0
        %v1022 = vmax.f32 %v888, 0.0
        %v1023 = vmax.f32 %v890, 0.0
        %v1024 = vmax.f32 %v699, 0.0
        %v1025 = vmax.f32 %v701, 0.0
        %v1026 = vmax.f32 %v892, 0.0
        %v1027 = vmax.f32 %v894, 0.0
        %v1028 = vmax.f32 %v705, 0.0
        %v1029 = vmax.f32 %v707, 0.0
        %v1030 = vmax.f32 %v898, 0.0
        %v1031 = vmax.f32 %v900, 0.0
        %v1032 = vmax.f32 %v709, 0.0
        %v1033 = vmax.f32 %v711, 0.0
        %v1034 = vmax.f32 %v902, 0.0
        %v1035 = vmax.f32 %v904, 0.0
        %v1036 = vmax.f32 %v715, 0.0
        %v1037 = vmax.f32 %v717, 0.0
        %v1038 = vmax.f32 %v908, 0.0
        %v1039 = vmax.f32 %v910, 0.0
        %v1040 = vmax.f32 %v719, 0.0
        %v1041 = vmax.f32 %v721, 0.0
        %v1042 = vmax.f32 %v912, 0.0
        %v1043 = vmax.f32 %v914, 0.0
        %v1044 = vpack.c.bf16 %v920, %v916
        %v1045 = vpack.c.bf16 %v921, %v917
        %v1046 = vpack.c.bf16 %v922, %v918
        %v1047 = vpack.c.bf16 %v923, %v919
        %v1048 = vpack.c.bf16 %v928, %v924
        %v1049 = vpack.c.bf16 %v929, %v925
        %v1050 = vpack.c.bf16 %v930, %v926
        %v1051 = vpack.c.bf16 %v931, %v927
        %v1052 = vpack.c.bf16 %v936, %v932
        %v1053 = vpack.c.bf16 %v937, %v933
        %v1054 = vpack.c.bf16 %v938, %v934
        %v1055 = vpack.c.bf16 %v939, %v935
        %v1056 = vpack.c.bf16 %v944, %v940
        %v1057 = vpack.c.bf16 %v945, %v941
        %v1058 = vpack.c.bf16 %v946, %v942
        %v1059 = vpack.c.bf16 %v947, %v943
        %v1060 = vpack.c.bf16 %v952, %v948
        %v1061 = vpack.c.bf16 %v953, %v949
        %v1062 = vpack.c.bf16 %v954, %v950
        %v1063 = vpack.c.bf16 %v955, %v951
        %v1064 = vpack.c.bf16 %v960, %v956
        %v1065 = vpack.c.bf16 %v961, %v957
        %v1066 = vpack.c.bf16 %v962, %v958
        %v1067 = vpack.c.bf16 %v963, %v959
        %v1068 = vpack.c.bf16 %v968, %v964
        %v1069 = vpack.c.bf16 %v969, %v965
        %v1070 = vpack.c.bf16 %v970, %v966
        %v1071 = vpack.c.bf16 %v971, %v967
        %v1072 = vpack.c.bf16 %v976, %v972
        %v1073 = vpack.c.bf16 %v977, %v973
        %v1074 = vpack.c.bf16 %v978, %v974
        %v1075 = vpack.c.bf16 %v979, %v975
        %v1076 = vpack.c.bf16 %v984, %v980
        %v1077 = vpack.c.bf16 %v985, %v981
        %v1078 = vpack.c.bf16 %v986, %v982
        %v1079 = vpack.c.bf16 %v987, %v983
        %v1080 = vpack.c.bf16 %v992, %v988
        %v1081 = vpack.c.bf16 %v993, %v989
        %v1082 = vpack.c.bf16 %v994, %v990
        %v1083 = vpack.c.bf16 %v995, %v991
        %v1084 = vpack.c.bf16 %v1000, %v996
        %v1085 = vpack.c.bf16 %v1001, %v997
        %v1086 = vpack.c.bf16 %v1002, %v998
        %v1087 = vpack.c.bf16 %v1003, %v999
        %v1088 = vpack.c.bf16 %v1008, %v1004
        %v1089 = vpack.c.bf16 %v1009, %v1005
        %v1090 = vpack.c.bf16 %v1010, %v1006
        %v1091 = vpack.c.bf16 %v1011, %v1007
        %v1092 = vpack.c.bf16 %v1016, %v1012
        %v1093 = vpack.c.bf16 %v1017, %v1013
        %v1094 = vpack.c.bf16 %v1018, %v1014
        %v1095 = vpack.c.bf16 %v1019, %v1015
        %v1096 = vpack.c.bf16 %v1024, %v1020
        %v1097 = vpack.c.bf16 %v1025, %v1021
        %v1098 = vpack.c.bf16 %v1026, %v1022
        %v1099 = vpack.c.bf16 %v1027, %v1023
        %v1100 = vpack.c.bf16 %v1032, %v1028
        %v1101 = vpack.c.bf16 %v1033, %v1029
        %v1102 = vpack.c.bf16 %v1034, %v1030
        %v1103 = vpack.c.bf16 %v1035, %v1031
        %v1104 = vpack.c.bf16 %v1040, %v1036
        %v1105 = vpack.c.bf16 %v1041, %v1037
        %v1106 = vpack.c.bf16 %v1042, %v1038
        %v1107 = vpack.c.bf16 %v1043, %v1039
        %v1108 = vld [vmem:[#allocation7] sm:$0xf]
        %v1109 = vld [vmem:[#allocation7 + $0x4] sm:$0xf]
        %v1110 = vld [vmem:[#allocation7 + $0x8] sm:$0xf]
        %v1111 = vld [vmem:[#allocation7 + $0xc] sm:$0xf]
        %v1112 = vld [vmem:[#allocation7 + $0x10] sm:$0xf]
        %v1113 = vld [vmem:[#allocation7 + $0x14] sm:$0xf]
        %v1114 = vld [vmem:[#allocation7 + $0x18] sm:$0xf]
        %v1115 = vld [vmem:[#allocation7 + $0x1c] sm:$0xf]
        %v1116 = vld [vmem:[#allocation7 + $0x20] sm:$0xf]
        %v1117 = vld [vmem:[#allocation7 + $0x24] sm:$0xf]
        %v1118 = vld [vmem:[#allocation7 + $0x28] sm:$0xf]
        %v1119 = vld [vmem:[#allocation7 + $0x2c] sm:$0xf]
        %v1120 = vld [vmem:[#allocation7 + $0x30] sm:$0xf]
        %v1121 = vld [vmem:[#allocation7 + $0x34] sm:$0xf]
        %v1122 = vld [vmem:[#allocation7 + $0x38] sm:$0xf]
        %v1123 = vld [vmem:[#allocation7 + $0x3c] sm:$0xf]
        %v1124 = vld [vmem:[#allocation7 + $0x40] sm:$0xf]
        %v1125 = vld [vmem:[#allocation7 + $0x44] sm:$0xf]
        %v1126 = vld [vmem:[#allocation7 + $0x48] sm:$0xf]
        %v1127 = vld [vmem:[#allocation7 + $0x4c] sm:$0xf]
        %v1128 = vld [vmem:[#allocation7 + $0x50] sm:$0xf]
        %v1129 = vld [vmem:[#allocation7 + $0x54] sm:$0xf]
        %v1130 = vld [vmem:[#allocation7 + $0x58] sm:$0xf]
        %v1131 = vld [vmem:[#allocation7 + $0x5c] sm:$0xf]
        %v1132 = vld [vmem:[#allocation7 + $0x60] sm:$0xf]
        %v1133 = vld [vmem:[#allocation7 + $0x64] sm:$0xf]
        %v1134 = vld [vmem:[#allocation7 + $0x68] sm:$0xf]
        %v1135 = vld [vmem:[#allocation7 + $0x6c] sm:$0xf]
        %v1136 = vld [vmem:[#allocation7 + $0x70] sm:$0xf]
        %v1137 = vld [vmem:[#allocation7 + $0x74] sm:$0xf]
        %v1138 = vld [vmem:[#allocation7 + $0x78] sm:$0xf]
        %v1139 = vld [vmem:[#allocation7 + $0x7c] sm:$0xf]
        %v1140 = vld [vmem:[#allocation7 + $0x80] sm:$0xf]
        %v1141 = vld [vmem:[#allocation7 + $0x84] sm:$0xf]
        %v1142 = vld [vmem:[#allocation7 + $0x88] sm:$0xf]
        %v1143 = vld [vmem:[#allocation7 + $0x8c] sm:$0xf]
        %v1144 = vld [vmem:[#allocation7 + $0x90] sm:$0xf]
        %v1145 = vld [vmem:[#allocation7 + $0x94] sm:$0xf]
        %v1146 = vld [vmem:[#allocation7 + $0x98] sm:$0xf]
        %v1147 = vld [vmem:[#allocation7 + $0x9c] sm:$0xf]
        %v1148 = vld [vmem:[#allocation7 + $0xa0] sm:$0xf]
        %v1149 = vld [vmem:[#allocation7 + $0xa4] sm:$0xf]
        %v1150 = vld [vmem:[#allocation7 + $0xa8] sm:$0xf]
        %v1151 = vld [vmem:[#allocation7 + $0xac] sm:$0xf]
        %v1152 = vld [vmem:[#allocation7 + $0xb0] sm:$0xf]
        %v1153 = vld [vmem:[#allocation7 + $0xb4] sm:$0xf]
        %v1154 = vld [vmem:[#allocation7 + $0xb8] sm:$0xf]
        %v1155 = vld [vmem:[#allocation7 + $0xbc] sm:$0xf]
        %v1156 = vld [vmem:[#allocation7 + $0xc0] sm:$0xf]
        %v1157 = vld [vmem:[#allocation7 + $0xc4] sm:$0xf]
        %v1158 = vld [vmem:[#allocation7 + $0xc8] sm:$0xf]
        %v1159 = vld [vmem:[#allocation7 + $0xcc] sm:$0xf]
        %v1160 = vld [vmem:[#allocation7 + $0xd0] sm:$0xf]
        %v1161 = vld [vmem:[#allocation7 + $0xd4] sm:$0xf]
        %v1162 = vld [vmem:[#allocation7 + $0xd8] sm:$0xf]
        %v1163 = vld [vmem:[#allocation7 + $0xdc] sm:$0xf]
        %v1164 = vld [vmem:[#allocation7 + $0xe0] sm:$0xf]
        %v1165 = vld [vmem:[#allocation7 + $0xe4] sm:$0xf]
        %v1166 = vld [vmem:[#allocation7 + $0xe8] sm:$0xf]
        %v1167 = vld [vmem:[#allocation7 + $0xec] sm:$0xf]
        %v1168 = vld [vmem:[#allocation7 + $0xf0] sm:$0xf]
        %v1169 = vld [vmem:[#allocation7 + $0xf4] sm:$0xf]
        %v1170 = vld [vmem:[#allocation7 + $0xf8] sm:$0xf]
        %v1171 = vld [vmem:[#allocation7 + $0xfc] sm:$0xf]
        %v1172 = vld [vmem:[#allocation8] sm:$0xf]
        %v1173 = vld [vmem:[#allocation8 + $0x4] sm:$0xf]
        %v1174 = vld [vmem:[#allocation8 + $0x8] sm:$0xf]
        %v1175 = vld [vmem:[#allocation8 + $0xc] sm:$0xf]
        %v1176 = vld [vmem:[#allocation8 + $0x10] sm:$0xf]
        %v1177 = vld [vmem:[#allocation8 + $0x14] sm:$0xf]
        %v1178 = vld [vmem:[#allocation8 + $0x18] sm:$0xf]
        %v1179 = vld [vmem:[#allocation8 + $0x1c] sm:$0xf]
        %v1180 = vld [vmem:[#allocation8 + $0x20] sm:$0xf]
        %v1181 = vld [vmem:[#allocation8 + $0x24] sm:$0xf]
        %v1182 = vld [vmem:[#allocation8 + $0x28] sm:$0xf]
        %v1183 = vld [vmem:[#allocation8 + $0x2c] sm:$0xf]
        %v1184 = vld [vmem:[#allocation8 + $0x30] sm:$0xf]
        %v1185 = vld [vmem:[#allocation8 + $0x34] sm:$0xf]
        %v1186 = vld [vmem:[#allocation8 + $0x38] sm:$0xf]
        %v1187 = vld [vmem:[#allocation8 + $0x3c] sm:$0xf]
        %v1204 = vunpack.c.l.b16 %v1172
        %v1205 = vunpack.c.l.b16 %v1173
        %v1206 = vunpack.c.l.b16 %v1174
        %v1207 = vunpack.c.l.b16 %v1175
        %v1208 = vunpack.c.l.b16 %v1176
        %v1209 = vunpack.c.l.b16 %v1177
        %v1210 = vunpack.c.l.b16 %v1178
        %v1211 = vunpack.c.l.b16 %v1179
        %v1212 = vunpack.c.l.b16 %v1180
        %v1213 = vunpack.c.l.b16 %v1181
        %v1214 = vunpack.c.l.b16 %v1182
        %v1215 = vunpack.c.l.b16 %v1183
        %v1216 = vunpack.c.l.b16 %v1184
        %v1217 = vunpack.c.l.b16 %v1185
        %v1218 = vunpack.c.l.b16 %v1186
        %v1219 = vunpack.c.l.b16 %v1187
        %v1220 = vpack.c.b16 %v1205, %v1204
        %v1221 = vpack.c.b16 %v1207, %v1206
        %v1222 = vpack.c.b16 %v1209, %v1208
        %v1223 = vpack.c.b16 %v1211, %v1210
        %v1224 = vpack.c.b16 %v1213, %v1212
        %v1225 = vpack.c.b16 %v1215, %v1214
        %v1226 = vpack.c.b16 %v1217, %v1216
        %v1227 = vpack.c.b16 %v1219, %v1218
        %1236 = vmatprep.subr.bf16.mxu0 0
        %1237 = vmatpush1.bf16.msra.mxu0 %v1227
        %1238 = vmatprep.subr.bf16.mxu0 0
        %1239 = vmatpush1.bf16.msra.mxu0 %v1226
        %1240 = vmatprep.subr.bf16.mxu0 0
        %1241 = vmatpush1.bf16.msra.mxu0 %v1225
        %1242 = vmatprep.subr.bf16.mxu0 0
        %1243 = vmatpush1.bf16.msra.mxu0 %v1224
        %1244 = vmatprep.subr.bf16.mxu0 0
        %1245 = vmatpush1.bf16.msra.mxu0 %v1223
        %1246 = vmatprep.subr.bf16.mxu0 0
        %1247 = vmatpush1.bf16.msra.mxu0 %v1222
        %1248 = vmatprep.subr.bf16.mxu0 0
        %1249 = vmatpush1.bf16.msra.mxu0 %v1221
        %1250 = vmatprep.subr.bf16.mxu0 0
        %1251 = vmatpush1.bf16.msra.mxu0 %v1220
        %1252 = vmatprep.subr.bf16.mxu0 0
        %1253 = vmatpush2.bf16.msra.mxu0 0
        %1254 = vmatprep.subr.bf16.mxu0 0
        %1255 = vmatpush2.bf16.msra.mxu0 0
        %1256 = vmatprep.subr.bf16.mxu0 0
        %1257 = vmatpush2.bf16.msra.mxu0 0
        %1258 = vmatprep.subr.bf16.mxu0 0
        %1259 = vmatpush2.bf16.msra.mxu0 0
        %1260 = vmatprep.subr.bf16.mxu0 0
        %1261 = vmatpush2.bf16.msra.mxu0 0
        %1262 = vmatprep.subr.bf16.mxu0 0
        %1263 = vmatpush2.bf16.msra.mxu0 0
        %1264 = vmatprep.subr.bf16.mxu0 0
        %1265 = vmatpush2.bf16.msra.mxu0 0
        %1266 = vmatprep.subr.bf16.mxu0 0
        %1267 = vmatpush2.bf16.msra.mxu0 0
        %1268 = vmatprep.mubr.bf16.mxu0 0
        %1269 = vmatmul.mubr.bf16.gmra.mxu0 %v322
        %v1270 = vpop.f32.mrf.mxu0
        %v1271 = vadd.f32 0.0, %v1270
        %v1272 = vpop.f32.mrf.mxu0
        %v1273 = vpop.f32.mrf.mxu0
        %v1274 = vadd.f32 0.0, %v1273
        %v1275 = vpop.f32.mrf.mxu0
        %1276 = vmatprep.mubr.bf16.mxu0 0
        %1277 = vmatmul.mubr.bf16.gmra.mxu0 %v323
        %v1278 = vpop.f32.mrf.mxu0
        %v1279 = vadd.f32 0.0, %v1278
        %v1280 = vpop.f32.mrf.mxu0
        %v1281 = vpop.f32.mrf.mxu0
        %v1282 = vadd.f32 0.0, %v1281
        %v1283 = vpop.f32.mrf.mxu0
        %1284 = vmatprep.mubr.bf16.mxu0 0
        %1285 = vmatmul.mubr.bf16.gmra.mxu0 %v324
        %v1286 = vpop.f32.mrf.mxu0
        %v1287 = vadd.f32 0.0, %v1286
        %v1288 = vpop.f32.mrf.mxu0
        %v1289 = vpop.f32.mrf.mxu0
        %v1290 = vadd.f32 0.0, %v1289
        %v1291 = vpop.f32.mrf.mxu0
        %1292 = vmatprep.mubr.bf16.mxu0 0
        %1293 = vmatmul.mubr.bf16.gmra.mxu0 %v325
        %v1294 = vpop.f32.mrf.mxu0
        %v1295 = vadd.f32 0.0, %v1294
        %v1296 = vpop.f32.mrf.mxu0
        %v1297 = vpop.f32.mrf.mxu0
        %v1298 = vadd.f32 0.0, %v1297
        %v1299 = vpop.f32.mrf.mxu0
        %1300 = vmatprep.mubr.bf16.mxu0 0
        %1301 = vmatmul.mubr.bf16.gmra.mxu0 %v326
        %v1302 = vpop.f32.mrf.mxu0
        %v1303 = vadd.f32 0.0, %v1302
        %v1304 = vpop.f32.mrf.mxu0
        %v1305 = vpop.f32.mrf.mxu0
        %v1306 = vadd.f32 0.0, %v1305
        %v1307 = vpop.f32.mrf.mxu0
        %1308 = vmatprep.mubr.bf16.mxu0 0
        %1309 = vmatmul.mubr.bf16.gmra.mxu0 %v327
        %v1310 = vpop.f32.mrf.mxu0
        %v1311 = vadd.f32 0.0, %v1310
        %v1312 = vpop.f32.mrf.mxu0
        %v1313 = vpop.f32.mrf.mxu0
        %v1314 = vadd.f32 0.0, %v1313
        %v1315 = vpop.f32.mrf.mxu0
        %1316 = vmatprep.mubr.bf16.mxu0 0
        %1317 = vmatmul.mubr.bf16.gmra.mxu0 %v328
        %v1318 = vpop.f32.mrf.mxu0
        %v1319 = vadd.f32 0.0, %v1318
        %v1320 = vpop.f32.mrf.mxu0
        %v1321 = vpop.f32.mrf.mxu0
        %v1322 = vadd.f32 0.0, %v1321
        %v1323 = vpop.f32.mrf.mxu0
        %1324 = vmatprep.mubr.bf16.mxu0 0
        %1325 = vmatmul.mubr.bf16.gmra.mxu0 %v329
        %v1326 = vpop.f32.mrf.mxu0
        %v1327 = vadd.f32 0.0, %v1326
        %v1328 = vpop.f32.mrf.mxu0
        %v1329 = vpop.f32.mrf.mxu0
        %v1330 = vadd.f32 0.0, %v1329
        %v1331 = vpop.f32.mrf.mxu0
        %1332 = vmatprep.mubr.bf16.mxu0 0
        %1333 = vmatmul.mubr.bf16.gmra.mxu0 %v330
        %v1334 = vpop.f32.mrf.mxu0
        %v1335 = vadd.f32 0.0, %v1334
        %v1336 = vpop.f32.mrf.mxu0
        %v1337 = vpop.f32.mrf.mxu0
        %v1338 = vadd.f32 0.0, %v1337
        %v1339 = vpop.f32.mrf.mxu0
        %1340 = vmatprep.mubr.bf16.mxu0 0
        %1341 = vmatmul.mubr.bf16.gmra.mxu0 %v331
        %v1342 = vpop.f32.mrf.mxu0
        %v1343 = vadd.f32 0.0, %v1342
        %v1344 = vpop.f32.mrf.mxu0
        %v1345 = vpop.f32.mrf.mxu0
        %v1346 = vadd.f32 0.0, %v1345
        %v1347 = vpop.f32.mrf.mxu0
        %1348 = vmatprep.mubr.bf16.mxu0 0
        %1349 = vmatmul.mubr.bf16.gmra.mxu0 %v332
        %v1350 = vpop.f32.mrf.mxu0
        %v1351 = vadd.f32 0.0, %v1350
        %v1352 = vpop.f32.mrf.mxu0
        %v1353 = vpop.f32.mrf.mxu0
        %v1354 = vadd.f32 0.0, %v1353
        %v1355 = vpop.f32.mrf.mxu0
        %1356 = vmatprep.mubr.bf16.mxu0 0
        %1357 = vmatmul.mubr.bf16.gmra.mxu0 %v333
        %v1358 = vpop.f32.mrf.mxu0
        %v1359 = vadd.f32 0.0, %v1358
        %v1360 = vpop.f32.mrf.mxu0
        %v1361 = vpop.f32.mrf.mxu0
        %v1362 = vadd.f32 0.0, %v1361
        %v1363 = vpop.f32.mrf.mxu0
        %1364 = vmatprep.mubr.bf16.mxu0 0
        %1365 = vmatmul.mubr.bf16.gmra.mxu0 %v334
        %v1366 = vpop.f32.mrf.mxu0
        %v1367 = vadd.f32 0.0, %v1366
        %v1368 = vpop.f32.mrf.mxu0
        %v1369 = vpop.f32.mrf.mxu0
        %v1370 = vadd.f32 0.0, %v1369
        %v1371 = vpop.f32.mrf.mxu0
        %1372 = vmatprep.mubr.bf16.mxu0 0
        %1373 = vmatmul.mubr.bf16.gmra.mxu0 %v335
        %v1374 = vpop.f32.mrf.mxu0
        %v1375 = vadd.f32 0.0, %v1374
        %v1376 = vpop.f32.mrf.mxu0
        %v1377 = vpop.f32.mrf.mxu0
        %v1378 = vadd.f32 0.0, %v1377
        %v1379 = vpop.f32.mrf.mxu0
        %1380 = vmatprep.mubr.bf16.mxu0 0
        %1381 = vmatmul.mubr.bf16.gmra.mxu0 %v336
        %v1382 = vpop.f32.mrf.mxu0
        %v1383 = vadd.f32 0.0, %v1382
        %v1384 = vpop.f32.mrf.mxu0
        %v1385 = vpop.f32.mrf.mxu0
        %v1386 = vadd.f32 0.0, %v1385
        %v1387 = vpop.f32.mrf.mxu0
        %1388 = vmatprep.mubr.bf16.mxu0 0
        %1389 = vmatmul.mubr.bf16.gmra.mxu0 %v337
        %v1390 = vpop.f32.mrf.mxu0
        %v1391 = vadd.f32 0.0, %v1390
        %v1392 = vpop.f32.mrf.mxu0
        %v1393 = vpop.f32.mrf.mxu0
        %v1394 = vadd.f32 0.0, %v1393
        %v1395 = vpop.f32.mrf.mxu0
        %1396 = vdwg.mxu0
        %v1461 = vunpack.c.l.b16 %v1108
        %v1462 = vunpack.c.l.b16 %v1109
        %v1463 = vunpack.c.l.b16 %v1110
        %v1464 = vunpack.c.l.b16 %v1111
        %v1465 = vunpack.c.l.b16 %v1112
        %v1466 = vunpack.c.l.b16 %v1113
        %v1467 = vunpack.c.l.b16 %v1114
        %v1468 = vunpack.c.l.b16 %v1115
        %v1469 = vunpack.c.l.b16 %v1116
        %v1470 = vunpack.c.l.b16 %v1117
        %v1471 = vunpack.c.l.b16 %v1118
        %v1472 = vunpack.c.l.b16 %v1119
        %v1473 = vunpack.c.l.b16 %v1120
        %v1474 = vunpack.c.l.b16 %v1121
        %v1475 = vunpack.c.l.b16 %v1122
        %v1476 = vunpack.c.l.b16 %v1123
        %v1477 = vunpack.c.l.b16 %v1124
        %v1478 = vunpack.c.l.b16 %v1125
        %v1479 = vunpack.c.l.b16 %v1126
        %v1480 = vunpack.c.l.b16 %v1127
        %v1481 = vunpack.c.l.b16 %v1128
        %v1482 = vunpack.c.l.b16 %v1129
        %v1483 = vunpack.c.l.b16 %v1130
        %v1484 = vunpack.c.l.b16 %v1131
        %v1485 = vunpack.c.l.b16 %v1132
        %v1486 = vunpack.c.l.b16 %v1133
        %v1487 = vunpack.c.l.b16 %v1134
        %v1488 = vunpack.c.l.b16 %v1135
        %v1489 = vunpack.c.l.b16 %v1136
        %v1490 = vunpack.c.l.b16 %v1137
        %v1491 = vunpack.c.l.b16 %v1138
        %v1492 = vunpack.c.l.b16 %v1139
        %v1493 = vunpack.c.l.b16 %v1140
        %v1494 = vunpack.c.l.b16 %v1141
        %v1495 = vunpack.c.l.b16 %v1142
        %v1496 = vunpack.c.l.b16 %v1143
        %v1497 = vunpack.c.l.b16 %v1144
        %v1498 = vunpack.c.l.b16 %v1145
        %v1499 = vunpack.c.l.b16 %v1146
        %v1500 = vunpack.c.l.b16 %v1147
        %v1501 = vunpack.c.l.b16 %v1148
        %v1502 = vunpack.c.l.b16 %v1149
        %v1503 = vunpack.c.l.b16 %v1150
        %v1504 = vunpack.c.l.b16 %v1151
        %v1505 = vunpack.c.l.b16 %v1152
        %v1506 = vunpack.c.l.b16 %v1153
        %v1507 = vunpack.c.l.b16 %v1154
        %v1508 = vunpack.c.l.b16 %v1155
        %v1509 = vunpack.c.l.b16 %v1156
        %v1510 = vunpack.c.l.b16 %v1157
        %v1511 = vunpack.c.l.b16 %v1158
        %v1512 = vunpack.c.l.b16 %v1159
        %v1513 = vunpack.c.l.b16 %v1160
        %v1514 = vunpack.c.l.b16 %v1161
        %v1515 = vunpack.c.l.b16 %v1162
        %v1516 = vunpack.c.l.b16 %v1163
        %v1517 = vunpack.c.l.b16 %v1164
        %v1518 = vunpack.c.l.b16 %v1165
        %v1519 = vunpack.c.l.b16 %v1166
        %v1520 = vunpack.c.l.b16 %v1167
        %v1521 = vunpack.c.l.b16 %v1168
        %v1522 = vunpack.c.l.b16 %v1169
        %v1523 = vunpack.c.l.b16 %v1170
        %v1524 = vunpack.c.l.b16 %v1171
        %v1525 = vpack.c.b16 %v1462, %v1461
        %v1526 = vpack.c.b16 %v1464, %v1463
        %v1527 = vpack.c.b16 %v1466, %v1465
        %v1528 = vpack.c.b16 %v1468, %v1467
        %v1529 = vpack.c.b16 %v1470, %v1469
        %v1530 = vpack.c.b16 %v1472, %v1471
        %v1531 = vpack.c.b16 %v1474, %v1473
        %v1532 = vpack.c.b16 %v1476, %v1475
        %v1533 = vpack.c.b16 %v1478, %v1477
        %v1534 = vpack.c.b16 %v1480, %v1479
        %v1535 = vpack.c.b16 %v1482, %v1481
        %v1536 = vpack.c.b16 %v1484, %v1483
        %v1537 = vpack.c.b16 %v1486, %v1485
        %v1538 = vpack.c.b16 %v1488, %v1487
        %v1539 = vpack.c.b16 %v1490, %v1489
        %v1540 = vpack.c.b16 %v1492, %v1491
        %v1541 = vpack.c.b16 %v1494, %v1493
        %v1542 = vpack.c.b16 %v1496, %v1495
        %v1543 = vpack.c.b16 %v1498, %v1497
        %v1544 = vpack.c.b16 %v1500, %v1499
        %v1545 = vpack.c.b16 %v1502, %v1501
        %v1546 = vpack.c.b16 %v1504, %v1503
        %v1547 = vpack.c.b16 %v1506, %v1505
        %v1548 = vpack.c.b16 %v1508, %v1507
        %v1549 = vpack.c.b16 %v1510, %v1509
        %v1550 = vpack.c.b16 %v1512, %v1511
        %v1551 = vpack.c.b16 %v1514, %v1513
        %v1552 = vpack.c.b16 %v1516, %v1515
        %v1553 = vpack.c.b16 %v1518, %v1517
        %v1554 = vpack.c.b16 %v1520, %v1519
        %v1555 = vpack.c.b16 %v1522, %v1521
        %v1556 = vpack.c.b16 %v1524, %v1523
        %1589 = vmatprep.subr.bf16.mxu0 0
        %1590 = vmatpush1.bf16.msra.mxu0 %v1532
        %1591 = vmatprep.subr.bf16.mxu0 0
        %1592 = vmatpush1.bf16.msra.mxu0 %v1531
        %1593 = vmatprep.subr.bf16.mxu0 0
        %1594 = vmatpush1.bf16.msra.mxu0 %v1530
        %1595 = vmatprep.subr.bf16.mxu0 0
        %1596 = vmatpush1.bf16.msra.mxu0 %v1529
        %1597 = vmatprep.subr.bf16.mxu0 0
        %1598 = vmatpush1.bf16.msra.mxu0 %v1528
        %1599 = vmatprep.subr.bf16.mxu0 0
        %1600 = vmatpush1.bf16.msra.mxu0 %v1527
        %1601 = vmatprep.subr.bf16.mxu0 0
        %1602 = vmatpush1.bf16.msra.mxu0 %v1526
        %1603 = vmatprep.subr.bf16.mxu0 0
        %1604 = vmatpush1.bf16.msra.mxu0 %v1525
        %1605 = vmatprep.subr.bf16.mxu0 0
        %1606 = vmatpush2.bf16.msra.mxu0 %v1540
        %1607 = vmatprep.subr.bf16.mxu0 0
        %1608 = vmatpush2.bf16.msra.mxu0 %v1539
        %1609 = vmatprep.subr.bf16.mxu0 0
        %1610 = vmatpush2.bf16.msra.mxu0 %v1538
        %1611 = vmatprep.subr.bf16.mxu0 0
        %1612 = vmatpush2.bf16.msra.mxu0 %v1537
        %1613 = vmatprep.subr.bf16.mxu0 0
        %1614 = vmatpush2.bf16.msra.mxu0 %v1536
        %1615 = vmatprep.subr.bf16.mxu0 0
        %1616 = vmatpush2.bf16.msra.mxu0 %v1535
        %1617 = vmatprep.subr.bf16.mxu0 0
        %1618 = vmatpush2.bf16.msra.mxu0 %v1534
        %1619 = vmatprep.subr.bf16.mxu0 0
        %1620 = vmatpush2.bf16.msra.mxu0 %v1533
        %1621 = vmatprep.mubr.bf16.mxu0 %v1045
        %1622 = vmatmul.mubr.bf16.gmra.mxu0 %v1044
        %v1623 = vpop.f32.mrf.mxu0
        %v1624 = vadd.f32 %v1271, %v1623
        %v1625 = vpop.f32.mrf.mxu0
        %v1626 = vpop.f32.mrf.mxu0
        %v1627 = vadd.f32 %v1274, %v1626
        %v1628 = vpop.f32.mrf.mxu0
        %1629 = vmatprep.mubr.bf16.mxu0 %v1049
        %1630 = vmatmul.mubr.bf16.gmra.mxu0 %v1048
        %v1631 = vpop.f32.mrf.mxu0
        %v1632 = vadd.f32 %v1279, %v1631
        %v1633 = vpop.f32.mrf.mxu0
        %v1634 = vpop.f32.mrf.mxu0
        %v1635 = vadd.f32 %v1282, %v1634
        %v1636 = vpop.f32.mrf.mxu0
        %1637 = vmatprep.mubr.bf16.mxu0 %v1053
        %1638 = vmatmul.mubr.bf16.gmra.mxu0 %v1052
        %v1639 = vpop.f32.mrf.mxu0
        %v1640 = vadd.f32 %v1287, %v1639
        %v1641 = vpop.f32.mrf.mxu0
        %v1642 = vpop.f32.mrf.mxu0
        %v1643 = vadd.f32 %v1290, %v1642
        %v1644 = vpop.f32.mrf.mxu0
        %1645 = vmatprep.mubr.bf16.mxu0 %v1057
        %1646 = vmatmul.mubr.bf16.gmra.mxu0 %v1056
        %v1647 = vpop.f32.mrf.mxu0
        %v1648 = vadd.f32 %v1295, %v1647
        %v1649 = vpop.f32.mrf.mxu0
        %v1650 = vpop.f32.mrf.mxu0
        %v1651 = vadd.f32 %v1298, %v1650
        %v1652 = vpop.f32.mrf.mxu0
        %1653 = vmatprep.mubr.bf16.mxu0 %v1061
        %1654 = vmatmul.mubr.bf16.gmra.mxu0 %v1060
        %v1655 = vpop.f32.mrf.mxu0
        %v1656 = vadd.f32 %v1303, %v1655
        %v1657 = vpop.f32.mrf.mxu0
        %v1658 = vpop.f32.mrf.mxu0
        %v1659 = vadd.f32 %v1306, %v1658
        %v1660 = vpop.f32.mrf.mxu0
        %1661 = vmatprep.mubr.bf16.mxu0 %v1065
        %1662 = vmatmul.mubr.bf16.gmra.mxu0 %v1064
        %v1663 = vpop.f32.mrf.mxu0
        %v1664 = vadd.f32 %v1311, %v1663
        %v1665 = vpop.f32.mrf.mxu0
        %v1666 = vpop.f32.mrf.mxu0
        %v1667 = vadd.f32 %v1314, %v1666
        %v1668 = vpop.f32.mrf.mxu0
        %1669 = vmatprep.mubr.bf16.mxu0 %v1069
        %1670 = vmatmul.mubr.bf16.gmra.mxu0 %v1068
        %v1671 = vpop.f32.mrf.mxu0
        %v1672 = vadd.f32 %v1319, %v1671
        %v1673 = vpop.f32.mrf.mxu0
        %v1674 = vpop.f32.mrf.mxu0
        %v1675 = vadd.f32 %v1322, %v1674
        %v1676 = vpop.f32.mrf.mxu0
        %1677 = vmatprep.mubr.bf16.mxu0 %v1073
        %1678 = vmatmul.mubr.bf16.gmra.mxu0 %v1072
        %v1679 = vpop.f32.mrf.mxu0
        %v1680 = vadd.f32 %v1327, %v1679
        %v1681 = vpop.f32.mrf.mxu0
        %v1682 = vpop.f32.mrf.mxu0
        %v1683 = vadd.f32 %v1330, %v1682
        %v1684 = vpop.f32.mrf.mxu0
        %1685 = vmatprep.mubr.bf16.mxu0 %v1077
        %1686 = vmatmul.mubr.bf16.gmra.mxu0 %v1076
        %v1687 = vpop.f32.mrf.mxu0
        %v1688 = vadd.f32 %v1335, %v1687
        %v1689 = vpop.f32.mrf.mxu0
        %v1690 = vpop.f32.mrf.mxu0
        %v1691 = vadd.f32 %v1338, %v1690
        %v1692 = vpop.f32.mrf.mxu0
        %1693 = vmatprep.mubr.bf16.mxu0 %v1081
        %1694 = vmatmul.mubr.bf16.gmra.mxu0 %v1080
        %v1695 = vpop.f32.mrf.mxu0
        %v1696 = vadd.f32 %v1343, %v1695
        %v1697 = vpop.f32.mrf.mxu0
        %v1698 = vpop.f32.mrf.mxu0
        %v1699 = vadd.f32 %v1346, %v1698
        %v1700 = vpop.f32.mrf.mxu0
        %1701 = vmatprep.mubr.bf16.mxu0 %v1085
        %1702 = vmatmul.mubr.bf16.gmra.mxu0 %v1084
        %v1703 = vpop.f32.mrf.mxu0
        %v1704 = vadd.f32 %v1351, %v1703
        %v1705 = vpop.f32.mrf.mxu0
        %v1706 = vpop.f32.mrf.mxu0
        %v1707 = vadd.f32 %v1354, %v1706
        %v1708 = vpop.f32.mrf.mxu0
        %1709 = vmatprep.mubr.bf16.mxu0 %v1089
        %1710 = vmatmul.mubr.bf16.gmra.mxu0 %v1088
        %v1711 = vpop.f32.mrf.mxu0
        %v1712 = vadd.f32 %v1359, %v1711
        %v1713 = vpop.f32.mrf.mxu0
        %v1714 = vpop.f32.mrf.mxu0
        %v1715 = vadd.f32 %v1362, %v1714
        %v1716 = vpop.f32.mrf.mxu0
        %1717 = vmatprep.mubr.bf16.mxu0 %v1093
        %1718 = vmatmul.mubr.bf16.gmra.mxu0 %v1092
        %v1719 = vpop.f32.mrf.mxu0
        %v1720 = vadd.f32 %v1367, %v1719
        %v1721 = vpop.f32.mrf.mxu0
        %v1722 = vpop.f32.mrf.mxu0
        %v1723 = vadd.f32 %v1370, %v1722
        %v1724 = vpop.f32.mrf.mxu0
        %1725 = vmatprep.mubr.bf16.mxu0 %v1097
        %1726 = vmatmul.mubr.bf16.gmra.mxu0 %v1096
        %v1727 = vpop.f32.mrf.mxu0
        %v1728 = vadd.f32 %v1375, %v1727
        %v1729 = vpop.f32.mrf.mxu0
        %v1730 = vpop.f32.mrf.mxu0
        %v1731 = vadd.f32 %v1378, %v1730
        %v1732 = vpop.f32.mrf.mxu0
        %1733 = vmatprep.mubr.bf16.mxu0 %v1101
        %1734 = vmatmul.mubr.bf16.gmra.mxu0 %v1100
        %v1735 = vpop.f32.mrf.mxu0
        %v1736 = vadd.f32 %v1383, %v1735
        %v1737 = vpop.f32.mrf.mxu0
        %v1738 = vpop.f32.mrf.mxu0
        %v1739 = vadd.f32 %v1386, %v1738
        %v1740 = vpop.f32.mrf.mxu0
        %1741 = vmatprep.mubr.bf16.mxu0 %v1105
        %1742 = vmatmul.mubr.bf16.gmra.mxu0 %v1104
        %v1743 = vpop.f32.mrf.mxu0
        %v1744 = vadd.f32 %v1391, %v1743
        %v1745 = vpop.f32.mrf.mxu0
        %v1746 = vpop.f32.mrf.mxu0
        %v1747 = vadd.f32 %v1394, %v1746
        %v1748 = vpop.f32.mrf.mxu0
        %1749 = vdwg.mxu0
        %1750 = vmatprep.subr.bf16.mxu0 0
        %1751 = vmatpush1.bf16.msra.mxu0 %v1548
        %1752 = vmatprep.subr.bf16.mxu0 0
        %1753 = vmatpush1.bf16.msra.mxu0 %v1547
        %1754 = vmatprep.subr.bf16.mxu0 0
        %1755 = vmatpush1.bf16.msra.mxu0 %v1546
        %1756 = vmatprep.subr.bf16.mxu0 0
        %1757 = vmatpush1.bf16.msra.mxu0 %v1545
        %1758 = vmatprep.subr.bf16.mxu0 0
        %1759 = vmatpush1.bf16.msra.mxu0 %v1544
        %1760 = vmatprep.subr.bf16.mxu0 0
        %1761 = vmatpush1.bf16.msra.mxu0 %v1543
        %1762 = vmatprep.subr.bf16.mxu0 0
        %1763 = vmatpush1.bf16.msra.mxu0 %v1542
        %1764 = vmatprep.subr.bf16.mxu0 0
        %1765 = vmatpush1.bf16.msra.mxu0 %v1541
        %1766 = vmatprep.subr.bf16.mxu0 0
        %1767 = vmatpush2.bf16.msra.mxu0 %v1556
        %1768 = vmatprep.subr.bf16.mxu0 0
        %1769 = vmatpush2.bf16.msra.mxu0 %v1555
        %1770 = vmatprep.subr.bf16.mxu0 0
        %1771 = vmatpush2.bf16.msra.mxu0 %v1554
        %1772 = vmatprep.subr.bf16.mxu0 0
        %1773 = vmatpush2.bf16.msra.mxu0 %v1553
        %1774 = vmatprep.subr.bf16.mxu0 0
        %1775 = vmatpush2.bf16.msra.mxu0 %v1552
        %1776 = vmatprep.subr.bf16.mxu0 0
        %1777 = vmatpush2.bf16.msra.mxu0 %v1551
        %1778 = vmatprep.subr.bf16.mxu0 0
        %1779 = vmatpush2.bf16.msra.mxu0 %v1550
        %1780 = vmatprep.subr.bf16.mxu0 0
        %1781 = vmatpush2.bf16.msra.mxu0 %v1549
        %1782 = vmatprep.mubr.bf16.mxu0 %v1047
        %1783 = vmatmul.mubr.bf16.gmra.mxu0 %v1046
        %v1784 = vpop.f32.mrf.mxu0
        %v1785 = vadd.f32 %v1624, %v1784
        %v1786 = vpop.f32.mrf.mxu0
        %v1787 = vpop.f32.mrf.mxu0
        %v1788 = vadd.f32 %v1627, %v1787
        %v1789 = vpop.f32.mrf.mxu0
        %1790 = vmatprep.mubr.bf16.mxu0 %v1051
        %1791 = vmatmul.mubr.bf16.gmra.mxu0 %v1050
        %v1792 = vpop.f32.mrf.mxu0
        %v1793 = vadd.f32 %v1632, %v1792
        %v1794 = vpop.f32.mrf.mxu0
        %v1795 = vpop.f32.mrf.mxu0
        %v1796 = vadd.f32 %v1635, %v1795
        %v1797 = vpop.f32.mrf.mxu0
        %1798 = vmatprep.mubr.bf16.mxu0 %v1055
        %1799 = vmatmul.mubr.bf16.gmra.mxu0 %v1054
        %v1800 = vpop.f32.mrf.mxu0
        %v1801 = vadd.f32 %v1640, %v1800
        %v1802 = vpop.f32.mrf.mxu0
        %v1803 = vpop.f32.mrf.mxu0
        %v1804 = vadd.f32 %v1643, %v1803
        %v1805 = vpop.f32.mrf.mxu0
        %1806 = vmatprep.mubr.bf16.mxu0 %v1059
        %1807 = vmatmul.mubr.bf16.gmra.mxu0 %v1058
        %v1808 = vpop.f32.mrf.mxu0
        %v1809 = vadd.f32 %v1648, %v1808
        %v1810 = vpop.f32.mrf.mxu0
        %v1811 = vpop.f32.mrf.mxu0
        %v1812 = vadd.f32 %v1651, %v1811
        %v1813 = vpop.f32.mrf.mxu0
        %1814 = vmatprep.mubr.bf16.mxu0 %v1063
        %1815 = vmatmul.mubr.bf16.gmra.mxu0 %v1062
        %v1816 = vpop.f32.mrf.mxu0
        %v1817 = vadd.f32 %v1656, %v1816
        %v1818 = vpop.f32.mrf.mxu0
        %v1819 = vpop.f32.mrf.mxu0
        %v1820 = vadd.f32 %v1659, %v1819
        %v1821 = vpop.f32.mrf.mxu0
        %1822 = vmatprep.mubr.bf16.mxu0 %v1067
        %1823 = vmatmul.mubr.bf16.gmra.mxu0 %v1066
        %v1824 = vpop.f32.mrf.mxu0
        %v1825 = vadd.f32 %v1664, %v1824
        %v1826 = vpop.f32.mrf.mxu0
        %v1827 = vpop.f32.mrf.mxu0
        %v1828 = vadd.f32 %v1667, %v1827
        %v1829 = vpop.f32.mrf.mxu0
        %1830 = vmatprep.mubr.bf16.mxu0 %v1071
        %1831 = vmatmul.mubr.bf16.gmra.mxu0 %v1070
        %v1832 = vpop.f32.mrf.mxu0
        %v1833 = vadd.f32 %v1672, %v1832
        %v1834 = vpop.f32.mrf.mxu0
        %v1835 = vpop.f32.mrf.mxu0
        %v1836 = vadd.f32 %v1675, %v1835
        %v1837 = vpop.f32.mrf.mxu0
        %1838 = vmatprep.mubr.bf16.mxu0 %v1075
        %1839 = vmatmul.mubr.bf16.gmra.mxu0 %v1074
        %v1840 = vpop.f32.mrf.mxu0
        %v1841 = vadd.f32 %v1680, %v1840
        %v1842 = vpop.f32.mrf.mxu0
        %v1843 = vpop.f32.mrf.mxu0
        %v1844 = vadd.f32 %v1683, %v1843
        %v1845 = vpop.f32.mrf.mxu0
        %1846 = vmatprep.mubr.bf16.mxu0 %v1079
        %1847 = vmatmul.mubr.bf16.gmra.mxu0 %v1078
        %v1848 = vpop.f32.mrf.mxu0
        %v1849 = vadd.f32 %v1688, %v1848
        %v1850 = vpop.f32.mrf.mxu0
        %v1851 = vpop.f32.mrf.mxu0
        %v1852 = vadd.f32 %v1691, %v1851
        %v1853 = vpop.f32.mrf.mxu0
        %1854 = vmatprep.mubr.bf16.mxu0 %v1083
        %1855 = vmatmul.mubr.bf16.gmra.mxu0 %v1082
        %v1856 = vpop.f32.mrf.mxu0
        %v1857 = vadd.f32 %v1696, %v1856
        %v1858 = vpop.f32.mrf.mxu0
        %v1859 = vpop.f32.mrf.mxu0
        %v1860 = vadd.f32 %v1699, %v1859
        %v1861 = vpop.f32.mrf.mxu0
        %1862 = vmatprep.mubr.bf16.mxu0 %v1087
        %1863 = vmatmul.mubr.bf16.gmra.mxu0 %v1086
        %v1864 = vpop.f32.mrf.mxu0
        %v1865 = vadd.f32 %v1704, %v1864
        %v1866 = vpop.f32.mrf.mxu0
        %v1867 = vpop.f32.mrf.mxu0
        %v1868 = vadd.f32 %v1707, %v1867
        %v1869 = vpop.f32.mrf.mxu0
        %1870 = vmatprep.mubr.bf16.mxu0 %v1091
        %1871 = vmatmul.mubr.bf16.gmra.mxu0 %v1090
        %v1872 = vpop.f32.mrf.mxu0
        %v1873 = vadd.f32 %v1712, %v1872
        %v1874 = vpop.f32.mrf.mxu0
        %v1875 = vpop.f32.mrf.mxu0
        %v1876 = vadd.f32 %v1715, %v1875
        %v1877 = vpop.f32.mrf.mxu0
        %1878 = vmatprep.mubr.bf16.mxu0 %v1095
        %1879 = vmatmul.mubr.bf16.gmra.mxu0 %v1094
        %v1880 = vpop.f32.mrf.mxu0
        %v1881 = vadd.f32 %v1720, %v1880
        %v1882 = vpop.f32.mrf.mxu0
        %v1883 = vpop.f32.mrf.mxu0
        %v1884 = vadd.f32 %v1723, %v1883
        %v1885 = vpop.f32.mrf.mxu0
        %1886 = vmatprep.mubr.bf16.mxu0 %v1099
        %1887 = vmatmul.mubr.bf16.gmra.mxu0 %v1098
        %v1888 = vpop.f32.mrf.mxu0
        %v1889 = vadd.f32 %v1728, %v1888
        %v1890 = vpop.f32.mrf.mxu0
        %v1891 = vpop.f32.mrf.mxu0
        %v1892 = vadd.f32 %v1731, %v1891
        %v1893 = vpop.f32.mrf.mxu0
        %1894 = vmatprep.mubr.bf16.mxu0 %v1103
        %1895 = vmatmul.mubr.bf16.gmra.mxu0 %v1102
        %v1896 = vpop.f32.mrf.mxu0
        %v1897 = vadd.f32 %v1736, %v1896
        %v1898 = vpop.f32.mrf.mxu0
        %v1899 = vpop.f32.mrf.mxu0
        %v1900 = vadd.f32 %v1739, %v1899
        %v1901 = vpop.f32.mrf.mxu0
        %1902 = vmatprep.mubr.bf16.mxu0 %v1107
        %1903 = vmatmul.mubr.bf16.gmra.mxu0 %v1106
        %v1904 = vpop.f32.mrf.mxu0
        %v1905 = vadd.f32 %v1744, %v1904
        %v1906 = vpop.f32.mrf.mxu0
        %v1907 = vpop.f32.mrf.mxu0
        %v1908 = vadd.f32 %v1747, %v1907
        %v1909 = vpop.f32.mrf.mxu0
        %1910 = vdwg.mxu0
        %v1911 = vld [vmem:[%s4] sm:$0x1]
        %v1913 = vlaneseq
        %v1914 = vshrl.u32 %v1913, 7
        %v1915 = vsub.s32 0, %v1914
        %v1916 = vrot.slane %v1911, %v1915
        %v1918 = vadd.f32 %v1785, %v1916
        %v1919 = vadd.f32 %v1788, %v1916
        %v1920 = vadd.f32 %v1793, %v1916
        %v1921 = vadd.f32 %v1796, %v1916
        %v1922 = vadd.f32 %v1801, %v1916
        %v1923 = vadd.f32 %v1804, %v1916
        %v1924 = vadd.f32 %v1809, %v1916
        %v1925 = vadd.f32 %v1812, %v1916
        %v1926 = vadd.f32 %v1817, %v1916
        %v1927 = vadd.f32 %v1820, %v1916
        %v1928 = vadd.f32 %v1825, %v1916
        %v1929 = vadd.f32 %v1828, %v1916
        %v1930 = vadd.f32 %v1833, %v1916
        %v1931 = vadd.f32 %v1836, %v1916
        %v1932 = vadd.f32 %v1841, %v1916
        %v1933 = vadd.f32 %v1844, %v1916
        %v1934 = vadd.f32 %v1849, %v1916
        %v1935 = vadd.f32 %v1852, %v1916
        %v1936 = vadd.f32 %v1857, %v1916
        %v1937 = vadd.f32 %v1860, %v1916
        %v1938 = vadd.f32 %v1865, %v1916
        %v1939 = vadd.f32 %v1868, %v1916
        %v1940 = vadd.f32 %v1873, %v1916
        %v1941 = vadd.f32 %v1876, %v1916
        %v1942 = vadd.f32 %v1881, %v1916
        %v1943 = vadd.f32 %v1884, %v1916
        %v1944 = vadd.f32 %v1889, %v1916
        %v1945 = vadd.f32 %v1892, %v1916
        %v1946 = vadd.f32 %v1897, %v1916
        %v1947 = vadd.f32 %v1900, %v1916
        %v1948 = vadd.f32 %v1905, %v1916
        %v1949 = vadd.f32 %v1908, %v1916
        %1950 = vst [vmem:[%s286] sm:$0xff] %v1918
        %1951 = vst [vmem:[%s286 + $0x8] sm:$0xff] %v1919
        %1952 = vst [vmem:[%s286 + $0x10] sm:$0xff] %v1920
        %1953 = vst [vmem:[%s286 + $0x18] sm:$0xff] %v1921
        %1954 = vst [vmem:[%s286 + $0x20] sm:$0xff] %v1922
        %1955 = vst [vmem:[%s286 + $0x28] sm:$0xff] %v1923
        %1956 = vst [vmem:[%s286 + $0x30] sm:$0xff] %v1924
        %1957 = vst [vmem:[%s286 + $0x38] sm:$0xff] %v1925
        %1958 = vst [vmem:[%s286 + $0x40] sm:$0xff] %v1926
        %1959 = vst [vmem:[%s286 + $0x48] sm:$0xff] %v1927
        %1960 = vst [vmem:[%s286 + $0x50] sm:$0xff] %v1928
        %1961 = vst [vmem:[%s286 + $0x58] sm:$0xff] %v1929
        %1962 = vst [vmem:[%s286 + $0x60] sm:$0xff] %v1930
        %1963 = vst [vmem:[%s286 + $0x68] sm:$0xff] %v1931
        %1964 = vst [vmem:[%s286 + $0x70] sm:$0xff] %v1932
        %1965 = vst [vmem:[%s286 + $0x78] sm:$0xff] %v1933
        %1966 = vst [vmem:[%s286 + $0x80] sm:$0xff] %v1934
        %1967 = vst [vmem:[%s286 + $0x88] sm:$0xff] %v1935
        %1968 = vst [vmem:[%s286 + $0x90] sm:$0xff] %v1936
        %1969 = vst [vmem:[%s286 + $0x98] sm:$0xff] %v1937
        %1970 = vst [vmem:[%s286 + $0xa0] sm:$0xff] %v1938
        %1971 = vst [vmem:[%s286 + $0xa8] sm:$0xff] %v1939
        %1972 = vst [vmem:[%s286 + $0xb0] sm:$0xff] %v1940
        %1973 = vst [vmem:[%s286 + $0xb8] sm:$0xff] %v1941
        %1974 = vst [vmem:[%s286 + $0xc0] sm:$0xff] %v1942
        %1975 = vst [vmem:[%s286 + $0xc8] sm:$0xff] %v1943
        %1976 = vst [vmem:[%s286 + $0xd0] sm:$0xff] %v1944
        %1977 = vst [vmem:[%s286 + $0xd8] sm:$0xff] %v1945
        %1978 = vst [vmem:[%s286 + $0xe0] sm:$0xff] %v1946
        %1979 = vst [vmem:[%s286 + $0xe8] sm:$0xff] %v1947
        %1980 = vst [vmem:[%s286 + $0xf0] sm:$0xff] %v1948
        %1981 = vst [vmem:[%s286 + $0xf8] sm:$0xff] %v1949
        %s1982 = sand.u32 %s142, 1
        %s1983 = scalar_lea.sflag [#allocation4], %s1982
        %s1984 = sand.u32 %s142, 1
        %s1985 = smul.addr %s1984, 256
        %s1986 = scalar_lea.vmem [#allocation10], %s1985
        // Predicated region
        $region57: #{tpu_custom_call.1} parent=39 // pred_check
          %p1987 = pneg %p152
        $region58: #{tpu_custom_call.1} parent=39 // pred_check_branch
          %1989 = sbr.rel (%p1987) target = $region60
        $region59: #{tpu_custom_call.1} parent=39 // pred_region
          %s1990 = smul.u32 32, %s24
          %s1992 = ssub.s32 4096, 4096
          %1993 = vsyncadd %s1983, %s1992
          %s1994 = smul.addr %s1990, 128
          %s1995 = scalar_lea.hbm %s5, %s1994
          %s1996 = sshll.u32 %s1986, 4
          %s1997 = int_to_ptr.vmem [resolvable:$true] %s1996
          %2002 = dma.vmem_to_hbm [thread:$0]  %s1997, 4096, %s1995, %s1983, 128, 128, 8
        $region60: #{tpu_custom_call.1} parent=39 // pred_fallthru
          _
      $region40: #{tpu_custom_call.1} parent=5 // pred_fallthru
        _
      %p2003 = scmp.le.s32.totalorder 2, %s19
      // Predicated region
      $region61: #{tpu_custom_call.1} parent=5 // pred_check
        %p2004 = pneg %p2003
      $region62: #{tpu_custom_call.1} parent=5 // pred_check_branch
        %2006 = sbr.rel (%p2004) target = $region64
      $region63: #{tpu_custom_call.1} parent=5 // pred_region
        %s2007 = ssub.s32 %s19, 2
        // Predicated region
        $region65: #{tpu_custom_call.1} parent=63 // pred_check
          %p2008 = pneg %p158
        $region66: #{tpu_custom_call.1} parent=63 // pred_check_branch
          %2010 = sbr.rel (%p2008) target = $region68
        $region67: #{tpu_custom_call.1} parent=63 // pred_region
          %s2011 = sand.u32 %s143, 1
          %s2012 = scalar_lea.sflag [#allocation4], %s2011
          %s2013 = sand.u32 %s143, 1
          %s2014 = smul.addr %s2013, 256
          %s2015 = scalar_lea.vmem [#allocation10], %s2014
          %2016 = dma.done %s2012, 4096
        $region68: #{tpu_custom_call.1} parent=63 // pred_fallthru
          _
      $region64: #{tpu_custom_call.1} parent=5 // pred_fallthru
        _
    $region6: #{tpu_custom_call.1} parent=1 // loop_footer
      %s23 = sadd.s32 1, %s19
    $region7: #{tpu_custom_call.1} parent=1 // loop_footer_branch
      %18 = sbr.rel target = $region3
    $region8: #{tpu_custom_call.1} parent=1 // loop_exit
      _
    %2017 = vsyncpa [#allocation3], 1
    %s2018 = scalar_lea.sflag [#allocation3], 1
    %2019 = vsyncpa %s2018, 1
    %2020 = vsyncpa [#allocation6], 1
    %2021 = vsyncpa [#allocation9], 1
    %2022 = vsyncpa [#allocation4], 1
    %s2023 = scalar_lea.sflag [#allocation4], 1
    %2024 = vsyncpa %s2023, 1

</llo_original>
